<compile_context>
chip_gen: v5e
topology: v5e:2x2
jax: 0.10.0
libtpu: 0.0.40
codegen_flags: <defaults>
</compile_context>

<pallas_src>
import functools

import jax
import jax.numpy as jnp
from jax.experimental import pallas as pl

F32 = jnp.float32
EPS = 1e-5


# ----------------------------- fused Pallas kernel -----------------------------

def _fused_kernel(x_ref, sel1_ref, sel2_ref, sel3_ref,
                  bn0sc_ref, bn0sh_ref,
                  w1_ref, b1_ref, bn1sc_ref, bn1sh_ref,
                  w2_ref, b2_ref, bn2sc_ref, bn2sh_ref,
                  wih_ref, whh_ref, bl_ref, gmask_ref,
                  fc1w_ref, fc1b_ref, fc2w_ref, fc2b_ref,
                  o_ref):
    B = o_ref.shape[0]
    H2 = whh_ref.shape[1]              # 2H: [fwd | bwd] hidden, lane-concatenated
    H = H2 // 2
    n_layers = wih_ref.shape[0]        # 6
    L = x_ref.shape[0] // B
    T = L // 64                        # LSTM sequence length after three /4 stages

    dotf = functools.partial(jnp.dot, preferred_element_type=F32)

    def conv_relu_pool_bn(x_all, sel, w_stack, bias, sc, sh):
        # x_all: (Lin*B, Cin), rows ordered (position, batch)
        # sel:   (5*Lp*B, Lin*B) constant block-selection operator; row block k holds the
        #        tap at offset k-1 (the all-zero rows reproduce the conv's left zero pad).
        # w_stack: (3*Cin, F) = [W0^T; W1^T; W2^T]
        rows = sel.shape[0] // 5
        taps = dotf(sel, x_all)                                  # one sel matmul / stage
        t = [taps[k * rows:(k + 1) * rows] for k in range(5)]    # static row slices
        te = jnp.concatenate([t[0], t[1], t[2]], axis=1)         # taps 4p-1,4p,4p+1
        to = jnp.concatenate([t[2], t[3], t[4]], axis=1)         # taps 4p+1,4p+2,4p+3
        y = jnp.maximum(jnp.maximum(dotf(te, w_stack) + bias,    # conv@2p
                                    dotf(to, w_stack) + bias),   # conv@2p+1
                        0.0)                                     # MaxPool(2,2) o ReLU
        if sc is not None:
            y = y * sc + sh                                      # eval BatchNorm affine
        return y                                                 # (Lp*B, F)

    # ---- conv stack (fully batched, 3 matmuls per stage) ----
    xn = x_ref[...] * bn0sc_ref[...] + bn0sh_ref[...]            # bn0 (eval)
    y1 = conv_relu_pool_bn(xn, sel1_ref[...], w1_ref[...], b1_ref[...],
                           bn1sc_ref[...], bn1sh_ref[...])       # (L/4*B,  F)
    y2 = conv_relu_pool_bn(y1, sel2_ref[...], w2_ref[...], b2_ref[...],
                           bn2sc_ref[...], bn2sh_ref[...])       # (L/16*B, F)
    y3 = conv_relu_pool_bn(y2, sel3_ref[...], w2_ref[...], b2_ref[...],
                           None, None)                           # (T*B, F): conv2 reused, no BN

    # ---- 6-layer bidirectional LSTM, fwd/bwd co-run with 8H-wide packed gates ----
    # Gate-column layout (pack time): [i_f,i_b, f_f,f_b, o_f,o_b | g_f,g_b], each block H.
    gmask = gmask_ref[...] != 0.0                                # (1, 8H): True on fwd lanes
    xstk = y3                                                    # (T*B, in), rows (t, b)
    h_last = None
    for layer in range(n_layers):
        in_sz = xstk.shape[-1]
        wih = wih_ref[layer]                                     # (max_in, 8H), zero-padded
        if wih.shape[0] != in_sz:
            wih = wih[:in_sz, :]
        whh = whh_ref[layer]                                     # (2H, 8H) block-diagonal
        # Hoisted input projection: one matmul per layer covers all steps & both directions.
        G = dotf(xstk, wih) + bl_ref[layer]                      # (T*B, 8H)
        # Per-step x-contribution: fwd lanes from time s, bwd lanes from time T-1-s.
        gx = [jnp.where(gmask,
                        G[s * B:(s + 1) * B, :],
                        G[(T - 1 - s) * B:(T - s) * B, :]) for s in range(T)]
        h = jnp.zeros((B, H2), F32)                              # [h_fwd | h_bwd]
        c = jnp.zeros((B, H2), F32)
        hs = [None] * T
        for s in range(T):
            g = gx[s] + dotf(h, whh)                             # (B, 8H)
            sg = jax.nn.sigmoid(g[:, :6 * H])                    # one sigmoid call (i,f,o)
            gg = jnp.tanh(g[:, 6 * H:])                          # cell candidate (g)
            i_g, f_g, o_g = sg[:, :H2], sg[:, H2:2 * H2], sg[:, 2 * H2:]
            c = f_g * c + i_g * gg
            h = o_g * jnp.tanh(c)
            hs[s] = h
        h_last = hs[T - 1]            # = [h_fwd final | h_bwd final]  (== torch h[-2]||h[-1])
        if layer < n_layers - 1:
            # next-layer input at time t = [fwd(t) | bwd(t)]; dropout is identity in eval
            xstk = jnp.concatenate(
                [jnp.concatenate([hs[t][:, :H], hs[T - 1 - t][:, H:]], axis=1)
                 for t in range(T)], axis=0)                     # (T*B, 2H), rows (t, b)

    # ---- head: fc1 -> ReLU -> (ln_bn folded into fc2) -> fc2 ----
    hid = jnp.maximum(dotf(h_last, fc1w_ref[...]) + fc1b_ref[...], 0.0)   # (B, H)
    o_ref[...] = dotf(hid, fc2w_ref[...]) + fc2b_ref[...]                 # (B, num_classes)


# ----------------------------- packing helpers -----------------------------

def bn_affine(bn):
    gamma, beta, mean, var = bn
    scale = gamma / jnp.sqrt(var + EPS)
    shift = beta - mean * scale
    return scale, shift


def make_sel(l_in, l_out, batch):
    """Block selection matrix (5*l_out*batch, l_in*batch) for conv(k=3,s=2,p=1)+pool(2,2).

    Rows ordered (offset k, position p, batch b); columns ordered (position q, batch b).
    Row selects input position 4p + k - 1 of the same batch element; out-of-range (-1)
    rows are all zero, which reproduces the conv's left zero padding exactly.
    """
    rows = 5 * l_out * batch
    cols = l_in * batch
    r = jnp.arange(rows)
    k = r // (l_out * batch)
    p = (r // batch) % l_out
    b = r % batch
    c = jnp.arange(cols)
    q = c // batch
    b2 = c % batch
    tgt = 4 * p + k - 1
    m = (b[:, None] == b2[None, :]) & (q[None, :] == tgt[:, None]) & (tgt[:, None] >= 0)
    return m.astype(F32)


def pack_params(p, batch, seq_len):
    """One-time repacking of PyTorch-style parameters (outside the hot path)."""
    n_features = p['conv1_w'].shape[1]
    numFilter = p['conv1_w'].shape[0]
    H = p['fc1_w'].shape[0]
    max_in = max(numFilter, 2 * H)
    assert seq_len % 64 == 0 and seq_len >= 64

    bn0_sc, bn0_sh = bn_affine(p['bn0'])
    sc1, sh1 = bn_affine(p['conv1_bn'])
    sc2, sh2 = bn_affine(p['conv2_bn'])

    def interleave(wf, wb):
        # PyTorch column blocks [i, f, g, o] (per direction, each H wide) ->
        # fused layout [i_f,i_b, f_f,f_b, o_f,o_b, g_f,g_b]
        blk = lambda w, j: w[:, j * H:(j + 1) * H]
        return jnp.concatenate([blk(wf, 0), blk(wb, 0), blk(wf, 1), blk(wb, 1),
                                blk(wf, 3), blk(wb, 3), blk(wf, 2), blk(wb, 2)], axis=1)

    wih_l, whh_l, b_l = [], [], []
    for layer in p['lstm']:
        (wih_f, whh_f, bif, bhf), (wih_b, whh_b, bib, bhb) = layer
        wt = interleave(wih_f.T, wih_b.T)                       # (in, 8H)
        if wt.shape[0] < max_in:                                # layer-0 input is narrower
            wt = jnp.pad(wt, ((0, max_in - wt.shape[0]), (0, 0)))
        wih_l.append(wt)
        zero = jnp.zeros((H, 4 * H), F32)
        whh_l.append(jnp.concatenate([interleave(whh_f.T, zero),      # block-diag (2H, 8H)
                                      interleave(zero, whh_b.T)], axis=0))
        b_l.append(interleave((bif + bhf).reshape(1, 4 * H),
                              (bib + bhb).reshape(1, 4 * H)))
    gmask = interleave(jnp.ones((1, 4 * H), F32), jnp.zeros((1, 4 * H), F32))

    # Exact eval-mode fold of ln_bn into fc2 (ReLU sits BEFORE the BN, fold forward).
    ln_sc, ln_sh = bn_affine(p['ln_bn'])
    fc2_wT = (p['fc2_w'] * ln_sc[None, :]).T                    # (H, num_classes)
    fc2_b = (p['fc2_b'] + p['fc2_w'] @ ln_sh).reshape(1, -1)

    return dict(
        sel1=make_sel(seq_len, seq_len // 4, batch),
        sel2=make_sel(seq_len // 4, seq_len // 16, batch),
        sel3=make_sel(seq_len // 16, seq_len // 64, batch),
        bn0_sc=bn0_sc.reshape(1, n_features), bn0_sh=bn0_sh.reshape(1, n_features),
        # tap-stacked conv weights: rows = [W0^T; W1^T; W2^T]
        w1s=jnp.transpose(p['conv1_w'], (2, 1, 0)).reshape(3 * n_features, numFilter),
        b1=p['conv1_b'].reshape(1, numFilter),
        bn1_sc=sc1.reshape(1, numFilter), bn1_sh=sh1.reshape(1, numFilter),
        w2s=jnp.transpose(p['conv2_w'], (2, 1, 0)).reshape(3 * numFilter, numFilter),
        b2=p['conv2_b'].reshape(1, numFilter),
        bn2_sc=sc2.reshape(1, numFilter), bn2_sh=sh2.reshape(1, numFilter),
        wih=jnp.stack(wih_l),                                   # (6, max_in, 8H)
        whh=jnp.stack(whh_l),                                   # (6, 2H, 8H)
        bl=jnp.stack(b_l),                                      # (6, 1, 8H)
        gmask=gmask,                                            # (1, 8H)
        fc1_wT=p['fc1_w'].T, fc1_b=p['fc1_b'].reshape(1, H),
        fc2_wT=fc2_wT, fc2_b=fc2_b,
    )


def net_project4_forward(x, packed):
    # x: (B, n_features, L); L must be a multiple of 64 (three conv+pool /4 stages).
    B, C, L = x.shape
    assert L % 64 == 0 and L >= 64, "sequence length must be a multiple of 64"
    assert packed['sel1'].shape == (5 * (L // 4) * B, L * B), "packed params / shape mismatch"
    num_classes = packed['fc2_b'].shape[-1]
    # position-major, batch-minor row stack; channels lane-dense
    x_lc = jnp.transpose(x, (2, 0, 1)).reshape(L * B, C)
    return pl.pallas_call(
        _fused_kernel,
        out_shape=jax.ShapeDtypeStruct((B, num_classes), F32),
    )(x_lc,
      packed['sel1'], packed['sel2'], packed['sel3'],
      packed['bn0_sc'], packed['bn0_sh'],
      packed['w1s'], packed['b1'], packed['bn1_sc'], packed['bn1_sh'],
      packed['w2s'], packed['b2'], packed['bn2_sc'], packed['bn2_sh'],
      packed['wih'], packed['whh'], packed['bl'], packed['gmask'],
      packed['fc1_wT'], packed['fc1_b'], packed['fc2_wT'], packed['fc2_b'])


# ----------------------------- parameter init -----------------------------

def init_params(key, num_classes, n_features, numHN, numFilter):
    keys = iter(jax.random.split(key, 128))

    def nrm(shape, s=0.1):
        return s * jax.random.normal(next(keys), shape, dtype=F32)

    def bn_params(c):
        gamma = 1.0 + 0.1 * jax.random.normal(next(keys), (c,), dtype=F32)
        beta = nrm((c,))
        mean = nrm((c,))
        var = 1.0 + 0.1 * jnp.abs(jax.random.normal(next(keys), (c,), dtype=F32))
        return (gamma, beta, mean, var)

    p = {}
    p['bn0'] = bn_params(n_features)
    p['conv1_w'] = nrm((numFilter, n_features, 3), 0.3)
    p['conv1_b'] = nrm((numFilter,))
    p['conv1_bn'] = bn_params(numFilter)
    p['conv2_w'] = nrm((numFilter, numFilter, 3), 0.2)
    p['conv2_b'] = nrm((numFilter,))
    p['conv2_bn'] = bn_params(numFilter)
    # conv3 / conv3_bn exist in __init__ but are never used in forward -> omitted.
    H = numHN
    lstm = []
    for layer in range(6):
        in_size = numFilter if layer == 0 else 2 * H
        dirs = []
        for _ in range(2):  # forward, backward
            dirs.append((nrm((4 * H, in_size), 0.15),   # weight_ih  (gate rows i,f,g,o)
                         nrm((4 * H, H), 0.15),         # weight_hh
                         nrm((4 * H,)),                 # bias_ih
                         nrm((4 * H,))))                # bias_hh
        lstm.append(tuple(dirs))
    p['lstm'] = lstm
    p['fc1_w'] = nrm((H, 2 * H), 0.2)
    p['fc1_b'] = nrm((H,))
    p['ln_bn'] = bn_params(H)
    p['fc2_w'] = nrm((num_classes, H), 0.2)
    p['fc2_b'] = nrm((num_classes,))
    return p


# ----------------------------- main -----------------------------

if __name__ == "__main__":
    num_classes, n_features, numHN, numFilter = 5, 4, 32, 32
    B, L = 2, 128  # conv/pool chain: 128 -> 32 -> 8 -> 2 timesteps for the LSTM

    x = jax.random.normal(jax.random.PRNGKey(0), (B, n_features, L), dtype=F32)
    params = init_params(jax.random.PRNGKey(1), num_classes, n_features, numHN, numFilter)
    packed = pack_params(params, batch=B, seq_len=L)   # done once, outside the hot path

    out = jax.jit(net_project4_forward)(x, packed)
    out = jax.block_until_ready(out)
    assert out.shape == (B, num_classes), out.shape
    assert jnp.all(jnp.isfinite(out))
    print("KERNEL_OK")
</pallas_src>

<mosaic_0001>
module attributes {stable_mosaic.version = 11 : i64} {
  func.func @_fused_kernel(%arg0: memref<256x4xf32, #tpu.memory_space<vmem>>, %arg1: memref<320x256xf32, #tpu.memory_space<vmem>>, %arg2: memref<80x64xf32, #tpu.memory_space<vmem>>, %arg3: memref<20x16xf32, #tpu.memory_space<vmem>>, %arg4: memref<1x4xf32, #tpu.memory_space<vmem>>, %arg5: memref<1x4xf32, #tpu.memory_space<vmem>>, %arg6: memref<12x32xf32, #tpu.memory_space<vmem>>, %arg7: memref<1x32xf32, #tpu.memory_space<vmem>>, %arg8: memref<1x32xf32, #tpu.memory_space<vmem>>, %arg9: memref<1x32xf32, #tpu.memory_space<vmem>>, %arg10: memref<96x32xf32, #tpu.memory_space<vmem>>, %arg11: memref<1x32xf32, #tpu.memory_space<vmem>>, %arg12: memref<1x32xf32, #tpu.memory_space<vmem>>, %arg13: memref<1x32xf32, #tpu.memory_space<vmem>>, %arg14: memref<6x64x256xf32, #tpu.memory_space<vmem>>, %arg15: memref<6x64x256xf32, #tpu.memory_space<vmem>>, %arg16: memref<6x1x256xf32, #tpu.memory_space<vmem>>, %arg17: memref<1x256xf32, #tpu.memory_space<vmem>>, %arg18: memref<64x32xf32, #tpu.memory_space<vmem>>, %arg19: memref<1x32xf32, #tpu.memory_space<vmem>>, %arg20: memref<32x5xf32, #tpu.memory_space<vmem>>, %arg21: memref<1x5xf32, #tpu.memory_space<vmem>>, %arg22: memref<2x5xf32, #tpu.memory_space<vmem>>) attributes {dimension_semantics = [], scalar_prefetch = 0 : i64, scratch_operands = 0 : i64, tpu.core_type = #tpu.core_type<tc>} {
    %c0 = arith.constant 0 : index
    %c0_0 = arith.constant 0 : index
    %0 = vector.load %arg0[%c0, %c0_0] : memref<256x4xf32, #tpu.memory_space<vmem>>, vector<256x4xf32>
    %c0_1 = arith.constant 0 : index
    %c0_2 = arith.constant 0 : index
    %1 = vector.load %arg4[%c0_1, %c0_2] : memref<1x4xf32, #tpu.memory_space<vmem>>, vector<1x4xf32>
    %2 = vector.broadcast %1 : vector<1x4xf32> to vector<256x4xf32>
    %3 = arith.mulf %0, %2 : vector<256x4xf32>
    %c0_3 = arith.constant 0 : index
    %c0_4 = arith.constant 0 : index
    %4 = vector.load %arg5[%c0_3, %c0_4] : memref<1x4xf32, #tpu.memory_space<vmem>>, vector<1x4xf32>
    %5 = vector.broadcast %4 : vector<1x4xf32> to vector<256x4xf32>
    %6 = arith.addf %3, %5 : vector<256x4xf32>
    %c0_5 = arith.constant 0 : index
    %c0_6 = arith.constant 0 : index
    %7 = vector.load %arg1[%c0_5, %c0_6] : memref<320x256xf32, #tpu.memory_space<vmem>>, vector<320x256xf32>
    %c0_7 = arith.constant 0 : index
    %c0_8 = arith.constant 0 : index
    %8 = vector.load %arg6[%c0_7, %c0_8] : memref<12x32xf32, #tpu.memory_space<vmem>>, vector<12x32xf32>
    %c0_9 = arith.constant 0 : index
    %c0_10 = arith.constant 0 : index
    %9 = vector.load %arg7[%c0_9, %c0_10] : memref<1x32xf32, #tpu.memory_space<vmem>>, vector<1x32xf32>
    %c0_11 = arith.constant 0 : index
    %c0_12 = arith.constant 0 : index
    %10 = vector.load %arg8[%c0_11, %c0_12] : memref<1x32xf32, #tpu.memory_space<vmem>>, vector<1x32xf32>
    %c0_13 = arith.constant 0 : index
    %c0_14 = arith.constant 0 : index
    %11 = vector.load %arg9[%c0_13, %c0_14] : memref<1x32xf32, #tpu.memory_space<vmem>>, vector<1x32xf32>
    %cst = arith.constant dense<0.000000e+00> : vector<320x4xf32>
    %12 = tpu.matmul %7, %6, %cst {dimension_numbers = #tpu.dot_dimension_numbers<[1], [0], [0], [1], [0, 0, 1, 1], [], []>} : vector<320x256xf32>, vector<256x4xf32>, vector<320x4xf32> -> vector<320x4xf32>
    %13 = vector.extract_strided_slice %12 {offsets = [0, 0], sizes = [64, 4], strides = [1, 1]} : vector<320x4xf32> to vector<64x4xf32>
    %14 = vector.extract_strided_slice %12 {offsets = [64, 0], sizes = [64, 4], strides = [1, 1]} : vector<320x4xf32> to vector<64x4xf32>
    %15 = vector.extract_strided_slice %12 {offsets = [128, 0], sizes = [64, 4], strides = [1, 1]} : vector<320x4xf32> to vector<64x4xf32>
    %16 = vector.extract_strided_slice %12 {offsets = [192, 0], sizes = [64, 4], strides = [1, 1]} : vector<320x4xf32> to vector<64x4xf32>
    %17 = vector.extract_strided_slice %12 {offsets = [256, 0], sizes = [64, 4], strides = [1, 1]} : vector<320x4xf32> to vector<64x4xf32>
    %18 = tpu.concatenate %13, %14, %15 in 1 : vector<64x4xf32>, vector<64x4xf32>, vector<64x4xf32> -> vector<64x12xf32>
    %19 = tpu.concatenate %15, %16, %17 in 1 : vector<64x4xf32>, vector<64x4xf32>, vector<64x4xf32> -> vector<64x12xf32>
    %cst_15 = arith.constant dense<0.000000e+00> : vector<64x32xf32>
    %20 = tpu.matmul %18, %8, %cst_15 {dimension_numbers = #tpu.dot_dimension_numbers<[1], [0], [0], [1], [0, 0, 1, 1], [], []>} : vector<64x12xf32>, vector<12x32xf32>, vector<64x32xf32> -> vector<64x32xf32>
    %21 = vector.broadcast %9 : vector<1x32xf32> to vector<64x32xf32>
    %22 = arith.addf %20, %21 : vector<64x32xf32>
    %cst_16 = arith.constant dense<0.000000e+00> : vector<64x32xf32>
    %23 = tpu.matmul %19, %8, %cst_16 {dimension_numbers = #tpu.dot_dimension_numbers<[1], [0], [0], [1], [0, 0, 1, 1], [], []>} : vector<64x12xf32>, vector<12x32xf32>, vector<64x32xf32> -> vector<64x32xf32>
    %24 = vector.broadcast %9 : vector<1x32xf32> to vector<64x32xf32>
    %25 = arith.addf %23, %24 : vector<64x32xf32>
    %26 = arith.maximumf %22, %25 : vector<64x32xf32>
    %cst_17 = arith.constant 0.000000e+00 : f32
    %27 = vector.broadcast %cst_17 : f32 to vector<64x32xf32>
    %28 = arith.maximumf %26, %27 : vector<64x32xf32>
    %29 = vector.broadcast %10 : vector<1x32xf32> to vector<64x32xf32>
    %30 = arith.mulf %28, %29 : vector<64x32xf32>
    %31 = vector.broadcast %11 : vector<1x32xf32> to vector<64x32xf32>
    %32 = arith.addf %30, %31 : vector<64x32xf32>
    %c0_18 = arith.constant 0 : index
    %c0_19 = arith.constant 0 : index
    %33 = vector.load %arg2[%c0_18, %c0_19] : memref<80x64xf32, #tpu.memory_space<vmem>>, vector<80x64xf32>
    %c0_20 = arith.constant 0 : index
    %c0_21 = arith.constant 0 : index
    %34 = vector.load %arg10[%c0_20, %c0_21] : memref<96x32xf32, #tpu.memory_space<vmem>>, vector<96x32xf32>
    %c0_22 = arith.constant 0 : index
    %c0_23 = arith.constant 0 : index
    %35 = vector.load %arg11[%c0_22, %c0_23] : memref<1x32xf32, #tpu.memory_space<vmem>>, vector<1x32xf32>
    %c0_24 = arith.constant 0 : index
    %c0_25 = arith.constant 0 : index
    %36 = vector.load %arg12[%c0_24, %c0_25] : memref<1x32xf32, #tpu.memory_space<vmem>>, vector<1x32xf32>
    %c0_26 = arith.constant 0 : index
    %c0_27 = arith.constant 0 : index
    %37 = vector.load %arg13[%c0_26, %c0_27] : memref<1x32xf32, #tpu.memory_space<vmem>>, vector<1x32xf32>
    %cst_28 = arith.constant dense<0.000000e+00> : vector<80x32xf32>
    %38 = tpu.matmul %33, %32, %cst_28 {dimension_numbers = #tpu.dot_dimension_numbers<[1], [0], [0], [1], [0, 0, 1, 1], [], []>} : vector<80x64xf32>, vector<64x32xf32>, vector<80x32xf32> -> vector<80x32xf32>
    %39 = vector.extract_strided_slice %38 {offsets = [0, 0], sizes = [16, 32], strides = [1, 1]} : vector<80x32xf32> to vector<16x32xf32>
    %40 = vector.extract_strided_slice %38 {offsets = [16, 0], sizes = [16, 32], strides = [1, 1]} : vector<80x32xf32> to vector<16x32xf32>
    %41 = vector.extract_strided_slice %38 {offsets = [32, 0], sizes = [16, 32], strides = [1, 1]} : vector<80x32xf32> to vector<16x32xf32>
    %42 = vector.extract_strided_slice %38 {offsets = [48, 0], sizes = [16, 32], strides = [1, 1]} : vector<80x32xf32> to vector<16x32xf32>
    %43 = vector.extract_strided_slice %38 {offsets = [64, 0], sizes = [16, 32], strides = [1, 1]} : vector<80x32xf32> to vector<16x32xf32>
    %44 = tpu.concatenate %39, %40, %41 in 1 : vector<16x32xf32>, vector<16x32xf32>, vector<16x32xf32> -> vector<16x96xf32>
    %45 = tpu.concatenate %41, %42, %43 in 1 : vector<16x32xf32>, vector<16x32xf32>, vector<16x32xf32> -> vector<16x96xf32>
    %cst_29 = arith.constant dense<0.000000e+00> : vector<16x32xf32>
    %46 = tpu.matmul %44, %34, %cst_29 {dimension_numbers = #tpu.dot_dimension_numbers<[1], [0], [0], [1], [0, 0, 1, 1], [], []>} : vector<16x96xf32>, vector<96x32xf32>, vector<16x32xf32> -> vector<16x32xf32>
    %47 = vector.broadcast %35 : vector<1x32xf32> to vector<16x32xf32>
    %48 = arith.addf %46, %47 : vector<16x32xf32>
    %cst_30 = arith.constant dense<0.000000e+00> : vector<16x32xf32>
    %49 = tpu.matmul %45, %34, %cst_30 {dimension_numbers = #tpu.dot_dimension_numbers<[1], [0], [0], [1], [0, 0, 1, 1], [], []>} : vector<16x96xf32>, vector<96x32xf32>, vector<16x32xf32> -> vector<16x32xf32>
    %50 = vector.broadcast %35 : vector<1x32xf32> to vector<16x32xf32>
    %51 = arith.addf %49, %50 : vector<16x32xf32>
    %52 = arith.maximumf %48, %51 : vector<16x32xf32>
    %cst_31 = arith.constant 0.000000e+00 : f32
    %53 = vector.broadcast %cst_31 : f32 to vector<16x32xf32>
    %54 = arith.maximumf %52, %53 : vector<16x32xf32>
    %55 = vector.broadcast %36 : vector<1x32xf32> to vector<16x32xf32>
    %56 = arith.mulf %54, %55 : vector<16x32xf32>
    %57 = vector.broadcast %37 : vector<1x32xf32> to vector<16x32xf32>
    %58 = arith.addf %56, %57 : vector<16x32xf32>
    %c0_32 = arith.constant 0 : index
    %c0_33 = arith.constant 0 : index
    %59 = vector.load %arg3[%c0_32, %c0_33] : memref<20x16xf32, #tpu.memory_space<vmem>>, vector<20x16xf32>
    %c0_34 = arith.constant 0 : index
    %c0_35 = arith.constant 0 : index
    %60 = vector.load %arg10[%c0_34, %c0_35] : memref<96x32xf32, #tpu.memory_space<vmem>>, vector<96x32xf32>
    %c0_36 = arith.constant 0 : index
    %c0_37 = arith.constant 0 : index
    %61 = vector.load %arg11[%c0_36, %c0_37] : memref<1x32xf32, #tpu.memory_space<vmem>>, vector<1x32xf32>
    %cst_38 = arith.constant dense<0.000000e+00> : vector<20x32xf32>
    %62 = tpu.matmul %59, %58, %cst_38 {dimension_numbers = #tpu.dot_dimension_numbers<[1], [0], [0], [1], [0, 0, 1, 1], [], []>} : vector<20x16xf32>, vector<16x32xf32>, vector<20x32xf32> -> vector<20x32xf32>
    %63 = vector.extract_strided_slice %62 {offsets = [0, 0], sizes = [4, 32], strides = [1, 1]} : vector<20x32xf32> to vector<4x32xf32>
    %64 = vector.extract_strided_slice %62 {offsets = [4, 0], sizes = [4, 32], strides = [1, 1]} : vector<20x32xf32> to vector<4x32xf32>
    %65 = vector.extract_strided_slice %62 {offsets = [8, 0], sizes = [4, 32], strides = [1, 1]} : vector<20x32xf32> to vector<4x32xf32>
    %66 = vector.extract_strided_slice %62 {offsets = [12, 0], sizes = [4, 32], strides = [1, 1]} : vector<20x32xf32> to vector<4x32xf32>
    %67 = vector.extract_strided_slice %62 {offsets = [16, 0], sizes = [4, 32], strides = [1, 1]} : vector<20x32xf32> to vector<4x32xf32>
    %68 = tpu.concatenate %63, %64, %65 in 1 : vector<4x32xf32>, vector<4x32xf32>, vector<4x32xf32> -> vector<4x96xf32>
    %69 = tpu.concatenate %65, %66, %67 in 1 : vector<4x32xf32>, vector<4x32xf32>, vector<4x32xf32> -> vector<4x96xf32>
    %cst_39 = arith.constant dense<0.000000e+00> : vector<4x32xf32>
    %70 = tpu.matmul %68, %60, %cst_39 {dimension_numbers = #tpu.dot_dimension_numbers<[1], [0], [0], [1], [0, 0, 1, 1], [], []>} : vector<4x96xf32>, vector<96x32xf32>, vector<4x32xf32> -> vector<4x32xf32>
    %71 = vector.broadcast %61 : vector<1x32xf32> to vector<4x32xf32>
    %72 = arith.addf %70, %71 : vector<4x32xf32>
    %cst_40 = arith.constant dense<0.000000e+00> : vector<4x32xf32>
    %73 = tpu.matmul %69, %60, %cst_40 {dimension_numbers = #tpu.dot_dimension_numbers<[1], [0], [0], [1], [0, 0, 1, 1], [], []>} : vector<4x96xf32>, vector<96x32xf32>, vector<4x32xf32> -> vector<4x32xf32>
    %74 = vector.broadcast %61 : vector<1x32xf32> to vector<4x32xf32>
    %75 = arith.addf %73, %74 : vector<4x32xf32>
    %76 = arith.maximumf %72, %75 : vector<4x32xf32>
    %cst_41 = arith.constant 0.000000e+00 : f32
    %77 = vector.broadcast %cst_41 : f32 to vector<4x32xf32>
    %78 = arith.maximumf %76, %77 : vector<4x32xf32>
    %c0_42 = arith.constant 0 : index
    %c0_43 = arith.constant 0 : index
    %79 = vector.load %arg17[%c0_42, %c0_43] : memref<1x256xf32, #tpu.memory_space<vmem>>, vector<1x256xf32>
    %cst_44 = arith.constant 0.000000e+00 : f32
    %80 = vector.broadcast %cst_44 : f32 to vector<1x256xf32>
    %81 = arith.cmpf one, %79, %80 : vector<1x256xf32>
    %c0_45 = arith.constant 0 : index
    %c0_46 = arith.constant 0 : index
    %c0_47 = arith.constant 0 : index
    %82 = vector.load %arg14[%c0_45, %c0_46, %c0_47] : memref<6x64x256xf32, #tpu.memory_space<vmem>>, vector<1x64x256xf32>
    %83 = vector.shape_cast %82 : vector<1x64x256xf32> to vector<64x256xf32>
    %84 = vector.extract_strided_slice %83 {offsets = [0, 0], sizes = [32, 256], strides = [1, 1]} : vector<64x256xf32> to vector<32x256xf32>
    %c0_48 = arith.constant 0 : index
    %c0_49 = arith.constant 0 : index
    %c0_50 = arith.constant 0 : index
    %85 = vector.load %arg15[%c0_48, %c0_49, %c0_50] : memref<6x64x256xf32, #tpu.memory_space<vmem>>, vector<1x64x256xf32>
    %86 = vector.shape_cast %85 : vector<1x64x256xf32> to vector<64x256xf32>
    %cst_51 = arith.constant dense<0.000000e+00> : vector<4x256xf32>
    %87 = tpu.matmul %78, %84, %cst_51 {dimension_numbers = #tpu.dot_dimension_numbers<[1], [0], [0], [1], [0, 0, 1, 1], [], []>} : vector<4x32xf32>, vector<32x256xf32>, vector<4x256xf32> -> vector<4x256xf32>
    %c0_52 = arith.constant 0 : index
    %c0_53 = arith.constant 0 : index
    %c0_54 = arith.constant 0 : index
    %88 = vector.load %arg16[%c0_52, %c0_53, %c0_54] : memref<6x1x256xf32, #tpu.memory_space<vmem>>, vector<1x1x256xf32>
    %89 = vector.shape_cast %88 : vector<1x1x256xf32> to vector<1x256xf32>
    %90 = vector.broadcast %89 : vector<1x256xf32> to vector<4x256xf32>
    %91 = arith.addf %87, %90 : vector<4x256xf32>
    %92 = vector.extract_strided_slice %91 {offsets = [0, 0], sizes = [2, 256], strides = [1, 1]} : vector<4x256xf32> to vector<2x256xf32>
    %93 = vector.extract_strided_slice %91 {offsets = [2, 0], sizes = [2, 256], strides = [1, 1]} : vector<4x256xf32> to vector<2x256xf32>
    %94 = vector.shape_cast %81 : vector<1x256xi1> to vector<1x256xi1>
    %95 = vector.broadcast %94 : vector<1x256xi1> to vector<2x256xi1>
    %96 = arith.select %95, %92, %93 : vector<2x256xi1>, vector<2x256xf32>
    %97 = vector.extract_strided_slice %91 {offsets = [2, 0], sizes = [2, 256], strides = [1, 1]} : vector<4x256xf32> to vector<2x256xf32>
    %98 = vector.extract_strided_slice %91 {offsets = [0, 0], sizes = [2, 256], strides = [1, 1]} : vector<4x256xf32> to vector<2x256xf32>
    %99 = vector.shape_cast %81 : vector<1x256xi1> to vector<1x256xi1>
    %100 = vector.broadcast %99 : vector<1x256xi1> to vector<2x256xi1>
    %101 = arith.select %100, %97, %98 : vector<2x256xi1>, vector<2x256xf32>
    %cst_55 = arith.constant 0.000000e+00 : f32
    %102 = vector.broadcast %cst_55 : f32 to vector<2x64xf32>
    %cst_56 = arith.constant 0.000000e+00 : f32
    %103 = vector.broadcast %cst_56 : f32 to vector<2x64xf32>
    %cst_57 = arith.constant dense<0.000000e+00> : vector<2x256xf32>
    %104 = tpu.matmul %102, %86, %cst_57 {dimension_numbers = #tpu.dot_dimension_numbers<[1], [0], [0], [1], [0, 0, 1, 1], [], []>} : vector<2x64xf32>, vector<64x256xf32>, vector<2x256xf32> -> vector<2x256xf32>
    %105 = arith.addf %96, %104 : vector<2x256xf32>
    %106 = vector.extract_strided_slice %105 {offsets = [0, 0], sizes = [2, 192], strides = [1, 1]} : vector<2x256xf32> to vector<2x192xf32>
    %107 = arith.negf %106 : vector<2x192xf32>
    %108 = math.exp %107 : vector<2x192xf32>
    %cst_58 = arith.constant 1.000000e+00 : f32
    %109 = vector.broadcast %cst_58 : f32 to vector<2x192xf32>
    %110 = arith.addf %109, %108 : vector<2x192xf32>
    %111 = arith.divf %109, %110 : vector<2x192xf32>
    %112 = vector.extract_strided_slice %105 {offsets = [0, 192], sizes = [2, 64], strides = [1, 1]} : vector<2x256xf32> to vector<2x64xf32>
    %113 = math.tanh %112 : vector<2x64xf32>
    %114 = vector.extract_strided_slice %111 {offsets = [0, 0], sizes = [2, 64], strides = [1, 1]} : vector<2x192xf32> to vector<2x64xf32>
    %115 = vector.extract_strided_slice %111 {offsets = [0, 64], sizes = [2, 64], strides = [1, 1]} : vector<2x192xf32> to vector<2x64xf32>
    %116 = vector.extract_strided_slice %111 {offsets = [0, 128], sizes = [2, 64], strides = [1, 1]} : vector<2x192xf32> to vector<2x64xf32>
    %117 = arith.mulf %115, %103 : vector<2x64xf32>
    %118 = arith.mulf %114, %113 : vector<2x64xf32>
    %119 = arith.addf %117, %118 : vector<2x64xf32>
    %120 = math.tanh %119 : vector<2x64xf32>
    %121 = arith.mulf %116, %120 : vector<2x64xf32>
    %cst_59 = arith.constant dense<0.000000e+00> : vector<2x256xf32>
    %122 = tpu.matmul %121, %86, %cst_59 {dimension_numbers = #tpu.dot_dimension_numbers<[1], [0], [0], [1], [0, 0, 1, 1], [], []>} : vector<2x64xf32>, vector<64x256xf32>, vector<2x256xf32> -> vector<2x256xf32>
    %123 = arith.addf %101, %122 : vector<2x256xf32>
    %124 = vector.extract_strided_slice %123 {offsets = [0, 0], sizes = [2, 192], strides = [1, 1]} : vector<2x256xf32> to vector<2x192xf32>
    %125 = arith.negf %124 : vector<2x192xf32>
    %126 = math.exp %125 : vector<2x192xf32>
    %cst_60 = arith.constant 1.000000e+00 : f32
    %127 = vector.broadcast %cst_60 : f32 to vector<2x192xf32>
    %128 = arith.addf %127, %126 : vector<2x192xf32>
    %129 = arith.divf %127, %128 : vector<2x192xf32>
    %130 = vector.extract_strided_slice %123 {offsets = [0, 192], sizes = [2, 64], strides = [1, 1]} : vector<2x256xf32> to vector<2x64xf32>
    %131 = math.tanh %130 : vector<2x64xf32>
    %132 = vector.extract_strided_slice %129 {offsets = [0, 0], sizes = [2, 64], strides = [1, 1]} : vector<2x192xf32> to vector<2x64xf32>
    %133 = vector.extract_strided_slice %129 {offsets = [0, 64], sizes = [2, 64], strides = [1, 1]} : vector<2x192xf32> to vector<2x64xf32>
    %134 = vector.extract_strided_slice %129 {offsets = [0, 128], sizes = [2, 64], strides = [1, 1]} : vector<2x192xf32> to vector<2x64xf32>
    %135 = arith.mulf %133, %119 : vector<2x64xf32>
    %136 = arith.mulf %132, %131 : vector<2x64xf32>
    %137 = arith.addf %135, %136 : vector<2x64xf32>
    %138 = math.tanh %137 : vector<2x64xf32>
    %139 = arith.mulf %134, %138 : vector<2x64xf32>
    %140 = vector.extract_strided_slice %121 {offsets = [0, 0], sizes = [2, 32], strides = [1, 1]} : vector<2x64xf32> to vector<2x32xf32>
    %141 = vector.extract_strided_slice %139 {offsets = [0, 32], sizes = [2, 32], strides = [1, 1]} : vector<2x64xf32> to vector<2x32xf32>
    %142 = tpu.concatenate %140, %141 in 1 : vector<2x32xf32>, vector<2x32xf32> -> vector<2x64xf32>
    %143 = vector.extract_strided_slice %139 {offsets = [0, 0], sizes = [2, 32], strides = [1, 1]} : vector<2x64xf32> to vector<2x32xf32>
    %144 = vector.extract_strided_slice %121 {offsets = [0, 32], sizes = [2, 32], strides = [1, 1]} : vector<2x64xf32> to vector<2x32xf32>
    %145 = tpu.concatenate %143, %144 in 1 : vector<2x32xf32>, vector<2x32xf32> -> vector<2x64xf32>
    %146 = tpu.concatenate %142, %145 in 0 : vector<2x64xf32>, vector<2x64xf32> -> vector<4x64xf32>
    %c1 = arith.constant 1 : index
    %c0_61 = arith.constant 0 : index
    %c0_62 = arith.constant 0 : index
    %147 = vector.load %arg14[%c1, %c0_61, %c0_62] : memref<6x64x256xf32, #tpu.memory_space<vmem>>, vector<1x64x256xf32>
    %148 = vector.shape_cast %147 : vector<1x64x256xf32> to vector<64x256xf32>
    %c1_63 = arith.constant 1 : index
    %c0_64 = arith.constant 0 : index
    %c0_65 = arith.constant 0 : index
    %149 = vector.load %arg15[%c1_63, %c0_64, %c0_65] : memref<6x64x256xf32, #tpu.memory_space<vmem>>, vector<1x64x256xf32>
    %150 = vector.shape_cast %149 : vector<1x64x256xf32> to vector<64x256xf32>
    %cst_66 = arith.constant dense<0.000000e+00> : vector<4x256xf32>
    %151 = tpu.matmul %146, %148, %cst_66 {dimension_numbers = #tpu.dot_dimension_numbers<[1], [0], [0], [1], [0, 0, 1, 1], [], []>} : vector<4x64xf32>, vector<64x256xf32>, vector<4x256xf32> -> vector<4x256xf32>
    %c1_67 = arith.constant 1 : index
    %c0_68 = arith.constant 0 : index
    %c0_69 = arith.constant 0 : index
    %152 = vector.load %arg16[%c1_67, %c0_68, %c0_69] : memref<6x1x256xf32, #tpu.memory_space<vmem>>, vector<1x1x256xf32>
    %153 = vector.shape_cast %152 : vector<1x1x256xf32> to vector<1x256xf32>
    %154 = vector.broadcast %153 : vector<1x256xf32> to vector<4x256xf32>
    %155 = arith.addf %151, %154 : vector<4x256xf32>
    %156 = vector.extract_strided_slice %155 {offsets = [0, 0], sizes = [2, 256], strides = [1, 1]} : vector<4x256xf32> to vector<2x256xf32>
    %157 = vector.extract_strided_slice %155 {offsets = [2, 0], sizes = [2, 256], strides = [1, 1]} : vector<4x256xf32> to vector<2x256xf32>
    %158 = vector.shape_cast %81 : vector<1x256xi1> to vector<1x256xi1>
    %159 = vector.broadcast %158 : vector<1x256xi1> to vector<2x256xi1>
    %160 = arith.select %159, %156, %157 : vector<2x256xi1>, vector<2x256xf32>
    %161 = vector.extract_strided_slice %155 {offsets = [2, 0], sizes = [2, 256], strides = [1, 1]} : vector<4x256xf32> to vector<2x256xf32>
    %162 = vector.extract_strided_slice %155 {offsets = [0, 0], sizes = [2, 256], strides = [1, 1]} : vector<4x256xf32> to vector<2x256xf32>
    %163 = vector.shape_cast %81 : vector<1x256xi1> to vector<1x256xi1>
    %164 = vector.broadcast %163 : vector<1x256xi1> to vector<2x256xi1>
    %165 = arith.select %164, %161, %162 : vector<2x256xi1>, vector<2x256xf32>
    %cst_70 = arith.constant 0.000000e+00 : f32
    %166 = vector.broadcast %cst_70 : f32 to vector<2x64xf32>
    %cst_71 = arith.constant 0.000000e+00 : f32
    %167 = vector.broadcast %cst_71 : f32 to vector<2x64xf32>
    %cst_72 = arith.constant dense<0.000000e+00> : vector<2x256xf32>
    %168 = tpu.matmul %166, %150, %cst_72 {dimension_numbers = #tpu.dot_dimension_numbers<[1], [0], [0], [1], [0, 0, 1, 1], [], []>} : vector<2x64xf32>, vector<64x256xf32>, vector<2x256xf32> -> vector<2x256xf32>
    %169 = arith.addf %160, %168 : vector<2x256xf32>
    %170 = vector.extract_strided_slice %169 {offsets = [0, 0], sizes = [2, 192], strides = [1, 1]} : vector<2x256xf32> to vector<2x192xf32>
    %171 = arith.negf %170 : vector<2x192xf32>
    %172 = math.exp %171 : vector<2x192xf32>
    %cst_73 = arith.constant 1.000000e+00 : f32
    %173 = vector.broadcast %cst_73 : f32 to vector<2x192xf32>
    %174 = arith.addf %173, %172 : vector<2x192xf32>
    %175 = arith.divf %173, %174 : vector<2x192xf32>
    %176 = vector.extract_strided_slice %169 {offsets = [0, 192], sizes = [2, 64], strides = [1, 1]} : vector<2x256xf32> to vector<2x64xf32>
    %177 = math.tanh %176 : vector<2x64xf32>
    %178 = vector.extract_strided_slice %175 {offsets = [0, 0], sizes = [2, 64], strides = [1, 1]} : vector<2x192xf32> to vector<2x64xf32>
    %179 = vector.extract_strided_slice %175 {offsets = [0, 64], sizes = [2, 64], strides = [1, 1]} : vector<2x192xf32> to vector<2x64xf32>
    %180 = vector.extract_strided_slice %175 {offsets = [0, 128], sizes = [2, 64], strides = [1, 1]} : vector<2x192xf32> to vector<2x64xf32>
    %181 = arith.mulf %179, %167 : vector<2x64xf32>
    %182 = arith.mulf %178, %177 : vector<2x64xf32>
    %183 = arith.addf %181, %182 : vector<2x64xf32>
    %184 = math.tanh %183 : vector<2x64xf32>
    %185 = arith.mulf %180, %184 : vector<2x64xf32>
    %cst_74 = arith.constant dense<0.000000e+00> : vector<2x256xf32>
    %186 = tpu.matmul %185, %150, %cst_74 {dimension_numbers = #tpu.dot_dimension_numbers<[1], [0], [0], [1], [0, 0, 1, 1], [], []>} : vector<2x64xf32>, vector<64x256xf32>, vector<2x256xf32> -> vector<2x256xf32>
    %187 = arith.addf %165, %186 : vector<2x256xf32>
    %188 = vector.extract_strided_slice %187 {offsets = [0, 0], sizes = [2, 192], strides = [1, 1]} : vector<2x256xf32> to vector<2x192xf32>
    %189 = arith.negf %188 : vector<2x192xf32>
    %190 = math.exp %189 : vector<2x192xf32>
    %cst_75 = arith.constant 1.000000e+00 : f32
    %191 = vector.broadcast %cst_75 : f32 to vector<2x192xf32>
    %192 = arith.addf %191, %190 : vector<2x192xf32>
    %193 = arith.divf %191, %192 : vector<2x192xf32>
    %194 = vector.extract_strided_slice %187 {offsets = [0, 192], sizes = [2, 64], strides = [1, 1]} : vector<2x256xf32> to vector<2x64xf32>
    %195 = math.tanh %194 : vector<2x64xf32>
    %196 = vector.extract_strided_slice %193 {offsets = [0, 0], sizes = [2, 64], strides = [1, 1]} : vector<2x192xf32> to vector<2x64xf32>
    %197 = vector.extract_strided_slice %193 {offsets = [0, 64], sizes = [2, 64], strides = [1, 1]} : vector<2x192xf32> to vector<2x64xf32>
    %198 = vector.extract_strided_slice %193 {offsets = [0, 128], sizes = [2, 64], strides = [1, 1]} : vector<2x192xf32> to vector<2x64xf32>
    %199 = arith.mulf %197, %183 : vector<2x64xf32>
    %200 = arith.mulf %196, %195 : vector<2x64xf32>
    %201 = arith.addf %199, %200 : vector<2x64xf32>
    %202 = math.tanh %201 : vector<2x64xf32>
    %203 = arith.mulf %198, %202 : vector<2x64xf32>
    %204 = vector.extract_strided_slice %185 {offsets = [0, 0], sizes = [2, 32], strides = [1, 1]} : vector<2x64xf32> to vector<2x32xf32>
    %205 = vector.extract_strided_slice %203 {offsets = [0, 32], sizes = [2, 32], strides = [1, 1]} : vector<2x64xf32> to vector<2x32xf32>
    %206 = tpu.concatenate %204, %205 in 1 : vector<2x32xf32>, vector<2x32xf32> -> vector<2x64xf32>
    %207 = vector.extract_strided_slice %203 {offsets = [0, 0], sizes = [2, 32], strides = [1, 1]} : vector<2x64xf32> to vector<2x32xf32>
    %208 = vector.extract_strided_slice %185 {offsets = [0, 32], sizes = [2, 32], strides = [1, 1]} : vector<2x64xf32> to vector<2x32xf32>
    %209 = tpu.concatenate %207, %208 in 1 : vector<2x32xf32>, vector<2x32xf32> -> vector<2x64xf32>
    %210 = tpu.concatenate %206, %209 in 0 : vector<2x64xf32>, vector<2x64xf32> -> vector<4x64xf32>
    %c2 = arith.constant 2 : index
    %c0_76 = arith.constant 0 : index
    %c0_77 = arith.constant 0 : index
    %211 = vector.load %arg14[%c2, %c0_76, %c0_77] : memref<6x64x256xf32, #tpu.memory_space<vmem>>, vector<1x64x256xf32>
    %212 = vector.shape_cast %211 : vector<1x64x256xf32> to vector<64x256xf32>
    %c2_78 = arith.constant 2 : index
    %c0_79 = arith.constant 0 : index
    %c0_80 = arith.constant 0 : index
    %213 = vector.load %arg15[%c2_78, %c0_79, %c0_80] : memref<6x64x256xf32, #tpu.memory_space<vmem>>, vector<1x64x256xf32>
    %214 = vector.shape_cast %213 : vector<1x64x256xf32> to vector<64x256xf32>
    %cst_81 = arith.constant dense<0.000000e+00> : vector<4x256xf32>
    %215 = tpu.matmul %210, %212, %cst_81 {dimension_numbers = #tpu.dot_dimension_numbers<[1], [0], [0], [1], [0, 0, 1, 1], [], []>} : vector<4x64xf32>, vector<64x256xf32>, vector<4x256xf32> -> vector<4x256xf32>
    %c2_82 = arith.constant 2 : index
    %c0_83 = arith.constant 0 : index
    %c0_84 = arith.constant 0 : index
    %216 = vector.load %arg16[%c2_82, %c0_83, %c0_84] : memref<6x1x256xf32, #tpu.memory_space<vmem>>, vector<1x1x256xf32>
    %217 = vector.shape_cast %216 : vector<1x1x256xf32> to vector<1x256xf32>
    %218 = vector.broadcast %217 : vector<1x256xf32> to vector<4x256xf32>
    %219 = arith.addf %215, %218 : vector<4x256xf32>
    %220 = vector.extract_strided_slice %219 {offsets = [0, 0], sizes = [2, 256], strides = [1, 1]} : vector<4x256xf32> to vector<2x256xf32>
    %221 = vector.extract_strided_slice %219 {offsets = [2, 0], sizes = [2, 256], strides = [1, 1]} : vector<4x256xf32> to vector<2x256xf32>
    %222 = vector.shape_cast %81 : vector<1x256xi1> to vector<1x256xi1>
    %223 = vector.broadcast %222 : vector<1x256xi1> to vector<2x256xi1>
    %224 = arith.select %223, %220, %221 : vector<2x256xi1>, vector<2x256xf32>
    %225 = vector.extract_strided_slice %219 {offsets = [2, 0], sizes = [2, 256], strides = [1, 1]} : vector<4x256xf32> to vector<2x256xf32>
    %226 = vector.extract_strided_slice %219 {offsets = [0, 0], sizes = [2, 256], strides = [1, 1]} : vector<4x256xf32> to vector<2x256xf32>
    %227 = vector.shape_cast %81 : vector<1x256xi1> to vector<1x256xi1>
    %228 = vector.broadcast %227 : vector<1x256xi1> to vector<2x256xi1>
    %229 = arith.select %228, %225, %226 : vector<2x256xi1>, vector<2x256xf32>
    %cst_85 = arith.constant 0.000000e+00 : f32
    %230 = vector.broadcast %cst_85 : f32 to vector<2x64xf32>
    %cst_86 = arith.constant 0.000000e+00 : f32
    %231 = vector.broadcast %cst_86 : f32 to vector<2x64xf32>
    %cst_87 = arith.constant dense<0.000000e+00> : vector<2x256xf32>
    %232 = tpu.matmul %230, %214, %cst_87 {dimension_numbers = #tpu.dot_dimension_numbers<[1], [0], [0], [1], [0, 0, 1, 1], [], []>} : vector<2x64xf32>, vector<64x256xf32>, vector<2x256xf32> -> vector<2x256xf32>
    %233 = arith.addf %224, %232 : vector<2x256xf32>
    %234 = vector.extract_strided_slice %233 {offsets = [0, 0], sizes = [2, 192], strides = [1, 1]} : vector<2x256xf32> to vector<2x192xf32>
    %235 = arith.negf %234 : vector<2x192xf32>
    %236 = math.exp %235 : vector<2x192xf32>
    %cst_88 = arith.constant 1.000000e+00 : f32
    %237 = vector.broadcast %cst_88 : f32 to vector<2x192xf32>
    %238 = arith.addf %237, %236 : vector<2x192xf32>
    %239 = arith.divf %237, %238 : vector<2x192xf32>
    %240 = vector.extract_strided_slice %233 {offsets = [0, 192], sizes = [2, 64], strides = [1, 1]} : vector<2x256xf32> to vector<2x64xf32>
    %241 = math.tanh %240 : vector<2x64xf32>
    %242 = vector.extract_strided_slice %239 {offsets = [0, 0], sizes = [2, 64], strides = [1, 1]} : vector<2x192xf32> to vector<2x64xf32>
    %243 = vector.extract_strided_slice %239 {offsets = [0, 64], sizes = [2, 64], strides = [1, 1]} : vector<2x192xf32> to vector<2x64xf32>
    %244 = vector.extract_strided_slice %239 {offsets = [0, 128], sizes = [2, 64], strides = [1, 1]} : vector<2x192xf32> to vector<2x64xf32>
    %245 = arith.mulf %243, %231 : vector<2x64xf32>
    %246 = arith.mulf %242, %241 : vector<2x64xf32>
    %247 = arith.addf %245, %246 : vector<2x64xf32>
    %248 = math.tanh %247 : vector<2x64xf32>
    %249 = arith.mulf %244, %248 : vector<2x64xf32>
    %cst_89 = arith.constant dense<0.000000e+00> : vector<2x256xf32>
    %250 = tpu.matmul %249, %214, %cst_89 {dimension_numbers = #tpu.dot_dimension_numbers<[1], [0], [0], [1], [0, 0, 1, 1], [], []>} : vector<2x64xf32>, vector<64x256xf32>, vector<2x256xf32> -> vector<2x256xf32>
    %251 = arith.addf %229, %250 : vector<2x256xf32>
    %252 = vector.extract_strided_slice %251 {offsets = [0, 0], sizes = [2, 192], strides = [1, 1]} : vector<2x256xf32> to vector<2x192xf32>
    %253 = arith.negf %252 : vector<2x192xf32>
    %254 = math.exp %253 : vector<2x192xf32>
    %cst_90 = arith.constant 1.000000e+00 : f32
    %255 = vector.broadcast %cst_90 : f32 to vector<2x192xf32>
    %256 = arith.addf %255, %254 : vector<2x192xf32>
    %257 = arith.divf %255, %256 : vector<2x192xf32>
    %258 = vector.extract_strided_slice %251 {offsets = [0, 192], sizes = [2, 64], strides = [1, 1]} : vector<2x256xf32> to vector<2x64xf32>
    %259 = math.tanh %258 : vector<2x64xf32>
    %260 = vector.extract_strided_slice %257 {offsets = [0, 0], sizes = [2, 64], strides = [1, 1]} : vector<2x192xf32> to vector<2x64xf32>
    %261 = vector.extract_strided_slice %257 {offsets = [0, 64], sizes = [2, 64], strides = [1, 1]} : vector<2x192xf32> to vector<2x64xf32>
    %262 = vector.extract_strided_slice %257 {offsets = [0, 128], sizes = [2, 64], strides = [1, 1]} : vector<2x192xf32> to vector<2x64xf32>
    %263 = arith.mulf %261, %247 : vector<2x64xf32>
    %264 = arith.mulf %260, %259 : vector<2x64xf32>
    %265 = arith.addf %263, %264 : vector<2x64xf32>
    %266 = math.tanh %265 : vector<2x64xf32>
    %267 = arith.mulf %262, %266 : vector<2x64xf32>
    %268 = vector.extract_strided_slice %249 {offsets = [0, 0], sizes = [2, 32], strides = [1, 1]} : vector<2x64xf32> to vector<2x32xf32>
    %269 = vector.extract_strided_slice %267 {offsets = [0, 32], sizes = [2, 32], strides = [1, 1]} : vector<2x64xf32> to vector<2x32xf32>
    %270 = tpu.concatenate %268, %269 in 1 : vector<2x32xf32>, vector<2x32xf32> -> vector<2x64xf32>
    %271 = vector.extract_strided_slice %267 {offsets = [0, 0], sizes = [2, 32], strides = [1, 1]} : vector<2x64xf32> to vector<2x32xf32>
    %272 = vector.extract_strided_slice %249 {offsets = [0, 32], sizes = [2, 32], strides = [1, 1]} : vector<2x64xf32> to vector<2x32xf32>
    %273 = tpu.concatenate %271, %272 in 1 : vector<2x32xf32>, vector<2x32xf32> -> vector<2x64xf32>
    %274 = tpu.concatenate %270, %273 in 0 : vector<2x64xf32>, vector<2x64xf32> -> vector<4x64xf32>
    %c3 = arith.constant 3 : index
    %c0_91 = arith.constant 0 : index
    %c0_92 = arith.constant 0 : index
    %275 = vector.load %arg14[%c3, %c0_91, %c0_92] : memref<6x64x256xf32, #tpu.memory_space<vmem>>, vector<1x64x256xf32>
    %276 = vector.shape_cast %275 : vector<1x64x256xf32> to vector<64x256xf32>
    %c3_93 = arith.constant 3 : index
    %c0_94 = arith.constant 0 : index
    %c0_95 = arith.constant 0 : index
    %277 = vector.load %arg15[%c3_93, %c0_94, %c0_95] : memref<6x64x256xf32, #tpu.memory_space<vmem>>, vector<1x64x256xf32>
    %278 = vector.shape_cast %277 : vector<1x64x256xf32> to vector<64x256xf32>
    %cst_96 = arith.constant dense<0.000000e+00> : vector<4x256xf32>
    %279 = tpu.matmul %274, %276, %cst_96 {dimension_numbers = #tpu.dot_dimension_numbers<[1], [0], [0], [1], [0, 0, 1, 1], [], []>} : vector<4x64xf32>, vector<64x256xf32>, vector<4x256xf32> -> vector<4x256xf32>
    %c3_97 = arith.constant 3 : index
    %c0_98 = arith.constant 0 : index
    %c0_99 = arith.constant 0 : index
    %280 = vector.load %arg16[%c3_97, %c0_98, %c0_99] : memref<6x1x256xf32, #tpu.memory_space<vmem>>, vector<1x1x256xf32>
    %281 = vector.shape_cast %280 : vector<1x1x256xf32> to vector<1x256xf32>
    %282 = vector.broadcast %281 : vector<1x256xf32> to vector<4x256xf32>
    %283 = arith.addf %279, %282 : vector<4x256xf32>
    %284 = vector.extract_strided_slice %283 {offsets = [0, 0], sizes = [2, 256], strides = [1, 1]} : vector<4x256xf32> to vector<2x256xf32>
    %285 = vector.extract_strided_slice %283 {offsets = [2, 0], sizes = [2, 256], strides = [1, 1]} : vector<4x256xf32> to vector<2x256xf32>
    %286 = vector.shape_cast %81 : vector<1x256xi1> to vector<1x256xi1>
    %287 = vector.broadcast %286 : vector<1x256xi1> to vector<2x256xi1>
    %288 = arith.select %287, %284, %285 : vector<2x256xi1>, vector<2x256xf32>
    %289 = vector.extract_strided_slice %283 {offsets = [2, 0], sizes = [2, 256], strides = [1, 1]} : vector<4x256xf32> to vector<2x256xf32>
    %290 = vector.extract_strided_slice %283 {offsets = [0, 0], sizes = [2, 256], strides = [1, 1]} : vector<4x256xf32> to vector<2x256xf32>
    %291 = vector.shape_cast %81 : vector<1x256xi1> to vector<1x256xi1>
    %292 = vector.broadcast %291 : vector<1x256xi1> to vector<2x256xi1>
    %293 = arith.select %292, %289, %290 : vector<2x256xi1>, vector<2x256xf32>
    %cst_100 = arith.constant 0.000000e+00 : f32
    %294 = vector.broadcast %cst_100 : f32 to vector<2x64xf32>
    %cst_101 = arith.constant 0.000000e+00 : f32
    %295 = vector.broadcast %cst_101 : f32 to vector<2x64xf32>
    %cst_102 = arith.constant dense<0.000000e+00> : vector<2x256xf32>
    %296 = tpu.matmul %294, %278, %cst_102 {dimension_numbers = #tpu.dot_dimension_numbers<[1], [0], [0], [1], [0, 0, 1, 1], [], []>} : vector<2x64xf32>, vector<64x256xf32>, vector<2x256xf32> -> vector<2x256xf32>
    %297 = arith.addf %288, %296 : vector<2x256xf32>
    %298 = vector.extract_strided_slice %297 {offsets = [0, 0], sizes = [2, 192], strides = [1, 1]} : vector<2x256xf32> to vector<2x192xf32>
    %299 = arith.negf %298 : vector<2x192xf32>
    %300 = math.exp %299 : vector<2x192xf32>
    %cst_103 = arith.constant 1.000000e+00 : f32
    %301 = vector.broadcast %cst_103 : f32 to vector<2x192xf32>
    %302 = arith.addf %301, %300 : vector<2x192xf32>
    %303 = arith.divf %301, %302 : vector<2x192xf32>
    %304 = vector.extract_strided_slice %297 {offsets = [0, 192], sizes = [2, 64], strides = [1, 1]} : vector<2x256xf32> to vector<2x64xf32>
    %305 = math.tanh %304 : vector<2x64xf32>
    %306 = vector.extract_strided_slice %303 {offsets = [0, 0], sizes = [2, 64], strides = [1, 1]} : vector<2x192xf32> to vector<2x64xf32>
    %307 = vector.extract_strided_slice %303 {offsets = [0, 64], sizes = [2, 64], strides = [1, 1]} : vector<2x192xf32> to vector<2x64xf32>
    %308 = vector.extract_strided_slice %303 {offsets = [0, 128], sizes = [2, 64], strides = [1, 1]} : vector<2x192xf32> to vector<2x64xf32>
    %309 = arith.mulf %307, %295 : vector<2x64xf32>
    %310 = arith.mulf %306, %305 : vector<2x64xf32>
    %311 = arith.addf %309, %310 : vector<2x64xf32>
    %312 = math.tanh %311 : vector<2x64xf32>
    %313 = arith.mulf %308, %312 : vector<2x64xf32>
    %cst_104 = arith.constant dense<0.000000e+00> : vector<2x256xf32>
    %314 = tpu.matmul %313, %278, %cst_104 {dimension_numbers = #tpu.dot_dimension_numbers<[1], [0], [0], [1], [0, 0, 1, 1], [], []>} : vector<2x64xf32>, vector<64x256xf32>, vector<2x256xf32> -> vector<2x256xf32>
    %315 = arith.addf %293, %314 : vector<2x256xf32>
    %316 = vector.extract_strided_slice %315 {offsets = [0, 0], sizes = [2, 192], strides = [1, 1]} : vector<2x256xf32> to vector<2x192xf32>
    %317 = arith.negf %316 : vector<2x192xf32>
    %318 = math.exp %317 : vector<2x192xf32>
    %cst_105 = arith.constant 1.000000e+00 : f32
    %319 = vector.broadcast %cst_105 : f32 to vector<2x192xf32>
    %320 = arith.addf %319, %318 : vector<2x192xf32>
    %321 = arith.divf %319, %320 : vector<2x192xf32>
    %322 = vector.extract_strided_slice %315 {offsets = [0, 192], sizes = [2, 64], strides = [1, 1]} : vector<2x256xf32> to vector<2x64xf32>
    %323 = math.tanh %322 : vector<2x64xf32>
    %324 = vector.extract_strided_slice %321 {offsets = [0, 0], sizes = [2, 64], strides = [1, 1]} : vector<2x192xf32> to vector<2x64xf32>
    %325 = vector.extract_strided_slice %321 {offsets = [0, 64], sizes = [2, 64], strides = [1, 1]} : vector<2x192xf32> to vector<2x64xf32>
    %326 = vector.extract_strided_slice %321 {offsets = [0, 128], sizes = [2, 64], strides = [1, 1]} : vector<2x192xf32> to vector<2x64xf32>
    %327 = arith.mulf %325, %311 : vector<2x64xf32>
    %328 = arith.mulf %324, %323 : vector<2x64xf32>
    %329 = arith.addf %327, %328 : vector<2x64xf32>
    %330 = math.tanh %329 : vector<2x64xf32>
    %331 = arith.mulf %326, %330 : vector<2x64xf32>
    %332 = vector.extract_strided_slice %313 {offsets = [0, 0], sizes = [2, 32], strides = [1, 1]} : vector<2x64xf32> to vector<2x32xf32>
    %333 = vector.extract_strided_slice %331 {offsets = [0, 32], sizes = [2, 32], strides = [1, 1]} : vector<2x64xf32> to vector<2x32xf32>
    %334 = tpu.concatenate %332, %333 in 1 : vector<2x32xf32>, vector<2x32xf32> -> vector<2x64xf32>
    %335 = vector.extract_strided_slice %331 {offsets = [0, 0], sizes = [2, 32], strides = [1, 1]} : vector<2x64xf32> to vector<2x32xf32>
    %336 = vector.extract_strided_slice %313 {offsets = [0, 32], sizes = [2, 32], strides = [1, 1]} : vector<2x64xf32> to vector<2x32xf32>
    %337 = tpu.concatenate %335, %336 in 1 : vector<2x32xf32>, vector<2x32xf32> -> vector<2x64xf32>
    %338 = tpu.concatenate %334, %337 in 0 : vector<2x64xf32>, vector<2x64xf32> -> vector<4x64xf32>
    %c4 = arith.constant 4 : index
    %c0_106 = arith.constant 0 : index
    %c0_107 = arith.constant 0 : index
    %339 = vector.load %arg14[%c4, %c0_106, %c0_107] : memref<6x64x256xf32, #tpu.memory_space<vmem>>, vector<1x64x256xf32>
    %340 = vector.shape_cast %339 : vector<1x64x256xf32> to vector<64x256xf32>
    %c4_108 = arith.constant 4 : index
    %c0_109 = arith.constant 0 : index
    %c0_110 = arith.constant 0 : index
    %341 = vector.load %arg15[%c4_108, %c0_109, %c0_110] : memref<6x64x256xf32, #tpu.memory_space<vmem>>, vector<1x64x256xf32>
    %342 = vector.shape_cast %341 : vector<1x64x256xf32> to vector<64x256xf32>
    %cst_111 = arith.constant dense<0.000000e+00> : vector<4x256xf32>
    %343 = tpu.matmul %338, %340, %cst_111 {dimension_numbers = #tpu.dot_dimension_numbers<[1], [0], [0], [1], [0, 0, 1, 1], [], []>} : vector<4x64xf32>, vector<64x256xf32>, vector<4x256xf32> -> vector<4x256xf32>
    %c4_112 = arith.constant 4 : index
    %c0_113 = arith.constant 0 : index
    %c0_114 = arith.constant 0 : index
    %344 = vector.load %arg16[%c4_112, %c0_113, %c0_114] : memref<6x1x256xf32, #tpu.memory_space<vmem>>, vector<1x1x256xf32>
    %345 = vector.shape_cast %344 : vector<1x1x256xf32> to vector<1x256xf32>
    %346 = vector.broadcast %345 : vector<1x256xf32> to vector<4x256xf32>
    %347 = arith.addf %343, %346 : vector<4x256xf32>
    %348 = vector.extract_strided_slice %347 {offsets = [0, 0], sizes = [2, 256], strides = [1, 1]} : vector<4x256xf32> to vector<2x256xf32>
    %349 = vector.extract_strided_slice %347 {offsets = [2, 0], sizes = [2, 256], strides = [1, 1]} : vector<4x256xf32> to vector<2x256xf32>
    %350 = vector.shape_cast %81 : vector<1x256xi1> to vector<1x256xi1>
    %351 = vector.broadcast %350 : vector<1x256xi1> to vector<2x256xi1>
    %352 = arith.select %351, %348, %349 : vector<2x256xi1>, vector<2x256xf32>
    %353 = vector.extract_strided_slice %347 {offsets = [2, 0], sizes = [2, 256], strides = [1, 1]} : vector<4x256xf32> to vector<2x256xf32>
    %354 = vector.extract_strided_slice %347 {offsets = [0, 0], sizes = [2, 256], strides = [1, 1]} : vector<4x256xf32> to vector<2x256xf32>
    %355 = vector.shape_cast %81 : vector<1x256xi1> to vector<1x256xi1>
    %356 = vector.broadcast %355 : vector<1x256xi1> to vector<2x256xi1>
    %357 = arith.select %356, %353, %354 : vector<2x256xi1>, vector<2x256xf32>
    %cst_115 = arith.constant 0.000000e+00 : f32
    %358 = vector.broadcast %cst_115 : f32 to vector<2x64xf32>
    %cst_116 = arith.constant 0.000000e+00 : f32
    %359 = vector.broadcast %cst_116 : f32 to vector<2x64xf32>
    %cst_117 = arith.constant dense<0.000000e+00> : vector<2x256xf32>
    %360 = tpu.matmul %358, %342, %cst_117 {dimension_numbers = #tpu.dot_dimension_numbers<[1], [0], [0], [1], [0, 0, 1, 1], [], []>} : vector<2x64xf32>, vector<64x256xf32>, vector<2x256xf32> -> vector<2x256xf32>
    %361 = arith.addf %352, %360 : vector<2x256xf32>
    %362 = vector.extract_strided_slice %361 {offsets = [0, 0], sizes = [2, 192], strides = [1, 1]} : vector<2x256xf32> to vector<2x192xf32>
    %363 = arith.negf %362 : vector<2x192xf32>
    %364 = math.exp %363 : vector<2x192xf32>
    %cst_118 = arith.constant 1.000000e+00 : f32
    %365 = vector.broadcast %cst_118 : f32 to vector<2x192xf32>
    %366 = arith.addf %365, %364 : vector<2x192xf32>
    %367 = arith.divf %365, %366 : vector<2x192xf32>
    %368 = vector.extract_strided_slice %361 {offsets = [0, 192], sizes = [2, 64], strides = [1, 1]} : vector<2x256xf32> to vector<2x64xf32>
    %369 = math.tanh %368 : vector<2x64xf32>
    %370 = vector.extract_strided_slice %367 {offsets = [0, 0], sizes = [2, 64], strides = [1, 1]} : vector<2x192xf32> to vector<2x64xf32>
    %371 = vector.extract_strided_slice %367 {offsets = [0, 64], sizes = [2, 64], strides = [1, 1]} : vector<2x192xf32> to vector<2x64xf32>
    %372 = vector.extract_strided_slice %367 {offsets = [0, 128], sizes = [2, 64], strides = [1, 1]} : vector<2x192xf32> to vector<2x64xf32>
    %373 = arith.mulf %371, %359 : vector<2x64xf32>
    %374 = arith.mulf %370, %369 : vector<2x64xf32>
    %375 = arith.addf %373, %374 : vector<2x64xf32>
    %376 = math.tanh %375 : vector<2x64xf32>
    %377 = arith.mulf %372, %376 : vector<2x64xf32>
    %cst_119 = arith.constant dense<0.000000e+00> : vector<2x256xf32>
    %378 = tpu.matmul %377, %342, %cst_119 {dimension_numbers = #tpu.dot_dimension_numbers<[1], [0], [0], [1], [0, 0, 1, 1], [], []>} : vector<2x64xf32>, vector<64x256xf32>, vector<2x256xf32> -> vector<2x256xf32>
    %379 = arith.addf %357, %378 : vector<2x256xf32>
    %380 = vector.extract_strided_slice %379 {offsets = [0, 0], sizes = [2, 192], strides = [1, 1]} : vector<2x256xf32> to vector<2x192xf32>
    %381 = arith.negf %380 : vector<2x192xf32>
    %382 = math.exp %381 : vector<2x192xf32>
    %cst_120 = arith.constant 1.000000e+00 : f32
    %383 = vector.broadcast %cst_120 : f32 to vector<2x192xf32>
    %384 = arith.addf %383, %382 : vector<2x192xf32>
    %385 = arith.divf %383, %384 : vector<2x192xf32>
    %386 = vector.extract_strided_slice %379 {offsets = [0, 192], sizes = [2, 64], strides = [1, 1]} : vector<2x256xf32> to vector<2x64xf32>
    %387 = math.tanh %386 : vector<2x64xf32>
    %388 = vector.extract_strided_slice %385 {offsets = [0, 0], sizes = [2, 64], strides = [1, 1]} : vector<2x192xf32> to vector<2x64xf32>
    %389 = vector.extract_strided_slice %385 {offsets = [0, 64], sizes = [2, 64], strides = [1, 1]} : vector<2x192xf32> to vector<2x64xf32>
    %390 = vector.extract_strided_slice %385 {offsets = [0, 128], sizes = [2, 64], strides = [1, 1]} : vector<2x192xf32> to vector<2x64xf32>
    %391 = arith.mulf %389, %375 : vector<2x64xf32>
    %392 = arith.mulf %388, %387 : vector<2x64xf32>
    %393 = arith.addf %391, %392 : vector<2x64xf32>
    %394 = math.tanh %393 : vector<2x64xf32>
    %395 = arith.mulf %390, %394 : vector<2x64xf32>
    %396 = vector.extract_strided_slice %377 {offsets = [0, 0], sizes = [2, 32], strides = [1, 1]} : vector<2x64xf32> to vector<2x32xf32>
    %397 = vector.extract_strided_slice %395 {offsets = [0, 32], sizes = [2, 32], strides = [1, 1]} : vector<2x64xf32> to vector<2x32xf32>
    %398 = tpu.concatenate %396, %397 in 1 : vector<2x32xf32>, vector<2x32xf32> -> vector<2x64xf32>
    %399 = vector.extract_strided_slice %395 {offsets = [0, 0], sizes = [2, 32], strides = [1, 1]} : vector<2x64xf32> to vector<2x32xf32>
    %400 = vector.extract_strided_slice %377 {offsets = [0, 32], sizes = [2, 32], strides = [1, 1]} : vector<2x64xf32> to vector<2x32xf32>
    %401 = tpu.concatenate %399, %400 in 1 : vector<2x32xf32>, vector<2x32xf32> -> vector<2x64xf32>
    %402 = tpu.concatenate %398, %401 in 0 : vector<2x64xf32>, vector<2x64xf32> -> vector<4x64xf32>
    %c5 = arith.constant 5 : index
    %c0_121 = arith.constant 0 : index
    %c0_122 = arith.constant 0 : index
    %403 = vector.load %arg14[%c5, %c0_121, %c0_122] : memref<6x64x256xf32, #tpu.memory_space<vmem>>, vector<1x64x256xf32>
    %404 = vector.shape_cast %403 : vector<1x64x256xf32> to vector<64x256xf32>
    %c5_123 = arith.constant 5 : index
    %c0_124 = arith.constant 0 : index
    %c0_125 = arith.constant 0 : index
    %405 = vector.load %arg15[%c5_123, %c0_124, %c0_125] : memref<6x64x256xf32, #tpu.memory_space<vmem>>, vector<1x64x256xf32>
    %406 = vector.shape_cast %405 : vector<1x64x256xf32> to vector<64x256xf32>
    %cst_126 = arith.constant dense<0.000000e+00> : vector<4x256xf32>
    %407 = tpu.matmul %402, %404, %cst_126 {dimension_numbers = #tpu.dot_dimension_numbers<[1], [0], [0], [1], [0, 0, 1, 1], [], []>} : vector<4x64xf32>, vector<64x256xf32>, vector<4x256xf32> -> vector<4x256xf32>
    %c5_127 = arith.constant 5 : index
    %c0_128 = arith.constant 0 : index
    %c0_129 = arith.constant 0 : index
    %408 = vector.load %arg16[%c5_127, %c0_128, %c0_129] : memref<6x1x256xf32, #tpu.memory_space<vmem>>, vector<1x1x256xf32>
    %409 = vector.shape_cast %408 : vector<1x1x256xf32> to vector<1x256xf32>
    %410 = vector.broadcast %409 : vector<1x256xf32> to vector<4x256xf32>
    %411 = arith.addf %407, %410 : vector<4x256xf32>
    %412 = vector.extract_strided_slice %411 {offsets = [0, 0], sizes = [2, 256], strides = [1, 1]} : vector<4x256xf32> to vector<2x256xf32>
    %413 = vector.extract_strided_slice %411 {offsets = [2, 0], sizes = [2, 256], strides = [1, 1]} : vector<4x256xf32> to vector<2x256xf32>
    %414 = vector.shape_cast %81 : vector<1x256xi1> to vector<1x256xi1>
    %415 = vector.broadcast %414 : vector<1x256xi1> to vector<2x256xi1>
    %416 = arith.select %415, %412, %413 : vector<2x256xi1>, vector<2x256xf32>
    %417 = vector.extract_strided_slice %411 {offsets = [2, 0], sizes = [2, 256], strides = [1, 1]} : vector<4x256xf32> to vector<2x256xf32>
    %418 = vector.extract_strided_slice %411 {offsets = [0, 0], sizes = [2, 256], strides = [1, 1]} : vector<4x256xf32> to vector<2x256xf32>
    %419 = vector.shape_cast %81 : vector<1x256xi1> to vector<1x256xi1>
    %420 = vector.broadcast %419 : vector<1x256xi1> to vector<2x256xi1>
    %421 = arith.select %420, %417, %418 : vector<2x256xi1>, vector<2x256xf32>
    %cst_130 = arith.constant 0.000000e+00 : f32
    %422 = vector.broadcast %cst_130 : f32 to vector<2x64xf32>
    %cst_131 = arith.constant 0.000000e+00 : f32
    %423 = vector.broadcast %cst_131 : f32 to vector<2x64xf32>
    %cst_132 = arith.constant dense<0.000000e+00> : vector<2x256xf32>
    %424 = tpu.matmul %422, %406, %cst_132 {dimension_numbers = #tpu.dot_dimension_numbers<[1], [0], [0], [1], [0, 0, 1, 1], [], []>} : vector<2x64xf32>, vector<64x256xf32>, vector<2x256xf32> -> vector<2x256xf32>
    %425 = arith.addf %416, %424 : vector<2x256xf32>
    %426 = vector.extract_strided_slice %425 {offsets = [0, 0], sizes = [2, 192], strides = [1, 1]} : vector<2x256xf32> to vector<2x192xf32>
    %427 = arith.negf %426 : vector<2x192xf32>
    %428 = math.exp %427 : vector<2x192xf32>
    %cst_133 = arith.constant 1.000000e+00 : f32
    %429 = vector.broadcast %cst_133 : f32 to vector<2x192xf32>
    %430 = arith.addf %429, %428 : vector<2x192xf32>
    %431 = arith.divf %429, %430 : vector<2x192xf32>
    %432 = vector.extract_strided_slice %425 {offsets = [0, 192], sizes = [2, 64], strides = [1, 1]} : vector<2x256xf32> to vector<2x64xf32>
    %433 = math.tanh %432 : vector<2x64xf32>
    %434 = vector.extract_strided_slice %431 {offsets = [0, 0], sizes = [2, 64], strides = [1, 1]} : vector<2x192xf32> to vector<2x64xf32>
    %435 = vector.extract_strided_slice %431 {offsets = [0, 64], sizes = [2, 64], strides = [1, 1]} : vector<2x192xf32> to vector<2x64xf32>
    %436 = vector.extract_strided_slice %431 {offsets = [0, 128], sizes = [2, 64], strides = [1, 1]} : vector<2x192xf32> to vector<2x64xf32>
    %437 = arith.mulf %435, %423 : vector<2x64xf32>
    %438 = arith.mulf %434, %433 : vector<2x64xf32>
    %439 = arith.addf %437, %438 : vector<2x64xf32>
    %440 = math.tanh %439 : vector<2x64xf32>
    %441 = arith.mulf %436, %440 : vector<2x64xf32>
    %cst_134 = arith.constant dense<0.000000e+00> : vector<2x256xf32>
    %442 = tpu.matmul %441, %406, %cst_134 {dimension_numbers = #tpu.dot_dimension_numbers<[1], [0], [0], [1], [0, 0, 1, 1], [], []>} : vector<2x64xf32>, vector<64x256xf32>, vector<2x256xf32> -> vector<2x256xf32>
    %443 = arith.addf %421, %442 : vector<2x256xf32>
    %444 = vector.extract_strided_slice %443 {offsets = [0, 0], sizes = [2, 192], strides = [1, 1]} : vector<2x256xf32> to vector<2x192xf32>
    %445 = arith.negf %444 : vector<2x192xf32>
    %446 = math.exp %445 : vector<2x192xf32>
    %cst_135 = arith.constant 1.000000e+00 : f32
    %447 = vector.broadcast %cst_135 : f32 to vector<2x192xf32>
    %448 = arith.addf %447, %446 : vector<2x192xf32>
    %449 = arith.divf %447, %448 : vector<2x192xf32>
    %450 = vector.extract_strided_slice %443 {offsets = [0, 192], sizes = [2, 64], strides = [1, 1]} : vector<2x256xf32> to vector<2x64xf32>
    %451 = math.tanh %450 : vector<2x64xf32>
    %452 = vector.extract_strided_slice %449 {offsets = [0, 0], sizes = [2, 64], strides = [1, 1]} : vector<2x192xf32> to vector<2x64xf32>
    %453 = vector.extract_strided_slice %449 {offsets = [0, 64], sizes = [2, 64], strides = [1, 1]} : vector<2x192xf32> to vector<2x64xf32>
    %454 = vector.extract_strided_slice %449 {offsets = [0, 128], sizes = [2, 64], strides = [1, 1]} : vector<2x192xf32> to vector<2x64xf32>
    %455 = arith.mulf %453, %439 : vector<2x64xf32>
    %456 = arith.mulf %452, %451 : vector<2x64xf32>
    %457 = arith.addf %455, %456 : vector<2x64xf32>
    %458 = math.tanh %457 : vector<2x64xf32>
    %459 = arith.mulf %454, %458 : vector<2x64xf32>
    %c0_136 = arith.constant 0 : index
    %c0_137 = arith.constant 0 : index
    %460 = vector.load %arg18[%c0_136, %c0_137] : memref<64x32xf32, #tpu.memory_space<vmem>>, vector<64x32xf32>
    %cst_138 = arith.constant dense<0.000000e+00> : vector<2x32xf32>
    %461 = tpu.matmul %459, %460, %cst_138 {dimension_numbers = #tpu.dot_dimension_numbers<[1], [0], [0], [1], [0, 0, 1, 1], [], []>} : vector<2x64xf32>, vector<64x32xf32>, vector<2x32xf32> -> vector<2x32xf32>
    %c0_139 = arith.constant 0 : index
    %c0_140 = arith.constant 0 : index
    %462 = vector.load %arg19[%c0_139, %c0_140] : memref<1x32xf32, #tpu.memory_space<vmem>>, vector<1x32xf32>
    %463 = vector.broadcast %462 : vector<1x32xf32> to vector<2x32xf32>
    %464 = arith.addf %461, %463 : vector<2x32xf32>
    %cst_141 = arith.constant 0.000000e+00 : f32
    %465 = vector.broadcast %cst_141 : f32 to vector<2x32xf32>
    %466 = arith.maximumf %464, %465 : vector<2x32xf32>
    %c0_142 = arith.constant 0 : index
    %c0_143 = arith.constant 0 : index
    %467 = vector.load %arg20[%c0_142, %c0_143] : memref<32x5xf32, #tpu.memory_space<vmem>>, vector<32x5xf32>
    %cst_144 = arith.constant dense<0.000000e+00> : vector<2x5xf32>
    %468 = tpu.matmul %466, %467, %cst_144 {dimension_numbers = #tpu.dot_dimension_numbers<[1], [0], [0], [1], [0, 0, 1, 1], [], []>} : vector<2x32xf32>, vector<32x5xf32>, vector<2x5xf32> -> vector<2x5xf32>
    %c0_145 = arith.constant 0 : index
    %c0_146 = arith.constant 0 : index
    %469 = vector.load %arg21[%c0_145, %c0_146] : memref<1x5xf32, #tpu.memory_space<vmem>>, vector<1x5xf32>
    %470 = vector.broadcast %469 : vector<1x5xf32> to vector<2x5xf32>
    %471 = arith.addf %468, %470 : vector<2x5xf32>
    %c0_147 = arith.constant 0 : index
    %c0_148 = arith.constant 0 : index
    %472 = vector.load %arg22[%c0_147, %c0_148] : memref<2x5xf32, #tpu.memory_space<vmem>>, vector<2x5xf32>
    tpu.vector_store %arg22[%c0_147, %c0_148], %471 {strides = array<i32>} : memref<2x5xf32, #tpu.memory_space<vmem>>, vector<2x5xf32>,
    return
  }
}

</mosaic_0001>

<llo_original>
// kernel: net_project4_forward.1
$region0: #{net_project4_forward.1}
  #allocation0 [shape = 'u32[]', space=smem, size = 0x4, offset = 0x4, fixed_abs, tag = 'smem constant byte address 0x4 - core index']
  #allocation1 [shape = 'u32[72,128]{1,0:T(1,128)}', space=vmem, size = 0x9000, scoped, tag = 'internal scratch']
  %s0 = inlined_call_operand.vmem [shape: f32[256,4], index: 0, kind: input, shape index: {}]
  %s1 = inlined_call_operand.hbm [shape: f32[320,256], index: 1, kind: input, shape index: {}]
  %s2 = inlined_call_operand.vmem [shape: f32[80,64], index: 2, kind: input, shape index: {}]
  %s3 = inlined_call_operand.vmem [shape: f32[20,16], index: 3, kind: input, shape index: {}]
  %s4 = inlined_call_operand.vmem [shape: f32[1,4], index: 4, kind: input, shape index: {}]
  %s5 = inlined_call_operand.vmem [shape: f32[1,4], index: 5, kind: input, shape index: {}]
  %s6 = inlined_call_operand.vmem [shape: f32[12,32], index: 6, kind: input, shape index: {}]
  %s7 = inlined_call_operand.vmem [shape: f32[1,32], index: 7, kind: input, shape index: {}]
  %s8 = inlined_call_operand.vmem [shape: f32[1,32], index: 8, kind: input, shape index: {}]
  %s9 = inlined_call_operand.vmem [shape: f32[1,32], index: 9, kind: input, shape index: {}]
  %s10 = inlined_call_operand.vmem [shape: f32[96,32], index: 10, kind: input, shape index: {}]
  %s11 = inlined_call_operand.vmem [shape: f32[1,32], index: 11, kind: input, shape index: {}]
  %s12 = inlined_call_operand.vmem [shape: f32[1,32], index: 12, kind: input, shape index: {}]
  %s13 = inlined_call_operand.vmem [shape: f32[1,32], index: 13, kind: input, shape index: {}]
  %s14 = inlined_call_operand.hbm [shape: f32[6,64,256], index: 14, kind: input, shape index: {}]
  %s15 = inlined_call_operand.hbm [shape: f32[6,64,256], index: 15, kind: input, shape index: {}]
  %s16 = inlined_call_operand.vmem [shape: f32[6,1,256], index: 16, kind: input, shape index: {}]
  %s17 = inlined_call_operand.vmem [shape: f32[1,256], index: 17, kind: input, shape index: {}]
  %s18 = inlined_call_operand.vmem [shape: f32[64,32], index: 18, kind: input, shape index: {}]
  %s19 = inlined_call_operand.vmem [shape: f32[1,32], index: 19, kind: input, shape index: {}]
  %s20 = inlined_call_operand.vmem [shape: f32[32,5], index: 20, kind: input, shape index: {}]
  %s21 = inlined_call_operand.vmem [shape: f32[1,5], index: 21, kind: input, shape index: {}]
  %s22 = inlined_call_operand.hbm [shape: f32[2,5], index: 22, kind: output, shape index: {}]
  %s23 = sld [smem:[#allocation0]]
  $region110: #{net_project4_forward.1} parent=0
    _
  %s25 = ssub.s32 1, %s23
  %s26 = scalar_select 0, %s25, %s23
  $region1: #{net_project4_forward.1} parent=0
    #allocation2 [shape = 'u8[327680]{0}', space=vmem, size = 0x50000, scoped, tag = 'input window, operand 1, single buffered']
    #allocation3 [shape = 's32[1]{0}', space=sflag, size = 0x4, scoped, tag = 'scoped memory for net_project4_forward.1']
    #allocation4 [shape = 's32[1]{0}', space=sflag, size = 0x4, scoped, tag = 'scoped memory for net_project4_forward.1']
    #allocation5 [shape = 'u8[393216]{0}', space=vmem, size = 0x60000, scoped, tag = 'input window, operand 14, single buffered']
    #allocation6 [shape = 's32[1]{0}', space=sflag, size = 0x4, scoped, tag = 'scoped memory for net_project4_forward.1']
    #allocation7 [shape = 'u8[393216]{0}', space=vmem, size = 0x60000, scoped, tag = 'input window, operand 15, single buffered']
    #allocation8 [shape = 'u8[1024]{0}', space=vmem, size = 0x400, scoped, tag = 'output window, operand 0, single buffered']
    %27 = vsyncpa [#allocation3], 0
    %28 = vsyncpa [#allocation6], 0
    %29 = vsyncpa [#allocation4], 0
    // Predicated region
    $region2: #{net_project4_forward.1} parent=1 // pred_check
      _
    $region3: #{net_project4_forward.1} parent=1 // pred_check_branch
      %31 = sbr.rel (0) target = $region5
    $region4: #{net_project4_forward.1} parent=1 // pred_region
      _
    $region5: #{net_project4_forward.1} parent=1 // pred_fallthru
      _
    // Predicated region
    $region6: #{net_project4_forward.1} parent=1 // pred_check
      _
    $region7: #{net_project4_forward.1} parent=1 // pred_check_branch
      %33 = sbr.rel (0) target = $region9
    $region8: #{net_project4_forward.1} parent=1 // pred_region
      %35 = vsyncadd [#allocation3], 0
      %s36 = sshll.u32 %s1, 4
      %s37 = int_to_ptr.hbm [resolvable:$true] %s36
      %s38 = sshll.u32 [#allocation2], 4
      %s39 = int_to_ptr.vmem [resolvable:$true] %s38
      %44 = dma.hbm_to_vmem [thread:$0]  %s37, 10240, %s39, [#allocation3], 256, 256, 16
    $region9: #{net_project4_forward.1} parent=1 // pred_fallthru
      _
    // Predicated region
    $region10: #{net_project4_forward.1} parent=1 // pred_check
      _
    $region11: #{net_project4_forward.1} parent=1 // pred_check_branch
      %46 = sbr.rel (0) target = $region13
    $region12: #{net_project4_forward.1} parent=1 // pred_region
      _
    $region13: #{net_project4_forward.1} parent=1 // pred_fallthru
      _
    // Predicated region
    $region14: #{net_project4_forward.1} parent=1 // pred_check
      _
    $region15: #{net_project4_forward.1} parent=1 // pred_check_branch
      %48 = sbr.rel (0) target = $region17
    $region16: #{net_project4_forward.1} parent=1 // pred_region
      _
    $region17: #{net_project4_forward.1} parent=1 // pred_fallthru
      _
    // Predicated region
    $region18: #{net_project4_forward.1} parent=1 // pred_check
      _
    $region19: #{net_project4_forward.1} parent=1 // pred_check_branch
      %50 = sbr.rel (0) target = $region21
    $region20: #{net_project4_forward.1} parent=1 // pred_region
      _
    $region21: #{net_project4_forward.1} parent=1 // pred_fallthru
      _
    // Predicated region
    $region22: #{net_project4_forward.1} parent=1 // pred_check
      _
    $region23: #{net_project4_forward.1} parent=1 // pred_check_branch
      %52 = sbr.rel (0) target = $region25
    $region24: #{net_project4_forward.1} parent=1 // pred_region
      _
    $region25: #{net_project4_forward.1} parent=1 // pred_fallthru
      _
    // Predicated region
    $region26: #{net_project4_forward.1} parent=1 // pred_check
      _
    $region27: #{net_project4_forward.1} parent=1 // pred_check_branch
      %54 = sbr.rel (0) target = $region29
    $region28: #{net_project4_forward.1} parent=1 // pred_region
      _
    $region29: #{net_project4_forward.1} parent=1 // pred_fallthru
      _
    // Predicated region
    $region30: #{net_project4_forward.1} parent=1 // pred_check
      _
    $region31: #{net_project4_forward.1} parent=1 // pred_check_branch
      %56 = sbr.rel (0) target = $region33
    $region32: #{net_project4_forward.1} parent=1 // pred_region
      _
    $region33: #{net_project4_forward.1} parent=1 // pred_fallthru
      _
    // Predicated region
    $region34: #{net_project4_forward.1} parent=1 // pred_check
      _
    $region35: #{net_project4_forward.1} parent=1 // pred_check_branch
      %58 = sbr.rel (0) target = $region37
    $region36: #{net_project4_forward.1} parent=1 // pred_region
      _
    $region37: #{net_project4_forward.1} parent=1 // pred_fallthru
      _
    // Predicated region
    $region38: #{net_project4_forward.1} parent=1 // pred_check
      _
    $region39: #{net_project4_forward.1} parent=1 // pred_check_branch
      %60 = sbr.rel (0) target = $region41
    $region40: #{net_project4_forward.1} parent=1 // pred_region
      _
    $region41: #{net_project4_forward.1} parent=1 // pred_fallthru
      _
    // Predicated region
    $region42: #{net_project4_forward.1} parent=1 // pred_check
      _
    $region43: #{net_project4_forward.1} parent=1 // pred_check_branch
      %62 = sbr.rel (0) target = $region45
    $region44: #{net_project4_forward.1} parent=1 // pred_region
      _
    $region45: #{net_project4_forward.1} parent=1 // pred_fallthru
      _
    // Predicated region
    $region46: #{net_project4_forward.1} parent=1 // pred_check
      _
    $region47: #{net_project4_forward.1} parent=1 // pred_check_branch
      %64 = sbr.rel (0) target = $region49
    $region48: #{net_project4_forward.1} parent=1 // pred_region
      _
    $region49: #{net_project4_forward.1} parent=1 // pred_fallthru
      _
    // Predicated region
    $region50: #{net_project4_forward.1} parent=1 // pred_check
      _
    $region51: #{net_project4_forward.1} parent=1 // pred_check_branch
      %66 = sbr.rel (0) target = $region53
    $region52: #{net_project4_forward.1} parent=1 // pred_region
      _
    $region53: #{net_project4_forward.1} parent=1 // pred_fallthru
      _
    // Predicated region
    $region54: #{net_project4_forward.1} parent=1 // pred_check
      _
    $region55: #{net_project4_forward.1} parent=1 // pred_check_branch
      %68 = sbr.rel (0) target = $region57
    $region56: #{net_project4_forward.1} parent=1 // pred_region
      _
    $region57: #{net_project4_forward.1} parent=1 // pred_fallthru
      _
    // Predicated region
    $region58: #{net_project4_forward.1} parent=1 // pred_check
      _
    $region59: #{net_project4_forward.1} parent=1 // pred_check_branch
      %70 = sbr.rel (0) target = $region61
    $region60: #{net_project4_forward.1} parent=1 // pred_region
      %72 = vsyncadd [#allocation6], 0
      %s73 = sshll.u32 %s14, 4
      %s74 = int_to_ptr.hbm [resolvable:$true] %s73
      %s75 = sshll.u32 [#allocation5], 4
      %s76 = int_to_ptr.vmem [resolvable:$true] %s75
      %81 = dma.hbm_to_vmem [thread:$0]  %s74, 12288, %s76, [#allocation6], 256, 256, 16
    $region61: #{net_project4_forward.1} parent=1 // pred_fallthru
      _
    // Predicated region
    $region62: #{net_project4_forward.1} parent=1 // pred_check
      _
    $region63: #{net_project4_forward.1} parent=1 // pred_check_branch
      %83 = sbr.rel (0) target = $region65
    $region64: #{net_project4_forward.1} parent=1 // pred_region
      %85 = vsyncadd [#allocation6], 0
      %s86 = sshll.u32 %s15, 4
      %s87 = int_to_ptr.hbm [resolvable:$true] %s86
      %s88 = sshll.u32 [#allocation7], 4
      %s89 = int_to_ptr.vmem [resolvable:$true] %s88
      %94 = dma.hbm_to_vmem [thread:$0]  %s87, 12288, %s89, [#allocation6], 256, 256, 16
    $region65: #{net_project4_forward.1} parent=1 // pred_fallthru
      _
    // Predicated region
    $region66: #{net_project4_forward.1} parent=1 // pred_check
      _
    $region67: #{net_project4_forward.1} parent=1 // pred_check_branch
      %96 = sbr.rel (0) target = $region69
    $region68: #{net_project4_forward.1} parent=1 // pred_region
      _
    $region69: #{net_project4_forward.1} parent=1 // pred_fallthru
      _
    // Predicated region
    $region70: #{net_project4_forward.1} parent=1 // pred_check
      _
    $region71: #{net_project4_forward.1} parent=1 // pred_check_branch
      %98 = sbr.rel (0) target = $region73
    $region72: #{net_project4_forward.1} parent=1 // pred_region
      _
    $region73: #{net_project4_forward.1} parent=1 // pred_fallthru
      _
    // Predicated region
    $region74: #{net_project4_forward.1} parent=1 // pred_check
      _
    $region75: #{net_project4_forward.1} parent=1 // pred_check_branch
      %100 = sbr.rel (0) target = $region77
    $region76: #{net_project4_forward.1} parent=1 // pred_region
      _
    $region77: #{net_project4_forward.1} parent=1 // pred_fallthru
      _
    // Predicated region
    $region78: #{net_project4_forward.1} parent=1 // pred_check
      _
    $region79: #{net_project4_forward.1} parent=1 // pred_check_branch
      %102 = sbr.rel (0) target = $region81
    $region80: #{net_project4_forward.1} parent=1 // pred_region
      _
    $region81: #{net_project4_forward.1} parent=1 // pred_fallthru
      _
    // Predicated region
    $region82: #{net_project4_forward.1} parent=1 // pred_check
      _
    $region83: #{net_project4_forward.1} parent=1 // pred_check_branch
      %104 = sbr.rel (0) target = $region85
    $region84: #{net_project4_forward.1} parent=1 // pred_region
      _
    $region85: #{net_project4_forward.1} parent=1 // pred_fallthru
      _
    // Predicated region
    $region86: #{net_project4_forward.1} parent=1 // pred_check
      _
    $region87: #{net_project4_forward.1} parent=1 // pred_check_branch
      %106 = sbr.rel (0) target = $region89
    $region88: #{net_project4_forward.1} parent=1 // pred_region
      _
    $region89: #{net_project4_forward.1} parent=1 // pred_fallthru
      _
    // Predicated region
    $region90: #{net_project4_forward.1} parent=1 // pred_check
      _
    $region91: #{net_project4_forward.1} parent=1 // pred_check_branch
      %108 = sbr.rel (0) target = $region93
    $region92: #{net_project4_forward.1} parent=1 // pred_region
      %110 = dma.done [#allocation3], 10240
    $region93: #{net_project4_forward.1} parent=1 // pred_fallthru
      _
    // Predicated region
    $region94: #{net_project4_forward.1} parent=1 // pred_check
      _
    $region95: #{net_project4_forward.1} parent=1 // pred_check_branch
      %112 = sbr.rel (0) target = $region97
    $region96: #{net_project4_forward.1} parent=1 // pred_region
      %114 = dma.done [#allocation6], 12288
    $region97: #{net_project4_forward.1} parent=1 // pred_fallthru
      _
    // Predicated region
    $region98: #{net_project4_forward.1} parent=1 // pred_check
      _
    $region99: #{net_project4_forward.1} parent=1 // pred_check_branch
      %116 = sbr.rel (0) target = $region101
    $region100: #{net_project4_forward.1} parent=1 // pred_region
      %118 = dma.done [#allocation6], 12288
    $region101: #{net_project4_forward.1} parent=1 // pred_fallthru
      _
    %v119 = vld [vmem:[%s0] sm:$0xff]
    %v120 = vld [vmem:[%s0 + $0x8] sm:$0xff]
    %v121 = vld [vmem:[%s0 + $0x10] sm:$0xff]
    %v122 = vld [vmem:[%s0 + $0x18] sm:$0xff]
    %v123 = vld [vmem:[%s0 + $0x20] sm:$0xff]
    %v124 = vld [vmem:[%s0 + $0x28] sm:$0xff]
    %v125 = vld [vmem:[%s0 + $0x30] sm:$0xff]
    %v126 = vld [vmem:[%s0 + $0x38] sm:$0xff]
    %v127 = vld [vmem:[%s0 + $0x40] sm:$0xff]
    %v128 = vld [vmem:[%s0 + $0x48] sm:$0xff]
    %v129 = vld [vmem:[%s0 + $0x50] sm:$0xff]
    %v130 = vld [vmem:[%s0 + $0x58] sm:$0xff]
    %v131 = vld [vmem:[%s0 + $0x60] sm:$0xff]
    %v132 = vld [vmem:[%s0 + $0x68] sm:$0xff]
    %v133 = vld [vmem:[%s0 + $0x70] sm:$0xff]
    %v134 = vld [vmem:[%s0 + $0x78] sm:$0xff]
    %v135 = vld [vmem:[%s0 + $0x80] sm:$0xff]
    %v136 = vld [vmem:[%s0 + $0x88] sm:$0xff]
    %v137 = vld [vmem:[%s0 + $0x90] sm:$0xff]
    %v138 = vld [vmem:[%s0 + $0x98] sm:$0xff]
    %v139 = vld [vmem:[%s0 + $0xa0] sm:$0xff]
    %v140 = vld [vmem:[%s0 + $0xa8] sm:$0xff]
    %v141 = vld [vmem:[%s0 + $0xb0] sm:$0xff]
    %v142 = vld [vmem:[%s0 + $0xb8] sm:$0xff]
    %v143 = vld [vmem:[%s0 + $0xc0] sm:$0xff]
    %v144 = vld [vmem:[%s0 + $0xc8] sm:$0xff]
    %v145 = vld [vmem:[%s0 + $0xd0] sm:$0xff]
    %v146 = vld [vmem:[%s0 + $0xd8] sm:$0xff]
    %v147 = vld [vmem:[%s0 + $0xe0] sm:$0xff]
    %v148 = vld [vmem:[%s0 + $0xe8] sm:$0xff]
    %v149 = vld [vmem:[%s0 + $0xf0] sm:$0xff]
    %v150 = vld [vmem:[%s0 + $0xf8] sm:$0xff]
    %v151 = vld [vmem:[%s4] sm:$0x1]
    %v153 = vperm.slane %v151, 0
    %v155 = vmul.f32 %v119, %v153
    %v156 = vmul.f32 %v120, %v153
    %v157 = vmul.f32 %v121, %v153
    %v158 = vmul.f32 %v122, %v153
    %v159 = vmul.f32 %v123, %v153
    %v160 = vmul.f32 %v124, %v153
    %v161 = vmul.f32 %v125, %v153
    %v162 = vmul.f32 %v126, %v153
    %v163 = vmul.f32 %v127, %v153
    %v164 = vmul.f32 %v128, %v153
    %v165 = vmul.f32 %v129, %v153
    %v166 = vmul.f32 %v130, %v153
    %v167 = vmul.f32 %v131, %v153
    %v168 = vmul.f32 %v132, %v153
    %v169 = vmul.f32 %v133, %v153
    %v170 = vmul.f32 %v134, %v153
    %v171 = vmul.f32 %v135, %v153
    %v172 = vmul.f32 %v136, %v153
    %v173 = vmul.f32 %v137, %v153
    %v174 = vmul.f32 %v138, %v153
    %v175 = vmul.f32 %v139, %v153
    %v176 = vmul.f32 %v140, %v153
    %v177 = vmul.f32 %v141, %v153
    %v178 = vmul.f32 %v142, %v153
    %v179 = vmul.f32 %v143, %v153
    %v180 = vmul.f32 %v144, %v153
    %v181 = vmul.f32 %v145, %v153
    %v182 = vmul.f32 %v146, %v153
    %v183 = vmul.f32 %v147, %v153
    %v184 = vmul.f32 %v148, %v153
    %v185 = vmul.f32 %v149, %v153
    %v186 = vmul.f32 %v150, %v153
    %v187 = vld [vmem:[%s5] sm:$0x1]
    %v189 = vperm.slane %v187, 0
    %v191 = vadd.f32 %v155, %v189
    %v192 = vadd.f32 %v156, %v189
    %v193 = vadd.f32 %v157, %v189
    %v194 = vadd.f32 %v158, %v189
    %v195 = vadd.f32 %v159, %v189
    %v196 = vadd.f32 %v160, %v189
    %v197 = vadd.f32 %v161, %v189
    %v198 = vadd.f32 %v162, %v189
    %v199 = vadd.f32 %v163, %v189
    %v200 = vadd.f32 %v164, %v189
    %v201 = vadd.f32 %v165, %v189
    %v202 = vadd.f32 %v166, %v189
    %v203 = vadd.f32 %v167, %v189
    %v204 = vadd.f32 %v168, %v189
    %v205 = vadd.f32 %v169, %v189
    %v206 = vadd.f32 %v170, %v189
    %v207 = vadd.f32 %v171, %v189
    %v208 = vadd.f32 %v172, %v189
    %v209 = vadd.f32 %v173, %v189
    %v210 = vadd.f32 %v174, %v189
    %v211 = vadd.f32 %v175, %v189
    %v212 = vadd.f32 %v176, %v189
    %v213 = vadd.f32 %v177, %v189
    %v214 = vadd.f32 %v178, %v189
    %v215 = vadd.f32 %v179, %v189
    %v216 = vadd.f32 %v180, %v189
    %v217 = vadd.f32 %v181, %v189
    %v218 = vadd.f32 %v182, %v189
    %v219 = vadd.f32 %v183, %v189
    %v220 = vadd.f32 %v184, %v189
    %v221 = vadd.f32 %v185, %v189
    %v222 = vadd.f32 %v186, %v189
    %v223 = vld [vmem:[#allocation2] sm:$0xff]
    %v224 = vld [vmem:[#allocation2 + $0x8] sm:$0xff]
    %v225 = vld [vmem:[#allocation2 + $0x10] sm:$0xff]
    %v226 = vld [vmem:[#allocation2 + $0x18] sm:$0xff]
    %v227 = vld [vmem:[#allocation2 + $0x20] sm:$0xff]
    %v228 = vld [vmem:[#allocation2 + $0x28] sm:$0xff]
    %v229 = vld [vmem:[#allocation2 + $0x30] sm:$0xff]
    %v230 = vld [vmem:[#allocation2 + $0x38] sm:$0xff]
    %v231 = vld [vmem:[#allocation2 + $0x40] sm:$0xff]
    %v232 = vld [vmem:[#allocation2 + $0x48] sm:$0xff]
    %v233 = vld [vmem:[#allocation2 + $0x50] sm:$0xff]
    %v234 = vld [vmem:[#allocation2 + $0x58] sm:$0xff]
    %v235 = vld [vmem:[#allocation2 + $0x60] sm:$0xff]
    %v236 = vld [vmem:[#allocation2 + $0x68] sm:$0xff]
    %v237 = vld [vmem:[#allocation2 + $0x70] sm:$0xff]
    %v238 = vld [vmem:[#allocation2 + $0x78] sm:$0xff]
    %v239 = vld [vmem:[#allocation2 + $0x80] sm:$0xff]
    %v240 = vld [vmem:[#allocation2 + $0x88] sm:$0xff]
    %v241 = vld [vmem:[#allocation2 + $0x90] sm:$0xff]
    %v242 = vld [vmem:[#allocation2 + $0x98] sm:$0xff]
    %v243 = vld [vmem:[#allocation2 + $0xa0] sm:$0xff]
    %v244 = vld [vmem:[#allocation2 + $0xa8] sm:$0xff]
    %v245 = vld [vmem:[#allocation2 + $0xb0] sm:$0xff]
    %v246 = vld [vmem:[#allocation2 + $0xb8] sm:$0xff]
    %v247 = vld [vmem:[#allocation2 + $0xc0] sm:$0xff]
    %v248 = vld [vmem:[#allocation2 + $0xc8] sm:$0xff]
    %v249 = vld [vmem:[#allocation2 + $0xd0] sm:$0xff]
    %v250 = vld [vmem:[#allocation2 + $0xd8] sm:$0xff]
    %v251 = vld [vmem:[#allocation2 + $0xe0] sm:$0xff]
    %v252 = vld [vmem:[#allocation2 + $0xe8] sm:$0xff]
    %v253 = vld [vmem:[#allocation2 + $0xf0] sm:$0xff]
    %v254 = vld [vmem:[#allocation2 + $0xf8] sm:$0xff]
    %v255 = vld [vmem:[#allocation2 + $0x100] sm:$0xff]
    %v256 = vld [vmem:[#allocation2 + $0x108] sm:$0xff]
    %v257 = vld [vmem:[#allocation2 + $0x110] sm:$0xff]
    %v258 = vld [vmem:[#allocation2 + $0x118] sm:$0xff]
    %v259 = vld [vmem:[#allocation2 + $0x120] sm:$0xff]
    %v260 = vld [vmem:[#allocation2 + $0x128] sm:$0xff]
    %v261 = vld [vmem:[#allocation2 + $0x130] sm:$0xff]
    %v262 = vld [vmem:[#allocation2 + $0x138] sm:$0xff]
    %v263 = vld [vmem:[#allocation2 + $0x140] sm:$0xff]
    %v264 = vld [vmem:[#allocation2 + $0x148] sm:$0xff]
    %v265 = vld [vmem:[#allocation2 + $0x150] sm:$0xff]
    %v266 = vld [vmem:[#allocation2 + $0x158] sm:$0xff]
    %v267 = vld [vmem:[#allocation2 + $0x160] sm:$0xff]
    %v268 = vld [vmem:[#allocation2 + $0x168] sm:$0xff]
    %v269 = vld [vmem:[#allocation2 + $0x170] sm:$0xff]
    %v270 = vld [vmem:[#allocation2 + $0x178] sm:$0xff]
    %v271 = vld [vmem:[#allocation2 + $0x180] sm:$0xff]
    %v272 = vld [vmem:[#allocation2 + $0x188] sm:$0xff]
    %v273 = vld [vmem:[#allocation2 + $0x190] sm:$0xff]
    %v274 = vld [vmem:[#allocation2 + $0x198] sm:$0xff]
    %v275 = vld [vmem:[#allocation2 + $0x1a0] sm:$0xff]
    %v276 = vld [vmem:[#allocation2 + $0x1a8] sm:$0xff]
    %v277 = vld [vmem:[#allocation2 + $0x1b0] sm:$0xff]
    %v278 = vld [vmem:[#allocation2 + $0x1b8] sm:$0xff]
    %v279 = vld [vmem:[#allocation2 + $0x1c0] sm:$0xff]
    %v280 = vld [vmem:[#allocation2 + $0x1c8] sm:$0xff]
    %v281 = vld [vmem:[#allocation2 + $0x1d0] sm:$0xff]
    %v282 = vld [vmem:[#allocation2 + $0x1d8] sm:$0xff]
    %v283 = vld [vmem:[#allocation2 + $0x1e0] sm:$0xff]
    %v284 = vld [vmem:[#allocation2 + $0x1e8] sm:$0xff]
    %v285 = vld [vmem:[#allocation2 + $0x1f0] sm:$0xff]
    %v286 = vld [vmem:[#allocation2 + $0x1f8] sm:$0xff]
    %v287 = vld [vmem:[#allocation2 + $0x200] sm:$0xff]
    %v288 = vld [vmem:[#allocation2 + $0x208] sm:$0xff]
    %v289 = vld [vmem:[#allocation2 + $0x210] sm:$0xff]
    %v290 = vld [vmem:[#allocation2 + $0x218] sm:$0xff]
    %v291 = vld [vmem:[#allocation2 + $0x220] sm:$0xff]
    %v292 = vld [vmem:[#allocation2 + $0x228] sm:$0xff]
    %v293 = vld [vmem:[#allocation2 + $0x230] sm:$0xff]
    %v294 = vld [vmem:[#allocation2 + $0x238] sm:$0xff]
    %v295 = vld [vmem:[#allocation2 + $0x240] sm:$0xff]
    %v296 = vld [vmem:[#allocation2 + $0x248] sm:$0xff]
    %v297 = vld [vmem:[#allocation2 + $0x250] sm:$0xff]
    %v298 = vld [vmem:[#allocation2 + $0x258] sm:$0xff]
    %v299 = vld [vmem:[#allocation2 + $0x260] sm:$0xff]
    %v300 = vld [vmem:[#allocation2 + $0x268] sm:$0xff]
    %v301 = vld [vmem:[#allocation2 + $0x270] sm:$0xff]
    %v302 = vld [vmem:[#allocation2 + $0x278] sm:$0xff]
    %v303 = vld [vmem:[%s6] sm:$0xff]
    %v304 = vld [vmem:[%s6 + $0x8] sm:$0xf]
    %v305 = vld [vmem:[%s7] sm:$0x1]
    %v306 = vld [vmem:[%s8] sm:$0x1]
    %v307 = vld [vmem:[%s9] sm:$0x1]
    %308 = vmatpush.msra.mxu0 %v206
    %309 = vmatpush.msra.mxu0 %v205
    %310 = vmatpush.msra.mxu0 %v204
    %311 = vmatpush.msra.mxu0 %v203
    %312 = vmatpush.msra.mxu0 %v202
    %313 = vmatpush.msra.mxu0 %v201
    %314 = vmatpush.msra.mxu0 %v200
    %315 = vmatpush.msra.mxu0 %v199
    %316 = vmatpush.msra.mxu0 %v198
    %317 = vmatpush.msra.mxu0 %v197
    %318 = vmatpush.msra.mxu0 %v196
    %319 = vmatpush.msra.mxu0 %v195
    %320 = vmatpush.msra.mxu0 %v194
    %321 = vmatpush.msra.mxu0 %v193
    %322 = vmatpush.msra.mxu0 %v192
    %323 = vmatpush.msra.mxu0 %v191
    %324 = vmatmul.f32.gmra.mxu0 %v223
    %v325 = vpop.f32.mrf.mxu0
    %v326 = vadd.f32 0.0, %v325
    %327 = vmatmul.f32.gmra.mxu0 %v225
    %v328 = vpop.f32.mrf.mxu0
    %v329 = vadd.f32 0.0, %v328
    %330 = vmatmul.f32.gmra.mxu0 %v227
    %v331 = vpop.f32.mrf.mxu0
    %v332 = vadd.f32 0.0, %v331
    %333 = vmatmul.f32.gmra.mxu0 %v229
    %v334 = vpop.f32.mrf.mxu0
    %v335 = vadd.f32 0.0, %v334
    %336 = vmatmul.f32.gmra.mxu0 %v231
    %v337 = vpop.f32.mrf.mxu0
    %v338 = vadd.f32 0.0, %v337
    %339 = vmatmul.f32.gmra.mxu0 %v233
    %v340 = vpop.f32.mrf.mxu0
    %v341 = vadd.f32 0.0, %v340
    %342 = vmatmul.f32.gmra.mxu0 %v235
    %v343 = vpop.f32.mrf.mxu0
    %v344 = vadd.f32 0.0, %v343
    %345 = vmatmul.f32.gmra.mxu0 %v237
    %v346 = vpop.f32.mrf.mxu0
    %v347 = vadd.f32 0.0, %v346
    %348 = vmatmul.f32.gmra.mxu0 %v239
    %v349 = vpop.f32.mrf.mxu0
    %v350 = vadd.f32 0.0, %v349
    %351 = vmatmul.f32.gmra.mxu0 %v241
    %v352 = vpop.f32.mrf.mxu0
    %v353 = vadd.f32 0.0, %v352
    %354 = vmatmul.f32.gmra.mxu0 %v243
    %v355 = vpop.f32.mrf.mxu0
    %v356 = vadd.f32 0.0, %v355
    %357 = vmatmul.f32.gmra.mxu0 %v245
    %v358 = vpop.f32.mrf.mxu0
    %v359 = vadd.f32 0.0, %v358
    %360 = vmatmul.f32.gmra.mxu0 %v247
    %v361 = vpop.f32.mrf.mxu0
    %v362 = vadd.f32 0.0, %v361
    %363 = vmatmul.f32.gmra.mxu0 %v249
    %v364 = vpop.f32.mrf.mxu0
    %v365 = vadd.f32 0.0, %v364
    %366 = vmatmul.f32.gmra.mxu0 %v251
    %v367 = vpop.f32.mrf.mxu0
    %v368 = vadd.f32 0.0, %v367
    %369 = vmatmul.f32.gmra.mxu0 %v253
    %v370 = vpop.f32.mrf.mxu0
    %v371 = vadd.f32 0.0, %v370
    %372 = vmatmul.f32.gmra.mxu0 %v255
    %v373 = vpop.f32.mrf.mxu0
    %v374 = vadd.f32 0.0, %v373
    %375 = vmatmul.f32.gmra.mxu0 %v257
    %v376 = vpop.f32.mrf.mxu0
    %v377 = vadd.f32 0.0, %v376
    %378 = vmatmul.f32.gmra.mxu0 %v259
    %v379 = vpop.f32.mrf.mxu0
    %v380 = vadd.f32 0.0, %v379
    %381 = vmatmul.f32.gmra.mxu0 %v261
    %v382 = vpop.f32.mrf.mxu0
    %v383 = vadd.f32 0.0, %v382
    %384 = vmatmul.f32.gmra.mxu0 %v263
    %v385 = vpop.f32.mrf.mxu0
    %v386 = vadd.f32 0.0, %v385
    %387 = vmatmul.f32.gmra.mxu0 %v265
    %v388 = vpop.f32.mrf.mxu0
    %v389 = vadd.f32 0.0, %v388
    %390 = vmatmul.f32.gmra.mxu0 %v267
    %v391 = vpop.f32.mrf.mxu0
    %v392 = vadd.f32 0.0, %v391
    %393 = vmatmul.f32.gmra.mxu0 %v269
    %v394 = vpop.f32.mrf.mxu0
    %v395 = vadd.f32 0.0, %v394
    %396 = vmatmul.f32.gmra.mxu0 %v271
    %v397 = vpop.f32.mrf.mxu0
    %v398 = vadd.f32 0.0, %v397
    %399 = vmatmul.f32.gmra.mxu0 %v273
    %v400 = vpop.f32.mrf.mxu0
    %v401 = vadd.f32 0.0, %v400
    %402 = vmatmul.f32.gmra.mxu0 %v275
    %v403 = vpop.f32.mrf.mxu0
    %v404 = vadd.f32 0.0, %v403
    %405 = vmatmul.f32.gmra.mxu0 %v277
    %v406 = vpop.f32.mrf.mxu0
    %v407 = vadd.f32 0.0, %v406
    %408 = vmatmul.f32.gmra.mxu0 %v279
    %v409 = vpop.f32.mrf.mxu0
    %v410 = vadd.f32 0.0, %v409
    %411 = vmatmul.f32.gmra.mxu0 %v281
    %v412 = vpop.f32.mrf.mxu0
    %v413 = vadd.f32 0.0, %v412
    %414 = vmatmul.f32.gmra.mxu0 %v283
    %v415 = vpop.f32.mrf.mxu0
    %v416 = vadd.f32 0.0, %v415
    %417 = vmatmul.f32.gmra.mxu0 %v285
    %v418 = vpop.f32.mrf.mxu0
    %v419 = vadd.f32 0.0, %v418
    %420 = vmatmul.f32.gmra.mxu0 %v287
    %v421 = vpop.f32.mrf.mxu0
    %v422 = vadd.f32 0.0, %v421
    %423 = vmatmul.f32.gmra.mxu0 %v289
    %v424 = vpop.f32.mrf.mxu0
    %v425 = vadd.f32 0.0, %v424
    %426 = vmatmul.f32.gmra.mxu0 %v291
    %v427 = vpop.f32.mrf.mxu0
    %v428 = vadd.f32 0.0, %v427
    %429 = vmatmul.f32.gmra.mxu0 %v293
    %v430 = vpop.f32.mrf.mxu0
    %v431 = vadd.f32 0.0, %v430
    %432 = vmatmul.f32.gmra.mxu0 %v295
    %v433 = vpop.f32.mrf.mxu0
    %v434 = vadd.f32 0.0, %v433
    %435 = vmatmul.f32.gmra.mxu0 %v297
    %v436 = vpop.f32.mrf.mxu0
    %v437 = vadd.f32 0.0, %v436
    %438 = vmatmul.f32.gmra.mxu0 %v299
    %v439 = vpop.f32.mrf.mxu0
    %v440 = vadd.f32 0.0, %v439
    %441 = vmatmul.f32.gmra.mxu0 %v301
    %v442 = vpop.f32.mrf.mxu0
    %v443 = vadd.f32 0.0, %v442
    %444 = vdwg.mxu0
    %445 = vmatpush.msra.mxu0 %v222
    %446 = vmatpush.msra.mxu0 %v221
    %447 = vmatpush.msra.mxu0 %v220
    %448 = vmatpush.msra.mxu0 %v219
    %449 = vmatpush.msra.mxu0 %v218
    %450 = vmatpush.msra.mxu0 %v217
    %451 = vmatpush.msra.mxu0 %v216
    %452 = vmatpush.msra.mxu0 %v215
    %453 = vmatpush.msra.mxu0 %v214
    %454 = vmatpush.msra.mxu0 %v213
    %455 = vmatpush.msra.mxu0 %v212
    %456 = vmatpush.msra.mxu0 %v211
    %457 = vmatpush.msra.mxu0 %v210
    %458 = vmatpush.msra.mxu0 %v209
    %459 = vmatpush.msra.mxu0 %v208
    %460 = vmatpush.msra.mxu0 %v207
    %461 = vmatmul.f32.gmra.mxu0 %v224
    %v462 = vpop.f32.mrf.mxu0
    %v463 = vadd.f32 %v326, %v462
    %464 = vmatmul.f32.gmra.mxu0 %v226
    %v465 = vpop.f32.mrf.mxu0
    %v466 = vadd.f32 %v329, %v465
    %467 = vmatmul.f32.gmra.mxu0 %v228
    %v468 = vpop.f32.mrf.mxu0
    %v469 = vadd.f32 %v332, %v468
    %470 = vmatmul.f32.gmra.mxu0 %v230
    %v471 = vpop.f32.mrf.mxu0
    %v472 = vadd.f32 %v335, %v471
    %473 = vmatmul.f32.gmra.mxu0 %v232
    %v474 = vpop.f32.mrf.mxu0
    %v475 = vadd.f32 %v338, %v474
    %476 = vmatmul.f32.gmra.mxu0 %v234
    %v477 = vpop.f32.mrf.mxu0
    %v478 = vadd.f32 %v341, %v477
    %479 = vmatmul.f32.gmra.mxu0 %v236
    %v480 = vpop.f32.mrf.mxu0
    %v481 = vadd.f32 %v344, %v480
    %482 = vmatmul.f32.gmra.mxu0 %v238
    %v483 = vpop.f32.mrf.mxu0
    %v484 = vadd.f32 %v347, %v483
    %485 = vmatmul.f32.gmra.mxu0 %v240
    %v486 = vpop.f32.mrf.mxu0
    %v487 = vadd.f32 %v350, %v486
    %488 = vmatmul.f32.gmra.mxu0 %v242
    %v489 = vpop.f32.mrf.mxu0
    %v490 = vadd.f32 %v353, %v489
    %491 = vmatmul.f32.gmra.mxu0 %v244
    %v492 = vpop.f32.mrf.mxu0
    %v493 = vadd.f32 %v356, %v492
    %494 = vmatmul.f32.gmra.mxu0 %v246
    %v495 = vpop.f32.mrf.mxu0
    %v496 = vadd.f32 %v359, %v495
    %497 = vmatmul.f32.gmra.mxu0 %v248
    %v498 = vpop.f32.mrf.mxu0
    %v499 = vadd.f32 %v362, %v498
    %500 = vmatmul.f32.gmra.mxu0 %v250
    %v501 = vpop.f32.mrf.mxu0
    %v502 = vadd.f32 %v365, %v501
    %503 = vmatmul.f32.gmra.mxu0 %v252
    %v504 = vpop.f32.mrf.mxu0
    %v505 = vadd.f32 %v368, %v504
    %506 = vmatmul.f32.gmra.mxu0 %v254
    %v507 = vpop.f32.mrf.mxu0
    %v508 = vadd.f32 %v371, %v507
    %509 = vmatmul.f32.gmra.mxu0 %v256
    %v510 = vpop.f32.mrf.mxu0
    %v511 = vadd.f32 %v374, %v510
    %512 = vmatmul.f32.gmra.mxu0 %v258
    %v513 = vpop.f32.mrf.mxu0
    %v514 = vadd.f32 %v377, %v513
    %515 = vmatmul.f32.gmra.mxu0 %v260
    %v516 = vpop.f32.mrf.mxu0
    %v517 = vadd.f32 %v380, %v516
    %518 = vmatmul.f32.gmra.mxu0 %v262
    %v519 = vpop.f32.mrf.mxu0
    %v520 = vadd.f32 %v383, %v519
    %521 = vmatmul.f32.gmra.mxu0 %v264
    %v522 = vpop.f32.mrf.mxu0
    %v523 = vadd.f32 %v386, %v522
    %524 = vmatmul.f32.gmra.mxu0 %v266
    %v525 = vpop.f32.mrf.mxu0
    %v526 = vadd.f32 %v389, %v525
    %527 = vmatmul.f32.gmra.mxu0 %v268
    %v528 = vpop.f32.mrf.mxu0
    %v529 = vadd.f32 %v392, %v528
    %530 = vmatmul.f32.gmra.mxu0 %v270
    %v531 = vpop.f32.mrf.mxu0
    %v532 = vadd.f32 %v395, %v531
    %533 = vmatmul.f32.gmra.mxu0 %v272
    %v534 = vpop.f32.mrf.mxu0
    %v535 = vadd.f32 %v398, %v534
    %536 = vmatmul.f32.gmra.mxu0 %v274
    %v537 = vpop.f32.mrf.mxu0
    %v538 = vadd.f32 %v401, %v537
    %539 = vmatmul.f32.gmra.mxu0 %v276
    %v540 = vpop.f32.mrf.mxu0
    %v541 = vadd.f32 %v404, %v540
    %542 = vmatmul.f32.gmra.mxu0 %v278
    %v543 = vpop.f32.mrf.mxu0
    %v544 = vadd.f32 %v407, %v543
    %545 = vmatmul.f32.gmra.mxu0 %v280
    %v546 = vpop.f32.mrf.mxu0
    %v547 = vadd.f32 %v410, %v546
    %548 = vmatmul.f32.gmra.mxu0 %v282
    %v549 = vpop.f32.mrf.mxu0
    %v550 = vadd.f32 %v413, %v549
    %551 = vmatmul.f32.gmra.mxu0 %v284
    %v552 = vpop.f32.mrf.mxu0
    %v553 = vadd.f32 %v416, %v552
    %554 = vmatmul.f32.gmra.mxu0 %v286
    %v555 = vpop.f32.mrf.mxu0
    %v556 = vadd.f32 %v419, %v555
    %557 = vmatmul.f32.gmra.mxu0 %v288
    %v558 = vpop.f32.mrf.mxu0
    %v559 = vadd.f32 %v422, %v558
    %560 = vmatmul.f32.gmra.mxu0 %v290
    %v561 = vpop.f32.mrf.mxu0
    %v562 = vadd.f32 %v425, %v561
    %563 = vmatmul.f32.gmra.mxu0 %v292
    %v564 = vpop.f32.mrf.mxu0
    %v565 = vadd.f32 %v428, %v564
    %566 = vmatmul.f32.gmra.mxu0 %v294
    %v567 = vpop.f32.mrf.mxu0
    %v568 = vadd.f32 %v431, %v567
    %569 = vmatmul.f32.gmra.mxu0 %v296
    %v570 = vpop.f32.mrf.mxu0
    %v571 = vadd.f32 %v434, %v570
    %572 = vmatmul.f32.gmra.mxu0 %v298
    %v573 = vpop.f32.mrf.mxu0
    %v574 = vadd.f32 %v437, %v573
    %575 = vmatmul.f32.gmra.mxu0 %v300
    %v576 = vpop.f32.mrf.mxu0
    %v577 = vadd.f32 %v440, %v576
    %578 = vmatmul.f32.gmra.mxu0 %v302
    %v579 = vpop.f32.mrf.mxu0
    %v580 = vadd.f32 %v443, %v579
    %581 = vdwg.mxu0
    %590 = vrot.lane.b32.xlu0 %v487, 4
    %v591 = vpop.permute.xlu0 %590
    %592 = vrot.lane.b32.xlu0 %v490, 4
    %v593 = vpop.permute.xlu0 %592
    %594 = vrot.lane.b32.xlu0 %v493, 4
    %v595 = vpop.permute.xlu0 %594
    %596 = vrot.lane.b32.xlu0 %v496, 4
    %v597 = vpop.permute.xlu0 %596
    %598 = vrot.lane.b32.xlu0 %v499, 4
    %v599 = vpop.permute.xlu0 %598
    %600 = vrot.lane.b32.xlu0 %v502, 4
    %v601 = vpop.permute.xlu0 %600
    %602 = vrot.lane.b32.xlu0 %v505, 4
    %v603 = vpop.permute.xlu0 %602
    %604 = vrot.lane.b32.xlu0 %v508, 4
    %v605 = vpop.permute.xlu0 %604
    %622 = vrot.lane.b32.xlu0 %v511, 8
    %v623 = vpop.permute.xlu0 %622
    %624 = vrot.lane.b32.xlu0 %v514, 8
    %v625 = vpop.permute.xlu0 %624
    %626 = vrot.lane.b32.xlu0 %v517, 8
    %v627 = vpop.permute.xlu0 %626
    %628 = vrot.lane.b32.xlu0 %v520, 8
    %v629 = vpop.permute.xlu0 %628
    %630 = vrot.lane.b32.xlu0 %v523, 8
    %v631 = vpop.permute.xlu0 %630
    %632 = vrot.lane.b32.xlu0 %v526, 8
    %v633 = vpop.permute.xlu0 %632
    %634 = vrot.lane.b32.xlu0 %v529, 8
    %v635 = vpop.permute.xlu0 %634
    %636 = vrot.lane.b32.xlu0 %v532, 8
    %v637 = vpop.permute.xlu0 %636
    %vm646 = vcmask 31744
    %v647 = vsel %vm646, %v463, %v591
    %v648 = vsel %vm646, %v466, %v593
    %v649 = vsel %vm646, %v469, %v595
    %v650 = vsel %vm646, %v472, %v597
    %v651 = vsel %vm646, %v475, %v599
    %v652 = vsel %vm646, %v478, %v601
    %v653 = vsel %vm646, %v481, %v603
    %v654 = vsel %vm646, %v484, %v605
    %vm655 = vcmask 64512
    %v656 = vsel %vm655, %v647, %v623
    %v657 = vsel %vm655, %v648, %v625
    %v658 = vsel %vm655, %v649, %v627
    %v659 = vsel %vm655, %v650, %v629
    %v660 = vsel %vm655, %v651, %v631
    %v661 = vsel %vm655, %v652, %v633
    %v662 = vsel %vm655, %v653, %v635
    %v663 = vsel %vm655, %v654, %v637
    %672 = vrot.lane.b32.xlu0 %v535, 4
    %v673 = vpop.permute.xlu0 %672
    %674 = vrot.lane.b32.xlu0 %v538, 4
    %v675 = vpop.permute.xlu0 %674
    %676 = vrot.lane.b32.xlu0 %v541, 4
    %v677 = vpop.permute.xlu0 %676
    %678 = vrot.lane.b32.xlu0 %v544, 4
    %v679 = vpop.permute.xlu0 %678
    %680 = vrot.lane.b32.xlu0 %v547, 4
    %v681 = vpop.permute.xlu0 %680
    %682 = vrot.lane.b32.xlu0 %v550, 4
    %v683 = vpop.permute.xlu0 %682
    %684 = vrot.lane.b32.xlu0 %v553, 4
    %v685 = vpop.permute.xlu0 %684
    %686 = vrot.lane.b32.xlu0 %v556, 4
    %v687 = vpop.permute.xlu0 %686
    %704 = vrot.lane.b32.xlu0 %v559, 8
    %v705 = vpop.permute.xlu0 %704
    %706 = vrot.lane.b32.xlu0 %v562, 8
    %v707 = vpop.permute.xlu0 %706
    %708 = vrot.lane.b32.xlu0 %v565, 8
    %v709 = vpop.permute.xlu0 %708
    %710 = vrot.lane.b32.xlu0 %v568, 8
    %v711 = vpop.permute.xlu0 %710
    %712 = vrot.lane.b32.xlu0 %v571, 8
    %v713 = vpop.permute.xlu0 %712
    %714 = vrot.lane.b32.xlu0 %v574, 8
    %v715 = vpop.permute.xlu0 %714
    %716 = vrot.lane.b32.xlu0 %v577, 8
    %v717 = vpop.permute.xlu0 %716
    %718 = vrot.lane.b32.xlu0 %v580, 8
    %v719 = vpop.permute.xlu0 %718
    %v728 = vsel %vm646, %v511, %v673
    %v729 = vsel %vm646, %v514, %v675
    %v730 = vsel %vm646, %v517, %v677
    %v731 = vsel %vm646, %v520, %v679
    %v732 = vsel %vm646, %v523, %v681
    %v733 = vsel %vm646, %v526, %v683
    %v734 = vsel %vm646, %v529, %v685
    %v735 = vsel %vm646, %v532, %v687
    %v736 = vsel %vm655, %v728, %v705
    %v737 = vsel %vm655, %v729, %v707
    %v738 = vsel %vm655, %v730, %v709
    %v739 = vsel %vm655, %v731, %v711
    %v740 = vsel %vm655, %v732, %v713
    %v741 = vsel %vm655, %v733, %v715
    %v742 = vsel %vm655, %v734, %v717
    %v743 = vsel %vm655, %v735, %v719
    %v745 = vperm.slane %v305, 0
    %vm747 = vcmask 97280
    %v749 = vsel %vm747, %v656, 0
    %v752 = vsel %vm747, %v657, 0
    %v755 = vsel %vm747, %v658, 0
    %v758 = vsel %vm747, %v659, 0
    %v761 = vsel %vm747, %v660, 0
    %v764 = vsel %vm747, %v661, 0
    %v767 = vsel %vm747, %v662, 0
    %v770 = vsel %vm747, %v663, 0
    %vm772 = vcmask 1043456
    %v774 = vsel %vm772, %v304, 0
    %776 = vmatpush.msra.mxu0 0.0
    %777 = vmatpush.msra.mxu0 0.0
    %778 = vmatpush.msra.mxu0 0.0
    %779 = vmatpush.msra.mxu0 0.0
    %780 = vmatpush.msra.mxu0 0.0
    %781 = vmatpush.msra.mxu0 0.0
    %782 = vmatpush.msra.mxu0 0.0
    %783 = vmatpush.msra.mxu0 0.0
    %784 = vmatpush.msra.mxu0 0.0
    %785 = vmatpush.msra.mxu0 0.0
    %786 = vmatpush.msra.mxu0 0.0
    %787 = vmatpush.msra.mxu0 0.0
    %788 = vmatpush.msra.mxu0 0.0
    %789 = vmatpush.msra.mxu0 0.0
    %790 = vmatpush.msra.mxu0 %v774
    %791 = vmatpush.msra.mxu0 %v303
    %792 = vmatmul.f32.gmra.mxu0 %v749
    %v793 = vpop.f32.mrf.mxu0
    %v794 = vadd.f32 %v745, %v793
    %795 = vmatmul.f32.gmra.mxu0 %v752
    %v796 = vpop.f32.mrf.mxu0
    %v797 = vadd.f32 %v745, %v796
    %798 = vmatmul.f32.gmra.mxu0 %v755
    %v799 = vpop.f32.mrf.mxu0
    %v800 = vadd.f32 %v745, %v799
    %801 = vmatmul.f32.gmra.mxu0 %v758
    %v802 = vpop.f32.mrf.mxu0
    %v803 = vadd.f32 %v745, %v802
    %804 = vmatmul.f32.gmra.mxu0 %v761
    %v805 = vpop.f32.mrf.mxu0
    %v806 = vadd.f32 %v745, %v805
    %807 = vmatmul.f32.gmra.mxu0 %v764
    %v808 = vpop.f32.mrf.mxu0
    %v809 = vadd.f32 %v745, %v808
    %810 = vmatmul.f32.gmra.mxu0 %v767
    %v811 = vpop.f32.mrf.mxu0
    %v812 = vadd.f32 %v745, %v811
    %813 = vmatmul.f32.gmra.mxu0 %v770
    %v814 = vpop.f32.mrf.mxu0
    %v815 = vadd.f32 %v745, %v814
    %816 = vdwg.mxu0
    %v818 = vsel %vm747, %v736, 0
    %v821 = vsel %vm747, %v737, 0
    %v824 = vsel %vm747, %v738, 0
    %v827 = vsel %vm747, %v739, 0
    %v830 = vsel %vm747, %v740, 0
    %v833 = vsel %vm747, %v741, 0
    %v836 = vsel %vm747, %v742, 0
    %v839 = vsel %vm747, %v743, 0
    %841 = vmatpush.msra.mxu0 0.0
    %842 = vmatpush.msra.mxu0 0.0
    %843 = vmatpush.msra.mxu0 0.0
    %844 = vmatpush.msra.mxu0 0.0
    %845 = vmatpush.msra.mxu0 0.0
    %846 = vmatpush.msra.mxu0 0.0
    %847 = vmatpush.msra.mxu0 0.0
    %848 = vmatpush.msra.mxu0 0.0
    %849 = vmatpush.msra.mxu0 0.0
    %850 = vmatpush.msra.mxu0 0.0
    %851 = vmatpush.msra.mxu0 0.0
    %852 = vmatpush.msra.mxu0 0.0
    %853 = vmatpush.msra.mxu0 0.0
    %854 = vmatpush.msra.mxu0 0.0
    %855 = vmatpush.msra.mxu0 %v774
    %856 = vmatpush.msra.mxu0 %v303
    %857 = vmatmul.f32.gmra.mxu0 %v818
    %v858 = vpop.f32.mrf.mxu0
    %v859 = vadd.f32 %v745, %v858
    %860 = vmatmul.f32.gmra.mxu0 %v821
    %v861 = vpop.f32.mrf.mxu0
    %v862 = vadd.f32 %v745, %v861
    %863 = vmatmul.f32.gmra.mxu0 %v824
    %v864 = vpop.f32.mrf.mxu0
    %v865 = vadd.f32 %v745, %v864
    %866 = vmatmul.f32.gmra.mxu0 %v827
    %v867 = vpop.f32.mrf.mxu0
    %v868 = vadd.f32 %v745, %v867
    %869 = vmatmul.f32.gmra.mxu0 %v830
    %v870 = vpop.f32.mrf.mxu0
    %v871 = vadd.f32 %v745, %v870
    %872 = vmatmul.f32.gmra.mxu0 %v833
    %v873 = vpop.f32.mrf.mxu0
    %v874 = vadd.f32 %v745, %v873
    %875 = vmatmul.f32.gmra.mxu0 %v836
    %v876 = vpop.f32.mrf.mxu0
    %v877 = vadd.f32 %v745, %v876
    %878 = vmatmul.f32.gmra.mxu0 %v839
    %v879 = vpop.f32.mrf.mxu0
    %v880 = vadd.f32 %v745, %v879
    %881 = vdwg.mxu0
    %v882 = vmax.f32 %v794, %v859
    %v883 = vmax.f32 %v797, %v862
    %v884 = vmax.f32 %v800, %v865
    %v885 = vmax.f32 %v803, %v868
    %v886 = vmax.f32 %v806, %v871
    %v887 = vmax.f32 %v809, %v874
    %v888 = vmax.f32 %v812, %v877
    %v889 = vmax.f32 %v815, %v880
    %v890 = vmax.f32 %v882, 0.0
    %v891 = vmax.f32 %v883, 0.0
    %v892 = vmax.f32 %v884, 0.0
    %v893 = vmax.f32 %v885, 0.0
    %v894 = vmax.f32 %v886, 0.0
    %v895 = vmax.f32 %v887, 0.0
    %v896 = vmax.f32 %v888, 0.0
    %v897 = vmax.f32 %v889, 0.0
    %v899 = vperm.slane %v306, 0
    %v901 = vmul.f32 %v890, %v899
    %v902 = vmul.f32 %v891, %v899
    %v903 = vmul.f32 %v892, %v899
    %v904 = vmul.f32 %v893, %v899
    %v905 = vmul.f32 %v894, %v899
    %v906 = vmul.f32 %v895, %v899
    %v907 = vmul.f32 %v896, %v899
    %v908 = vmul.f32 %v897, %v899
    %v910 = vperm.slane %v307, 0
    %v912 = vadd.f32 %v901, %v910
    %v913 = vadd.f32 %v902, %v910
    %v914 = vadd.f32 %v903, %v910
    %v915 = vadd.f32 %v904, %v910
    %v916 = vadd.f32 %v905, %v910
    %v917 = vadd.f32 %v906, %v910
    %v918 = vadd.f32 %v907, %v910
    %v919 = vadd.f32 %v908, %v910
    %v920 = vld [vmem:[%s2] sm:$0xff]
    %v921 = vld [vmem:[%s2 + $0x8] sm:$0xff]
    %v922 = vld [vmem:[%s2 + $0x10] sm:$0xff]
    %v923 = vld [vmem:[%s2 + $0x18] sm:$0xff]
    %v924 = vld [vmem:[%s2 + $0x20] sm:$0xff]
    %v925 = vld [vmem:[%s2 + $0x28] sm:$0xff]
    %v926 = vld [vmem:[%s2 + $0x30] sm:$0xff]
    %v927 = vld [vmem:[%s2 + $0x38] sm:$0xff]
    %v928 = vld [vmem:[%s2 + $0x40] sm:$0xff]
    %v929 = vld [vmem:[%s2 + $0x48] sm:$0xff]
    %v930 = vld [vmem:[%s10] sm:$0xff]
    %v931 = vld [vmem:[%s10 + $0x8] sm:$0xff]
    %v932 = vld [vmem:[%s10 + $0x10] sm:$0xff]
    %v933 = vld [vmem:[%s10 + $0x18] sm:$0xff]
    %v934 = vld [vmem:[%s10 + $0x20] sm:$0xff]
    %v935 = vld [vmem:[%s10 + $0x28] sm:$0xff]
    %v936 = vld [vmem:[%s10 + $0x30] sm:$0xff]
    %v937 = vld [vmem:[%s10 + $0x38] sm:$0xff]
    %v938 = vld [vmem:[%s10 + $0x40] sm:$0xff]
    %v939 = vld [vmem:[%s10 + $0x48] sm:$0xff]
    %v940 = vld [vmem:[%s10 + $0x50] sm:$0xff]
    %v941 = vld [vmem:[%s10 + $0x58] sm:$0xff]
    %v942 = vld [vmem:[%s11] sm:$0x1]
    %v943 = vld [vmem:[%s12] sm:$0x1]
    %v944 = vld [vmem:[%s13] sm:$0x1]
    %vm945 = vcmask 523264
    %v947 = vsel %vm945, %v920, 0
    %v950 = vsel %vm945, %v921, 0
    %v953 = vsel %vm945, %v922, 0
    %v956 = vsel %vm945, %v923, 0
    %v959 = vsel %vm945, %v924, 0
    %v962 = vsel %vm945, %v925, 0
    %v965 = vsel %vm945, %v926, 0
    %v968 = vsel %vm945, %v927, 0
    %v971 = vsel %vm945, %v928, 0
    %v974 = vsel %vm945, %v929, 0
    %976 = vmatpush.msra.mxu0 0.0
    %977 = vmatpush.msra.mxu0 0.0
    %978 = vmatpush.msra.mxu0 0.0
    %979 = vmatpush.msra.mxu0 0.0
    %980 = vmatpush.msra.mxu0 0.0
    %981 = vmatpush.msra.mxu0 0.0
    %982 = vmatpush.msra.mxu0 0.0
    %983 = vmatpush.msra.mxu0 0.0
    %984 = vmatpush.msra.mxu0 %v919
    %985 = vmatpush.msra.mxu0 %v918
    %986 = vmatpush.msra.mxu0 %v917
    %987 = vmatpush.msra.mxu0 %v916
    %988 = vmatpush.msra.mxu0 %v915
    %989 = vmatpush.msra.mxu0 %v914
    %990 = vmatpush.msra.mxu0 %v913
    %991 = vmatpush.msra.mxu0 %v912
    %992 = vmatmul.f32.gmra.mxu0 %v947
    %v993 = vpop.f32.mrf.mxu0
    %v994 = vadd.f32 0.0, %v993
    %995 = vmatmul.f32.gmra.mxu0 %v950
    %v996 = vpop.f32.mrf.mxu0
    %v997 = vadd.f32 0.0, %v996
    %998 = vmatmul.f32.gmra.mxu0 %v953
    %v999 = vpop.f32.mrf.mxu0
    %v1000 = vadd.f32 0.0, %v999
    %1001 = vmatmul.f32.gmra.mxu0 %v956
    %v1002 = vpop.f32.mrf.mxu0
    %v1003 = vadd.f32 0.0, %v1002
    %1004 = vmatmul.f32.gmra.mxu0 %v959
    %v1005 = vpop.f32.mrf.mxu0
    %v1006 = vadd.f32 0.0, %v1005
    %1007 = vmatmul.f32.gmra.mxu0 %v962
    %v1008 = vpop.f32.mrf.mxu0
    %v1009 = vadd.f32 0.0, %v1008
    %1010 = vmatmul.f32.gmra.mxu0 %v965
    %v1011 = vpop.f32.mrf.mxu0
    %v1012 = vadd.f32 0.0, %v1011
    %1013 = vmatmul.f32.gmra.mxu0 %v968
    %v1014 = vpop.f32.mrf.mxu0
    %v1015 = vadd.f32 0.0, %v1014
    %1016 = vmatmul.f32.gmra.mxu0 %v971
    %v1017 = vpop.f32.mrf.mxu0
    %v1018 = vadd.f32 0.0, %v1017
    %1019 = vmatmul.f32.gmra.mxu0 %v974
    %v1020 = vpop.f32.mrf.mxu0
    %v1021 = vadd.f32 0.0, %v1020
    %1022 = vdwg.mxu0
    %1025 = vrot.lane.b32.xlu0 %v1000, 32
    %v1026 = vpop.permute.xlu0 %1025
    %1027 = vrot.lane.b32.xlu0 %v1003, 32
    %v1028 = vpop.permute.xlu0 %1027
    %1033 = vrot.lane.b32.xlu0 %v1006, 64
    %v1034 = vpop.permute.xlu0 %1033
    %1035 = vrot.lane.b32.xlu0 %v1009, 64
    %v1036 = vpop.permute.xlu0 %1035
    %vm1039 = vcmask 261120
    %v1040 = vsel %vm1039, %v994, %v1026
    %v1041 = vsel %vm1039, %v997, %v1028
    %v1042 = vsel %vm945, %v1040, %v1034
    %v1043 = vsel %vm945, %v1041, %v1036
    %1046 = vrot.lane.b32.xlu0 %v1012, 32
    %v1047 = vpop.permute.xlu0 %1046
    %1048 = vrot.lane.b32.xlu0 %v1015, 32
    %v1049 = vpop.permute.xlu0 %1048
    %1054 = vrot.lane.b32.xlu0 %v1018, 64
    %v1055 = vpop.permute.xlu0 %1054
    %1056 = vrot.lane.b32.xlu0 %v1021, 64
    %v1057 = vpop.permute.xlu0 %1056
    %v1060 = vsel %vm1039, %v1006, %v1047
    %v1061 = vsel %vm1039, %v1009, %v1049
    %v1062 = vsel %vm945, %v1060, %v1055
    %v1063 = vsel %vm945, %v1061, %v1057
    %v1065 = vperm.slane %v942, 0
    %vm1067 = vcmask 785408
    %v1069 = vsel %vm1067, %v1042, 0
    %v1072 = vsel %vm1067, %v1043, 0
    %1074 = vmatpush.msra.mxu0 0.0
    %1075 = vmatpush.msra.mxu0 0.0
    %1076 = vmatpush.msra.mxu0 0.0
    %1077 = vmatpush.msra.mxu0 0.0
    %1078 = vmatpush.msra.mxu0 %v941
    %1079 = vmatpush.msra.mxu0 %v940
    %1080 = vmatpush.msra.mxu0 %v939
    %1081 = vmatpush.msra.mxu0 %v938
    %1082 = vmatpush.msra.mxu0 %v937
    %1083 = vmatpush.msra.mxu0 %v936
    %1084 = vmatpush.msra.mxu0 %v935
    %1085 = vmatpush.msra.mxu0 %v934
    %1086 = vmatpush.msra.mxu0 %v933
    %1087 = vmatpush.msra.mxu0 %v932
    %1088 = vmatpush.msra.mxu0 %v931
    %1089 = vmatpush.msra.mxu0 %v930
    %1090 = vmatmul.f32.gmra.mxu0 %v1069
    %v1091 = vpop.f32.mrf.mxu0
    %v1092 = vadd.f32 %v1065, %v1091
    %1093 = vmatmul.f32.gmra.mxu0 %v1072
    %v1094 = vpop.f32.mrf.mxu0
    %v1095 = vadd.f32 %v1065, %v1094
    %1096 = vdwg.mxu0
    %v1098 = vsel %vm1067, %v1062, 0
    %v1101 = vsel %vm1067, %v1063, 0
    %1103 = vmatpush.msra.mxu0 0.0
    %1104 = vmatpush.msra.mxu0 0.0
    %1105 = vmatpush.msra.mxu0 0.0
    %1106 = vmatpush.msra.mxu0 0.0
    %1107 = vmatpush.msra.mxu0 %v941
    %1108 = vmatpush.msra.mxu0 %v940
    %1109 = vmatpush.msra.mxu0 %v939
    %1110 = vmatpush.msra.mxu0 %v938
    %1111 = vmatpush.msra.mxu0 %v937
    %1112 = vmatpush.msra.mxu0 %v936
    %1113 = vmatpush.msra.mxu0 %v935
    %1114 = vmatpush.msra.mxu0 %v934
    %1115 = vmatpush.msra.mxu0 %v933
    %1116 = vmatpush.msra.mxu0 %v932
    %1117 = vmatpush.msra.mxu0 %v931
    %1118 = vmatpush.msra.mxu0 %v930
    %1119 = vmatmul.f32.gmra.mxu0 %v1098
    %v1120 = vpop.f32.mrf.mxu0
    %v1121 = vadd.f32 %v1065, %v1120
    %1122 = vmatmul.f32.gmra.mxu0 %v1101
    %v1123 = vpop.f32.mrf.mxu0
    %v1124 = vadd.f32 %v1065, %v1123
    %1125 = vdwg.mxu0
    %v1126 = vmax.f32 %v1092, %v1121
    %v1127 = vmax.f32 %v1095, %v1124
    %v1128 = vmax.f32 %v1126, 0.0
    %v1129 = vmax.f32 %v1127, 0.0
    %v1131 = vperm.slane %v943, 0
    %v1133 = vmul.f32 %v1128, %v1131
    %v1134 = vmul.f32 %v1129, %v1131
    %v1136 = vperm.slane %v944, 0
    %v1138 = vadd.f32 %v1133, %v1136
    %v1139 = vadd.f32 %v1134, %v1136
    %v1140 = vld [vmem:[%s3] sm:$0xff]
    %v1141 = vld [vmem:[%s3 + $0x8] sm:$0xff]
    %v1142 = vld [vmem:[%s3 + $0x10] sm:$0xf]
    %vm1143 = vcmask 130048
    %v1145 = vsel %vm1143, %v1140, 0
    %v1148 = vsel %vm1143, %v1141, 0
    %v1151 = vsel %vm1143, %v1142, 0
    %1153 = vmatpush.msra.mxu0 0.0
    %1154 = vmatpush.msra.mxu0 0.0
    %1155 = vmatpush.msra.mxu0 0.0
    %1156 = vmatpush.msra.mxu0 0.0
    %1157 = vmatpush.msra.mxu0 0.0
    %1158 = vmatpush.msra.mxu0 0.0
    %1159 = vmatpush.msra.mxu0 0.0
    %1160 = vmatpush.msra.mxu0 0.0
    %1161 = vmatpush.msra.mxu0 0.0
    %1162 = vmatpush.msra.mxu0 0.0
    %1163 = vmatpush.msra.mxu0 0.0
    %1164 = vmatpush.msra.mxu0 0.0
    %1165 = vmatpush.msra.mxu0 0.0
    %1166 = vmatpush.msra.mxu0 0.0
    %1167 = vmatpush.msra.mxu0 %v1139
    %1168 = vmatpush.msra.mxu0 %v1138
    %1169 = vmatmul.f32.gmra.mxu0 %v1145
    %v1170 = vpop.f32.mrf.mxu0
    %v1171 = vadd.f32 0.0, %v1170
    %1172 = vmatmul.f32.gmra.mxu0 %v1148
    %v1173 = vpop.f32.mrf.mxu0
    %v1174 = vadd.f32 0.0, %v1173
    %1175 = vmatmul.f32.gmra.mxu0 %v1151
    %v1176 = vpop.f32.mrf.mxu0
    %v1177 = vadd.f32 0.0, %v1176
    %1178 = vdwg.mxu0
    %v1180 = vrot.slane %v1171, 4
    %1181 = vrot.lane.b32.xlu0 %v1180, 32
    %v1182 = vpop.permute.xlu0 %1181
    %1185 = vrot.lane.b32.xlu0 %v1174, 64
    %v1186 = vpop.permute.xlu0 %1185
    %v1188 = vsel %vm1039, %v1171, %v1182
    %v1189 = vsel %vm945, %v1188, %v1186
    %v1190 = vrot.slane %v1174, 4
    %1191 = vrot.lane.b32.xlu0 %v1190, 32
    %v1192 = vpop.permute.xlu0 %1191
    %1195 = vrot.lane.b32.xlu0 %v1177, 64
    %v1196 = vpop.permute.xlu0 %1195
    %v1198 = vsel %vm1039, %v1174, %v1192
    %v1199 = vsel %vm945, %v1198, %v1196
    %v1201 = vsel %vm1067, %v1189, 0
    %1203 = vmatpush.msra.mxu0 0.0
    %1204 = vmatpush.msra.mxu0 0.0
    %1205 = vmatpush.msra.mxu0 0.0
    %1206 = vmatpush.msra.mxu0 0.0
    %1207 = vmatpush.msra.mxu0 %v941
    %1208 = vmatpush.msra.mxu0 %v940
    %1209 = vmatpush.msra.mxu0 %v939
    %1210 = vmatpush.msra.mxu0 %v938
    %1211 = vmatpush.msra.mxu0 %v937
    %1212 = vmatpush.msra.mxu0 %v936
    %1213 = vmatpush.msra.mxu0 %v935
    %1214 = vmatpush.msra.mxu0 %v934
    %1215 = vmatpush.msra.mxu0 %v933
    %1216 = vmatpush.msra.mxu0 %v932
    %1217 = vmatpush.msra.mxu0 %v931
    %1218 = vmatpush.msra.mxu0 %v930
    %1219 = vmatmul.f32.gmra.mxu0 %v1201
    %v1220 = vpop.f32.mrf.mxu0
    %v1221 = vadd.f32 %v1065, %v1220
    %1222 = vdwg.mxu0
    %v1224 = vsel %vm1067, %v1199, 0
    %1226 = vmatpush.msra.mxu0 0.0
    %1227 = vmatpush.msra.mxu0 0.0
    %1228 = vmatpush.msra.mxu0 0.0
    %1229 = vmatpush.msra.mxu0 0.0
    %1230 = vmatpush.msra.mxu0 %v941
    %1231 = vmatpush.msra.mxu0 %v940
    %1232 = vmatpush.msra.mxu0 %v939
    %1233 = vmatpush.msra.mxu0 %v938
    %1234 = vmatpush.msra.mxu0 %v937
    %1235 = vmatpush.msra.mxu0 %v936
    %1236 = vmatpush.msra.mxu0 %v935
    %1237 = vmatpush.msra.mxu0 %v934
    %1238 = vmatpush.msra.mxu0 %v933
    %1239 = vmatpush.msra.mxu0 %v932
    %1240 = vmatpush.msra.mxu0 %v931
    %1241 = vmatpush.msra.mxu0 %v930
    %1242 = vmatmul.f32.gmra.mxu0 %v1224
    %v1243 = vpop.f32.mrf.mxu0
    %v1244 = vadd.f32 %v1065, %v1243
    %1245 = vdwg.mxu0
    %v1246 = vmax.f32 %v1221, %v1244
    %v1247 = vmax.f32 %v1246, 0.0
    %v1248 = vld [vmem:[%s17] sm:$0x3]
    %vm1249 = vcmp.ne.f32.partialorder %v1248, 0.0
    %v1250 = vld [vmem:[#allocation5] sm:$0xff]
    %v1251 = vld [vmem:[#allocation5 + $0x8] sm:$0xff]
    %v1252 = vld [vmem:[#allocation5 + $0x10] sm:$0xff]
    %v1253 = vld [vmem:[#allocation5 + $0x18] sm:$0xff]
    %v1254 = vld [vmem:[#allocation5 + $0x20] sm:$0xff]
    %v1255 = vld [vmem:[#allocation5 + $0x28] sm:$0xff]
    %v1256 = vld [vmem:[#allocation5 + $0x30] sm:$0xff]
    %v1257 = vld [vmem:[#allocation5 + $0x38] sm:$0xff]
    %v1258 = vld [vmem:[#allocation7] sm:$0xff]
    %v1259 = vld [vmem:[#allocation7 + $0x8] sm:$0xff]
    %v1260 = vld [vmem:[#allocation7 + $0x10] sm:$0xff]
    %v1261 = vld [vmem:[#allocation7 + $0x18] sm:$0xff]
    %v1262 = vld [vmem:[#allocation7 + $0x20] sm:$0xff]
    %v1263 = vld [vmem:[#allocation7 + $0x28] sm:$0xff]
    %v1264 = vld [vmem:[#allocation7 + $0x30] sm:$0xff]
    %v1265 = vld [vmem:[#allocation7 + $0x38] sm:$0xff]
    %v1266 = vld [vmem:[#allocation7 + $0x40] sm:$0xff]
    %v1267 = vld [vmem:[#allocation7 + $0x48] sm:$0xff]
    %v1268 = vld [vmem:[#allocation7 + $0x50] sm:$0xff]
    %v1269 = vld [vmem:[#allocation7 + $0x58] sm:$0xff]
    %v1270 = vld [vmem:[#allocation7 + $0x60] sm:$0xff]
    %v1271 = vld [vmem:[#allocation7 + $0x68] sm:$0xff]
    %v1272 = vld [vmem:[#allocation7 + $0x70] sm:$0xff]
    %v1273 = vld [vmem:[#allocation7 + $0x78] sm:$0xff]
    %v1274 = vld [vmem:[%s16] sm:$0x3]
    %v1276 = vperm.slane %v1274, 0
    %v1277 = vperm.slane %v1274, 1
    %v1281 = vsel %vm1039, %v1247, 0
    %1283 = vmatpush.msra.mxu0 0.0
    %1284 = vmatpush.msra.mxu0 0.0
    %1285 = vmatpush.msra.mxu0 0.0
    %1286 = vmatpush.msra.mxu0 0.0
    %1287 = vmatpush.msra.mxu0 0.0
    %1288 = vmatpush.msra.mxu0 0.0
    %1289 = vmatpush.msra.mxu0 0.0
    %1290 = vmatpush.msra.mxu0 0.0
    %1291 = vmatpush.msra.mxu0 0.0
    %1292 = vmatpush.msra.mxu0 0.0
    %1293 = vmatpush.msra.mxu0 0.0
    %1294 = vmatpush.msra.mxu0 0.0
    %1295 = vmatpush.msra.mxu0 %v1256
    %1296 = vmatpush.msra.mxu0 %v1254
    %1297 = vmatpush.msra.mxu0 %v1252
    %1298 = vmatpush.msra.mxu0 %v1250
    %1299 = vmatmul.f32.gmra.mxu0 %v1281
    %v1300 = vpop.f32.mrf.mxu0
    %v1301 = vadd.f32 %v1276, %v1300
    %1302 = vdwg.mxu0
    %1303 = vmatpush.msra.mxu0 0.0
    %1304 = vmatpush.msra.mxu0 0.0
    %1305 = vmatpush.msra.mxu0 0.0
    %1306 = vmatpush.msra.mxu0 0.0
    %1307 = vmatpush.msra.mxu0 0.0
    %1308 = vmatpush.msra.mxu0 0.0
    %1309 = vmatpush.msra.mxu0 0.0
    %1310 = vmatpush.msra.mxu0 0.0
    %1311 = vmatpush.msra.mxu0 0.0
    %1312 = vmatpush.msra.mxu0 0.0
    %1313 = vmatpush.msra.mxu0 0.0
    %1314 = vmatpush.msra.mxu0 0.0
    %1315 = vmatpush.msra.mxu0 %v1257
    %1316 = vmatpush.msra.mxu0 %v1255
    %1317 = vmatpush.msra.mxu0 %v1253
    %1318 = vmatpush.msra.mxu0 %v1251
    %1319 = vmatmul.f32.gmra.mxu0 %v1281
    %v1320 = vpop.f32.mrf.mxu0
    %v1321 = vadd.f32 %v1277, %v1320
    %1322 = vdwg.mxu0
    %v1323 = vsel %vm1249, 1, 0
    %v1324 = vperm.slane %v1323, 0
    %v1325 = vperm.slane %v1323, 1
    %vm1326 = vcmp.eq.s32.totalorder %v1324, 1
    %vm1327 = vcmp.eq.s32.totalorder %v1325, 1
    %v1330 = vrot.slane %v1301, 2
    %v1331 = vrot.slane %v1321, 2
    %v1334 = vsel %vm1326, %v1301, %v1330
    %v1335 = vsel %vm1327, %v1321, %v1331
    %v1336 = vrot.slane %v1301, 6
    %v1337 = vrot.slane %v1321, 6
    %v1340 = vsel %vm1326, %v1301, %v1336
    %v1341 = vsel %vm1327, %v1321, %v1337
    %v1343 = vsel %vm945, 0.0, 0
    %1345 = vmatpush.msra.mxu0 0.0
    %1346 = vmatpush.msra.mxu0 0.0
    %1347 = vmatpush.msra.mxu0 0.0
    %1348 = vmatpush.msra.mxu0 0.0
    %1349 = vmatpush.msra.mxu0 0.0
    %1350 = vmatpush.msra.mxu0 0.0
    %1351 = vmatpush.msra.mxu0 0.0
    %1352 = vmatpush.msra.mxu0 0.0
    %1353 = vmatpush.msra.mxu0 %v1272
    %1354 = vmatpush.msra.mxu0 %v1270
    %1355 = vmatpush.msra.mxu0 %v1268
    %1356 = vmatpush.msra.mxu0 %v1266
    %1357 = vmatpush.msra.mxu0 %v1264
    %1358 = vmatpush.msra.mxu0 %v1262
    %1359 = vmatpush.msra.mxu0 %v1260
    %1360 = vmatpush.msra.mxu0 %v1258
    %1361 = vmatmul.f32.gmra.mxu0 %v1343
    %v1362 = vpop.f32.mrf.mxu0
    %v1363 = vadd.f32 0.0, %v1362
    %1364 = vdwg.mxu0
    %1365 = vmatpush.msra.mxu0 0.0
    %1366 = vmatpush.msra.mxu0 0.0
    %1367 = vmatpush.msra.mxu0 0.0
    %1368 = vmatpush.msra.mxu0 0.0
    %1369 = vmatpush.msra.mxu0 0.0
    %1370 = vmatpush.msra.mxu0 0.0
    %1371 = vmatpush.msra.mxu0 0.0
    %1372 = vmatpush.msra.mxu0 0.0
    %1373 = vmatpush.msra.mxu0 %v1273
    %1374 = vmatpush.msra.mxu0 %v1271
    %1375 = vmatpush.msra.mxu0 %v1269
    %1376 = vmatpush.msra.mxu0 %v1267
    %1377 = vmatpush.msra.mxu0 %v1265
    %1378 = vmatpush.msra.mxu0 %v1263
    %1379 = vmatpush.msra.mxu0 %v1261
    %1380 = vmatpush.msra.mxu0 %v1259
    %1381 = vmatmul.f32.gmra.mxu0 %v1343
    %v1382 = vpop.f32.mrf.mxu0
    %v1383 = vadd.f32 0.0, %v1382
    %1384 = vdwg.mxu0
    %v1385 = vadd.f32 %v1334, %v1363
    %v1386 = vadd.f32 %v1335, %v1383
    %v1387 = vxor.u32 %v1385, 2147483648
    %v1388 = vxor.u32 %v1386, 2147483648
    %v1389 = vmul.f32 %v1387, 1.442695
    %v1390 = vpow.pop %v1389
    %v1391 = vmul.f32 %v1388, 1.442695
    %v1392 = vpow.pop %v1391
    %v1393 = vadd.f32 %v1390, 1.0
    %v1394 = vadd.f32 %v1392, 1.0
    %v1395 = vrcp.pop %v1393
    %v1396 = vmul.f32 %v1393, %v1395
    %v1397 = vsub.f32 1.0, %v1396
    %v1398 = vmul.f32 %v1395, %v1397
    %v1399 = vadd.f32 %v1395, %v1398
    %vm1400 = vweird.f32 %v1393
    %vm1401 = vweird.f32 %v1395
    %vm1402 = vmor %vm1400, %vm1401
    %v1403 = vsel %vm1402, %v1395, %v1399
    %v1404 = vand.u32 2147483647, %v1393
    %vm1405 = vcmp.eq.f32.partialorder %v1404, 8.507059e+37
    %v1406 = vand.u32 %v1393, 2147483648
    %v1407 = vor.u32 1.1754944e-38, %v1406
    %v1408 = vsel %vm1405, %v1407, %v1403
    %v1409 = vmul.f32 1.0, %v1408
    %v1410 = vrcp.pop %v1394
    %v1411 = vmul.f32 %v1394, %v1410
    %v1412 = vsub.f32 1.0, %v1411
    %v1413 = vmul.f32 %v1410, %v1412
    %v1414 = vadd.f32 %v1410, %v1413
    %vm1415 = vweird.f32 %v1394
    %vm1416 = vweird.f32 %v1410
    %vm1417 = vmor %vm1415, %vm1416
    %v1418 = vsel %vm1417, %v1410, %v1414
    %v1419 = vand.u32 2147483647, %v1394
    %vm1420 = vcmp.eq.f32.partialorder %v1419, 8.507059e+37
    %v1421 = vand.u32 %v1394, 2147483648
    %v1422 = vor.u32 1.1754944e-38, %v1421
    %v1423 = vsel %vm1420, %v1422, %v1418
    %v1424 = vmul.f32 1.0, %v1423
    %v1425 = vtanh.pop %v1386
    %v1426 = vmul.f32 %v1409, 0.0
    %1428 = vrot.lane.b32.xlu0 %v1425, 64
    %v1429 = vpop.permute.xlu0 %1428
    %v1431 = vmul.f32 %v1409, %v1429
    %1433 = vrot.lane.b32.xlu0 %v1431, 64
    %v1434 = vpop.permute.xlu0 %1433
    %v1436 = vadd.f32 %v1426, %v1434
    %v1437 = vtanh.pop %v1436
    %1439 = vrot.lane.b32.xlu0 %v1437, 64
    %v1440 = vpop.permute.xlu0 %1439
    %v1442 = vmul.f32 %v1424, %v1440
    %v1444 = vsel %vm945, %v1442, 0
    %1446 = vmatpush.msra.mxu0 0.0
    %1447 = vmatpush.msra.mxu0 0.0
    %1448 = vmatpush.msra.mxu0 0.0
    %1449 = vmatpush.msra.mxu0 0.0
    %1450 = vmatpush.msra.mxu0 0.0
    %1451 = vmatpush.msra.mxu0 0.0
    %1452 = vmatpush.msra.mxu0 0.0
    %1453 = vmatpush.msra.mxu0 0.0
    %1454 = vmatpush.msra.mxu0 %v1272
    %1455 = vmatpush.msra.mxu0 %v1270
    %1456 = vmatpush.msra.mxu0 %v1268
    %1457 = vmatpush.msra.mxu0 %v1266
    %1458 = vmatpush.msra.mxu0 %v1264
    %1459 = vmatpush.msra.mxu0 %v1262
    %1460 = vmatpush.msra.mxu0 %v1260
    %1461 = vmatpush.msra.mxu0 %v1258
    %1462 = vmatmul.f32.gmra.mxu0 %v1444
    %v1463 = vpop.f32.mrf.mxu0
    %v1464 = vadd.f32 0.0, %v1463
    %1465 = vdwg.mxu0
    %1466 = vmatpush.msra.mxu0 0.0
    %1467 = vmatpush.msra.mxu0 0.0
    %1468 = vmatpush.msra.mxu0 0.0
    %1469 = vmatpush.msra.mxu0 0.0
    %1470 = vmatpush.msra.mxu0 0.0
    %1471 = vmatpush.msra.mxu0 0.0
    %1472 = vmatpush.msra.mxu0 0.0
    %1473 = vmatpush.msra.mxu0 0.0
    %1474 = vmatpush.msra.mxu0 %v1273
    %1475 = vmatpush.msra.mxu0 %v1271
    %1476 = vmatpush.msra.mxu0 %v1269
    %1477 = vmatpush.msra.mxu0 %v1267
    %1478 = vmatpush.msra.mxu0 %v1265
    %1479 = vmatpush.msra.mxu0 %v1263
    %1480 = vmatpush.msra.mxu0 %v1261
    %1481 = vmatpush.msra.mxu0 %v1259
    %1482 = vmatmul.f32.gmra.mxu0 %v1444
    %v1483 = vpop.f32.mrf.mxu0
    %v1484 = vadd.f32 0.0, %v1483
    %1485 = vdwg.mxu0
    %v1488 = vrot.slane %v1464, 6
    %v1489 = vrot.slane %v1484, 6
    %v1492 = vadd.f32 %v1340, %v1488
    %v1493 = vadd.f32 %v1341, %v1489
    %v1494 = vxor.u32 %v1492, 2147483648
    %v1495 = vxor.u32 %v1493, 2147483648
    %v1496 = vmul.f32 %v1494, 1.442695
    %v1497 = vpow.pop %v1496
    %v1498 = vmul.f32 %v1495, 1.442695
    %v1499 = vpow.pop %v1498
    %v1500 = vadd.f32 %v1497, 1.0
    %v1501 = vadd.f32 %v1499, 1.0
    %v1502 = vrcp.pop %v1500
    %v1503 = vmul.f32 %v1500, %v1502
    %v1504 = vsub.f32 1.0, %v1503
    %v1505 = vmul.f32 %v1502, %v1504
    %v1506 = vadd.f32 %v1502, %v1505
    %vm1507 = vweird.f32 %v1500
    %vm1508 = vweird.f32 %v1502
    %vm1509 = vmor %vm1507, %vm1508
    %v1510 = vsel %vm1509, %v1502, %v1506
    %v1511 = vand.u32 2147483647, %v1500
    %vm1512 = vcmp.eq.f32.partialorder %v1511, 8.507059e+37
    %v1513 = vand.u32 %v1500, 2147483648
    %v1514 = vor.u32 1.1754944e-38, %v1513
    %v1515 = vsel %vm1512, %v1514, %v1510
    %v1516 = vmul.f32 1.0, %v1515
    %v1517 = vrcp.pop %v1501
    %v1518 = vmul.f32 %v1501, %v1517
    %v1519 = vsub.f32 1.0, %v1518
    %v1520 = vmul.f32 %v1517, %v1519
    %v1521 = vadd.f32 %v1517, %v1520
    %vm1522 = vweird.f32 %v1501
    %vm1523 = vweird.f32 %v1517
    %vm1524 = vmor %vm1522, %vm1523
    %v1525 = vsel %vm1524, %v1517, %v1521
    %v1526 = vand.u32 2147483647, %v1501
    %vm1527 = vcmp.eq.f32.partialorder %v1526, 8.507059e+37
    %v1528 = vand.u32 %v1501, 2147483648
    %v1529 = vor.u32 1.1754944e-38, %v1528
    %v1530 = vsel %vm1527, %v1529, %v1525
    %v1531 = vmul.f32 1.0, %v1530
    %v1532 = vtanh.pop %v1493
    %v1534 = vrot.slane %v1436, 6
    %v1536 = vmul.f32 %v1516, %v1534
    %1538 = vrot.lane.b32.xlu0 %v1532, 64
    %v1539 = vpop.permute.xlu0 %1538
    %v1541 = vmul.f32 %v1516, %v1539
    %1543 = vrot.lane.b32.xlu0 %v1541, 64
    %v1544 = vpop.permute.xlu0 %1543
    %v1546 = vadd.f32 %v1536, %v1544
    %v1547 = vtanh.pop %v1546
    %1549 = vrot.lane.b32.xlu0 %v1547, 64
    %v1550 = vpop.permute.xlu0 %1549
    %v1552 = vmul.f32 %v1531, %v1550
    %v1554 = vrot.slane %v1552, 2
    %v1556 = vsel %vm1039, %v1442, %v1554
    %v1557 = vrot.slane %v1442, 6
    %v1559 = vsel %vm1039, %v1552, %v1557
    %vm1560 = vcmask 1041408
    %v1561 = vsel %vm1560, %v1556, %v1559
    %s1562 = scalar_lea.vmem [#allocation5], 128
    %v1563 = vld [vmem:[%s1562] sm:$0xff]
    %v1564 = vld [vmem:[%s1562 + $0x8] sm:$0xff]
    %v1565 = vld [vmem:[%s1562 + $0x10] sm:$0xff]
    %v1566 = vld [vmem:[%s1562 + $0x18] sm:$0xff]
    %v1567 = vld [vmem:[%s1562 + $0x20] sm:$0xff]
    %v1568 = vld [vmem:[%s1562 + $0x28] sm:$0xff]
    %v1569 = vld [vmem:[%s1562 + $0x30] sm:$0xff]
    %v1570 = vld [vmem:[%s1562 + $0x38] sm:$0xff]
    %v1571 = vld [vmem:[%s1562 + $0x40] sm:$0xff]
    %v1572 = vld [vmem:[%s1562 + $0x48] sm:$0xff]
    %v1573 = vld [vmem:[%s1562 + $0x50] sm:$0xff]
    %v1574 = vld [vmem:[%s1562 + $0x58] sm:$0xff]
    %v1575 = vld [vmem:[%s1562 + $0x60] sm:$0xff]
    %v1576 = vld [vmem:[%s1562 + $0x68] sm:$0xff]
    %v1577 = vld [vmem:[%s1562 + $0x70] sm:$0xff]
    %v1578 = vld [vmem:[%s1562 + $0x78] sm:$0xff]
    %s1579 = scalar_lea.vmem [#allocation7], 128
    %v1580 = vld [vmem:[%s1579] sm:$0xff]
    %v1581 = vld [vmem:[%s1579 + $0x8] sm:$0xff]
    %v1582 = vld [vmem:[%s1579 + $0x10] sm:$0xff]
    %v1583 = vld [vmem:[%s1579 + $0x18] sm:$0xff]
    %v1584 = vld [vmem:[%s1579 + $0x20] sm:$0xff]
    %v1585 = vld [vmem:[%s1579 + $0x28] sm:$0xff]
    %v1586 = vld [vmem:[%s1579 + $0x30] sm:$0xff]
    %v1587 = vld [vmem:[%s1579 + $0x38] sm:$0xff]
    %v1588 = vld [vmem:[%s1579 + $0x40] sm:$0xff]
    %v1589 = vld [vmem:[%s1579 + $0x48] sm:$0xff]
    %v1590 = vld [vmem:[%s1579 + $0x50] sm:$0xff]
    %v1591 = vld [vmem:[%s1579 + $0x58] sm:$0xff]
    %v1592 = vld [vmem:[%s1579 + $0x60] sm:$0xff]
    %v1593 = vld [vmem:[%s1579 + $0x68] sm:$0xff]
    %v1594 = vld [vmem:[%s1579 + $0x70] sm:$0xff]
    %v1595 = vld [vmem:[%s1579 + $0x78] sm:$0xff]
    %s1596 = scalar_lea.vmem %s16, 2
    %v1597 = vld [vmem:[%s1596] sm:$0x3]
    %v1599 = vperm.slane %v1597, 0
    %v1600 = vperm.slane %v1597, 1
    %v1604 = vsel %vm945, %v1561, 0
    %1606 = vmatpush.msra.mxu0 0.0
    %1607 = vmatpush.msra.mxu0 0.0
    %1608 = vmatpush.msra.mxu0 0.0
    %1609 = vmatpush.msra.mxu0 0.0
    %1610 = vmatpush.msra.mxu0 0.0
    %1611 = vmatpush.msra.mxu0 0.0
    %1612 = vmatpush.msra.mxu0 0.0
    %1613 = vmatpush.msra.mxu0 0.0
    %1614 = vmatpush.msra.mxu0 %v1577
    %1615 = vmatpush.msra.mxu0 %v1575
    %1616 = vmatpush.msra.mxu0 %v1573
    %1617 = vmatpush.msra.mxu0 %v1571
    %1618 = vmatpush.msra.mxu0 %v1569
    %1619 = vmatpush.msra.mxu0 %v1567
    %1620 = vmatpush.msra.mxu0 %v1565
    %1621 = vmatpush.msra.mxu0 %v1563
    %1622 = vmatmul.f32.gmra.mxu0 %v1604
    %v1623 = vpop.f32.mrf.mxu0
    %v1624 = vadd.f32 %v1599, %v1623
    %1625 = vdwg.mxu0
    %1626 = vmatpush.msra.mxu0 0.0
    %1627 = vmatpush.msra.mxu0 0.0
    %1628 = vmatpush.msra.mxu0 0.0
    %1629 = vmatpush.msra.mxu0 0.0
    %1630 = vmatpush.msra.mxu0 0.0
    %1631 = vmatpush.msra.mxu0 0.0
    %1632 = vmatpush.msra.mxu0 0.0
    %1633 = vmatpush.msra.mxu0 0.0
    %1634 = vmatpush.msra.mxu0 %v1578
    %1635 = vmatpush.msra.mxu0 %v1576
    %1636 = vmatpush.msra.mxu0 %v1574
    %1637 = vmatpush.msra.mxu0 %v1572
    %1638 = vmatpush.msra.mxu0 %v1570
    %1639 = vmatpush.msra.mxu0 %v1568
    %1640 = vmatpush.msra.mxu0 %v1566
    %1641 = vmatpush.msra.mxu0 %v1564
    %1642 = vmatmul.f32.gmra.mxu0 %v1604
    %v1643 = vpop.f32.mrf.mxu0
    %v1644 = vadd.f32 %v1600, %v1643
    %1645 = vdwg.mxu0
    %v1648 = vrot.slane %v1624, 2
    %v1649 = vrot.slane %v1644, 2
    %v1652 = vsel %vm1326, %v1624, %v1648
    %v1653 = vsel %vm1327, %v1644, %v1649
    %v1654 = vrot.slane %v1624, 6
    %v1655 = vrot.slane %v1644, 6
    %v1658 = vsel %vm1326, %v1624, %v1654
    %v1659 = vsel %vm1327, %v1644, %v1655
    %1660 = vmatpush.msra.mxu0 0.0
    %1661 = vmatpush.msra.mxu0 0.0
    %1662 = vmatpush.msra.mxu0 0.0
    %1663 = vmatpush.msra.mxu0 0.0
    %1664 = vmatpush.msra.mxu0 0.0
    %1665 = vmatpush.msra.mxu0 0.0
    %1666 = vmatpush.msra.mxu0 0.0
    %1667 = vmatpush.msra.mxu0 0.0
    %1668 = vmatpush.msra.mxu0 %v1594
    %1669 = vmatpush.msra.mxu0 %v1592
    %1670 = vmatpush.msra.mxu0 %v1590
    %1671 = vmatpush.msra.mxu0 %v1588
    %1672 = vmatpush.msra.mxu0 %v1586
    %1673 = vmatpush.msra.mxu0 %v1584
    %1674 = vmatpush.msra.mxu0 %v1582
    %1675 = vmatpush.msra.mxu0 %v1580
    %1676 = vmatmul.f32.gmra.mxu0 %v1343
    %v1677 = vpop.f32.mrf.mxu0
    %v1678 = vadd.f32 0.0, %v1677
    %1679 = vdwg.mxu0
    %1680 = vmatpush.msra.mxu0 0.0
    %1681 = vmatpush.msra.mxu0 0.0
    %1682 = vmatpush.msra.mxu0 0.0
    %1683 = vmatpush.msra.mxu0 0.0
    %1684 = vmatpush.msra.mxu0 0.0
    %1685 = vmatpush.msra.mxu0 0.0
    %1686 = vmatpush.msra.mxu0 0.0
    %1687 = vmatpush.msra.mxu0 0.0
    %1688 = vmatpush.msra.mxu0 %v1595
    %1689 = vmatpush.msra.mxu0 %v1593
    %1690 = vmatpush.msra.mxu0 %v1591
    %1691 = vmatpush.msra.mxu0 %v1589
    %1692 = vmatpush.msra.mxu0 %v1587
    %1693 = vmatpush.msra.mxu0 %v1585
    %1694 = vmatpush.msra.mxu0 %v1583
    %1695 = vmatpush.msra.mxu0 %v1581
    %1696 = vmatmul.f32.gmra.mxu0 %v1343
    %v1697 = vpop.f32.mrf.mxu0
    %v1698 = vadd.f32 0.0, %v1697
    %1699 = vdwg.mxu0
    %v1700 = vadd.f32 %v1652, %v1678
    %v1701 = vadd.f32 %v1653, %v1698
    %v1702 = vxor.u32 %v1700, 2147483648
    %v1703 = vxor.u32 %v1701, 2147483648
    %v1704 = vmul.f32 %v1702, 1.442695
    %v1705 = vpow.pop %v1704
    %v1706 = vmul.f32 %v1703, 1.442695
    %v1707 = vpow.pop %v1706
    %v1708 = vadd.f32 %v1705, 1.0
    %v1709 = vadd.f32 %v1707, 1.0
    %v1710 = vrcp.pop %v1708
    %v1711 = vmul.f32 %v1708, %v1710
    %v1712 = vsub.f32 1.0, %v1711
    %v1713 = vmul.f32 %v1710, %v1712
    %v1714 = vadd.f32 %v1710, %v1713
    %vm1715 = vweird.f32 %v1708
    %vm1716 = vweird.f32 %v1710
    %vm1717 = vmor %vm1715, %vm1716
    %v1718 = vsel %vm1717, %v1710, %v1714
    %v1719 = vand.u32 2147483647, %v1708
    %vm1720 = vcmp.eq.f32.partialorder %v1719, 8.507059e+37
    %v1721 = vand.u32 %v1708, 2147483648
    %v1722 = vor.u32 1.1754944e-38, %v1721
    %v1723 = vsel %vm1720, %v1722, %v1718
    %v1724 = vmul.f32 1.0, %v1723
    %v1725 = vrcp.pop %v1709
    %v1726 = vmul.f32 %v1709, %v1725
    %v1727 = vsub.f32 1.0, %v1726
    %v1728 = vmul.f32 %v1725, %v1727
    %v1729 = vadd.f32 %v1725, %v1728
    %vm1730 = vweird.f32 %v1709
    %vm1731 = vweird.f32 %v1725
    %vm1732 = vmor %vm1730, %vm1731
    %v1733 = vsel %vm1732, %v1725, %v1729
    %v1734 = vand.u32 2147483647, %v1709
    %vm1735 = vcmp.eq.f32.partialorder %v1734, 8.507059e+37
    %v1736 = vand.u32 %v1709, 2147483648
    %v1737 = vor.u32 1.1754944e-38, %v1736
    %v1738 = vsel %vm1735, %v1737, %v1733
    %v1739 = vmul.f32 1.0, %v1738
    %v1740 = vtanh.pop %v1701
    %v1741 = vmul.f32 %v1724, 0.0
    %1743 = vrot.lane.b32.xlu0 %v1740, 64
    %v1744 = vpop.permute.xlu0 %1743
    %v1746 = vmul.f32 %v1724, %v1744
    %1748 = vrot.lane.b32.xlu0 %v1746, 64
    %v1749 = vpop.permute.xlu0 %1748
    %v1751 = vadd.f32 %v1741, %v1749
    %v1752 = vtanh.pop %v1751
    %1754 = vrot.lane.b32.xlu0 %v1752, 64
    %v1755 = vpop.permute.xlu0 %1754
    %v1757 = vmul.f32 %v1739, %v1755
    %v1759 = vsel %vm945, %v1757, 0
    %1761 = vmatpush.msra.mxu0 0.0
    %1762 = vmatpush.msra.mxu0 0.0
    %1763 = vmatpush.msra.mxu0 0.0
    %1764 = vmatpush.msra.mxu0 0.0
    %1765 = vmatpush.msra.mxu0 0.0
    %1766 = vmatpush.msra.mxu0 0.0
    %1767 = vmatpush.msra.mxu0 0.0
    %1768 = vmatpush.msra.mxu0 0.0
    %1769 = vmatpush.msra.mxu0 %v1594
    %1770 = vmatpush.msra.mxu0 %v1592
    %1771 = vmatpush.msra.mxu0 %v1590
    %1772 = vmatpush.msra.mxu0 %v1588
    %1773 = vmatpush.msra.mxu0 %v1586
    %1774 = vmatpush.msra.mxu0 %v1584
    %1775 = vmatpush.msra.mxu0 %v1582
    %1776 = vmatpush.msra.mxu0 %v1580
    %1777 = vmatmul.f32.gmra.mxu0 %v1759
    %v1778 = vpop.f32.mrf.mxu0
    %v1779 = vadd.f32 0.0, %v1778
    %1780 = vdwg.mxu0
    %1781 = vmatpush.msra.mxu0 0.0
    %1782 = vmatpush.msra.mxu0 0.0
    %1783 = vmatpush.msra.mxu0 0.0
    %1784 = vmatpush.msra.mxu0 0.0
    %1785 = vmatpush.msra.mxu0 0.0
    %1786 = vmatpush.msra.mxu0 0.0
    %1787 = vmatpush.msra.mxu0 0.0
    %1788 = vmatpush.msra.mxu0 0.0
    %1789 = vmatpush.msra.mxu0 %v1595
    %1790 = vmatpush.msra.mxu0 %v1593
    %1791 = vmatpush.msra.mxu0 %v1591
    %1792 = vmatpush.msra.mxu0 %v1589
    %1793 = vmatpush.msra.mxu0 %v1587
    %1794 = vmatpush.msra.mxu0 %v1585
    %1795 = vmatpush.msra.mxu0 %v1583
    %1796 = vmatpush.msra.mxu0 %v1581
    %1797 = vmatmul.f32.gmra.mxu0 %v1759
    %v1798 = vpop.f32.mrf.mxu0
    %v1799 = vadd.f32 0.0, %v1798
    %1800 = vdwg.mxu0
    %v1803 = vrot.slane %v1779, 6
    %v1804 = vrot.slane %v1799, 6
    %v1807 = vadd.f32 %v1658, %v1803
    %v1808 = vadd.f32 %v1659, %v1804
    %v1809 = vxor.u32 %v1807, 2147483648
    %v1810 = vxor.u32 %v1808, 2147483648
    %v1811 = vmul.f32 %v1809, 1.442695
    %v1812 = vpow.pop %v1811
    %v1813 = vmul.f32 %v1810, 1.442695
    %v1814 = vpow.pop %v1813
    %v1815 = vadd.f32 %v1812, 1.0
    %v1816 = vadd.f32 %v1814, 1.0
    %v1817 = vrcp.pop %v1815
    %v1818 = vmul.f32 %v1815, %v1817
    %v1819 = vsub.f32 1.0, %v1818
    %v1820 = vmul.f32 %v1817, %v1819
    %v1821 = vadd.f32 %v1817, %v1820
    %vm1822 = vweird.f32 %v1815
    %vm1823 = vweird.f32 %v1817
    %vm1824 = vmor %vm1822, %vm1823
    %v1825 = vsel %vm1824, %v1817, %v1821
    %v1826 = vand.u32 2147483647, %v1815
    %vm1827 = vcmp.eq.f32.partialorder %v1826, 8.507059e+37
    %v1828 = vand.u32 %v1815, 2147483648
    %v1829 = vor.u32 1.1754944e-38, %v1828
    %v1830 = vsel %vm1827, %v1829, %v1825
    %v1831 = vmul.f32 1.0, %v1830
    %v1832 = vrcp.pop %v1816
    %v1833 = vmul.f32 %v1816, %v1832
    %v1834 = vsub.f32 1.0, %v1833
    %v1835 = vmul.f32 %v1832, %v1834
    %v1836 = vadd.f32 %v1832, %v1835
    %vm1837 = vweird.f32 %v1816
    %vm1838 = vweird.f32 %v1832
    %vm1839 = vmor %vm1837, %vm1838
    %v1840 = vsel %vm1839, %v1832, %v1836
    %v1841 = vand.u32 2147483647, %v1816
    %vm1842 = vcmp.eq.f32.partialorder %v1841, 8.507059e+37
    %v1843 = vand.u32 %v1816, 2147483648
    %v1844 = vor.u32 1.1754944e-38, %v1843
    %v1845 = vsel %vm1842, %v1844, %v1840
    %v1846 = vmul.f32 1.0, %v1845
    %v1847 = vtanh.pop %v1808
    %v1849 = vrot.slane %v1751, 6
    %v1851 = vmul.f32 %v1831, %v1849
    %1853 = vrot.lane.b32.xlu0 %v1847, 64
    %v1854 = vpop.permute.xlu0 %1853
    %v1856 = vmul.f32 %v1831, %v1854
    %1858 = vrot.lane.b32.xlu0 %v1856, 64
    %v1859 = vpop.permute.xlu0 %1858
    %v1861 = vadd.f32 %v1851, %v1859
    %v1862 = vtanh.pop %v1861
    %1864 = vrot.lane.b32.xlu0 %v1862, 64
    %v1865 = vpop.permute.xlu0 %1864
    %v1867 = vmul.f32 %v1846, %v1865
    %v1869 = vrot.slane %v1867, 2
    %v1871 = vsel %vm1039, %v1757, %v1869
    %v1872 = vrot.slane %v1757, 6
    %v1874 = vsel %vm1039, %v1867, %v1872
    %v1875 = vsel %vm1560, %v1871, %v1874
    %s1876 = scalar_lea.vmem [#allocation5], 256
    %v1877 = vld [vmem:[%s1876] sm:$0xff]
    %v1878 = vld [vmem:[%s1876 + $0x8] sm:$0xff]
    %v1879 = vld [vmem:[%s1876 + $0x10] sm:$0xff]
    %v1880 = vld [vmem:[%s1876 + $0x18] sm:$0xff]
    %v1881 = vld [vmem:[%s1876 + $0x20] sm:$0xff]
    %v1882 = vld [vmem:[%s1876 + $0x28] sm:$0xff]
    %v1883 = vld [vmem:[%s1876 + $0x30] sm:$0xff]
    %v1884 = vld [vmem:[%s1876 + $0x38] sm:$0xff]
    %v1885 = vld [vmem:[%s1876 + $0x40] sm:$0xff]
    %v1886 = vld [vmem:[%s1876 + $0x48] sm:$0xff]
    %v1887 = vld [vmem:[%s1876 + $0x50] sm:$0xff]
    %v1888 = vld [vmem:[%s1876 + $0x58] sm:$0xff]
    %v1889 = vld [vmem:[%s1876 + $0x60] sm:$0xff]
    %v1890 = vld [vmem:[%s1876 + $0x68] sm:$0xff]
    %v1891 = vld [vmem:[%s1876 + $0x70] sm:$0xff]
    %v1892 = vld [vmem:[%s1876 + $0x78] sm:$0xff]
    %s1893 = scalar_lea.vmem [#allocation7], 256
    %v1894 = vld [vmem:[%s1893] sm:$0xff]
    %v1895 = vld [vmem:[%s1893 + $0x8] sm:$0xff]
    %v1896 = vld [vmem:[%s1893 + $0x10] sm:$0xff]
    %v1897 = vld [vmem:[%s1893 + $0x18] sm:$0xff]
    %v1898 = vld [vmem:[%s1893 + $0x20] sm:$0xff]
    %v1899 = vld [vmem:[%s1893 + $0x28] sm:$0xff]
    %v1900 = vld [vmem:[%s1893 + $0x30] sm:$0xff]
    %v1901 = vld [vmem:[%s1893 + $0x38] sm:$0xff]
    %v1902 = vld [vmem:[%s1893 + $0x40] sm:$0xff]
    %v1903 = vld [vmem:[%s1893 + $0x48] sm:$0xff]
    %v1904 = vld [vmem:[%s1893 + $0x50] sm:$0xff]
    %v1905 = vld [vmem:[%s1893 + $0x58] sm:$0xff]
    %v1906 = vld [vmem:[%s1893 + $0x60] sm:$0xff]
    %v1907 = vld [vmem:[%s1893 + $0x68] sm:$0xff]
    %v1908 = vld [vmem:[%s1893 + $0x70] sm:$0xff]
    %v1909 = vld [vmem:[%s1893 + $0x78] sm:$0xff]
    %s1910 = scalar_lea.vmem %s16, 4
    %v1911 = vld [vmem:[%s1910] sm:$0x3]
    %v1913 = vperm.slane %v1911, 0
    %v1914 = vperm.slane %v1911, 1
    %v1918 = vsel %vm945, %v1875, 0
    %1920 = vmatpush.msra.mxu0 0.0
    %1921 = vmatpush.msra.mxu0 0.0
    %1922 = vmatpush.msra.mxu0 0.0
    %1923 = vmatpush.msra.mxu0 0.0
    %1924 = vmatpush.msra.mxu0 0.0
    %1925 = vmatpush.msra.mxu0 0.0
    %1926 = vmatpush.msra.mxu0 0.0
    %1927 = vmatpush.msra.mxu0 0.0
    %1928 = vmatpush.msra.mxu0 %v1891
    %1929 = vmatpush.msra.mxu0 %v1889
    %1930 = vmatpush.msra.mxu0 %v1887
    %1931 = vmatpush.msra.mxu0 %v1885
    %1932 = vmatpush.msra.mxu0 %v1883
    %1933 = vmatpush.msra.mxu0 %v1881
    %1934 = vmatpush.msra.mxu0 %v1879
    %1935 = vmatpush.msra.mxu0 %v1877
    %1936 = vmatmul.f32.gmra.mxu0 %v1918
    %v1937 = vpop.f32.mrf.mxu0
    %v1938 = vadd.f32 %v1913, %v1937
    %1939 = vdwg.mxu0
    %1940 = vmatpush.msra.mxu0 0.0
    %1941 = vmatpush.msra.mxu0 0.0
    %1942 = vmatpush.msra.mxu0 0.0
    %1943 = vmatpush.msra.mxu0 0.0
    %1944 = vmatpush.msra.mxu0 0.0
    %1945 = vmatpush.msra.mxu0 0.0
    %1946 = vmatpush.msra.mxu0 0.0
    %1947 = vmatpush.msra.mxu0 0.0
    %1948 = vmatpush.msra.mxu0 %v1892
    %1949 = vmatpush.msra.mxu0 %v1890
    %1950 = vmatpush.msra.mxu0 %v1888
    %1951 = vmatpush.msra.mxu0 %v1886
    %1952 = vmatpush.msra.mxu0 %v1884
    %1953 = vmatpush.msra.mxu0 %v1882
    %1954 = vmatpush.msra.mxu0 %v1880
    %1955 = vmatpush.msra.mxu0 %v1878
    %1956 = vmatmul.f32.gmra.mxu0 %v1918
    %v1957 = vpop.f32.mrf.mxu0
    %v1958 = vadd.f32 %v1914, %v1957
    %1959 = vdwg.mxu0
    %v1962 = vrot.slane %v1938, 2
    %v1963 = vrot.slane %v1958, 2
    %v1966 = vsel %vm1326, %v1938, %v1962
    %v1967 = vsel %vm1327, %v1958, %v1963
    %v1968 = vrot.slane %v1938, 6
    %v1969 = vrot.slane %v1958, 6
    %v1972 = vsel %vm1326, %v1938, %v1968
    %v1973 = vsel %vm1327, %v1958, %v1969
    %1974 = vmatpush.msra.mxu0 0.0
    %1975 = vmatpush.msra.mxu0 0.0
    %1976 = vmatpush.msra.mxu0 0.0
    %1977 = vmatpush.msra.mxu0 0.0
    %1978 = vmatpush.msra.mxu0 0.0
    %1979 = vmatpush.msra.mxu0 0.0
    %1980 = vmatpush.msra.mxu0 0.0
    %1981 = vmatpush.msra.mxu0 0.0
    %1982 = vmatpush.msra.mxu0 %v1908
    %1983 = vmatpush.msra.mxu0 %v1906
    %1984 = vmatpush.msra.mxu0 %v1904
    %1985 = vmatpush.msra.mxu0 %v1902
    %1986 = vmatpush.msra.mxu0 %v1900
    %1987 = vmatpush.msra.mxu0 %v1898
    %1988 = vmatpush.msra.mxu0 %v1896
    %1989 = vmatpush.msra.mxu0 %v1894
    %1990 = vmatmul.f32.gmra.mxu0 %v1343
    %v1991 = vpop.f32.mrf.mxu0
    %v1992 = vadd.f32 0.0, %v1991
    %1993 = vdwg.mxu0
    %1994 = vmatpush.msra.mxu0 0.0
    %1995 = vmatpush.msra.mxu0 0.0
    %1996 = vmatpush.msra.mxu0 0.0
    %1997 = vmatpush.msra.mxu0 0.0
    %1998 = vmatpush.msra.mxu0 0.0
    %1999 = vmatpush.msra.mxu0 0.0
    %2000 = vmatpush.msra.mxu0 0.0
    %2001 = vmatpush.msra.mxu0 0.0
    %2002 = vmatpush.msra.mxu0 %v1909
    %2003 = vmatpush.msra.mxu0 %v1907
    %2004 = vmatpush.msra.mxu0 %v1905
    %2005 = vmatpush.msra.mxu0 %v1903
    %2006 = vmatpush.msra.mxu0 %v1901
    %2007 = vmatpush.msra.mxu0 %v1899
    %2008 = vmatpush.msra.mxu0 %v1897
    %2009 = vmatpush.msra.mxu0 %v1895
    %2010 = vmatmul.f32.gmra.mxu0 %v1343
    %v2011 = vpop.f32.mrf.mxu0
    %v2012 = vadd.f32 0.0, %v2011
    %2013 = vdwg.mxu0
    %v2014 = vadd.f32 %v1966, %v1992
    %v2015 = vadd.f32 %v1967, %v2012
    %v2016 = vxor.u32 %v2014, 2147483648
    %v2017 = vxor.u32 %v2015, 2147483648
    %v2018 = vmul.f32 %v2016, 1.442695
    %v2019 = vpow.pop %v2018
    %v2020 = vmul.f32 %v2017, 1.442695
    %v2021 = vpow.pop %v2020
    %v2022 = vadd.f32 %v2019, 1.0
    %v2023 = vadd.f32 %v2021, 1.0
    %v2024 = vrcp.pop %v2022
    %v2025 = vmul.f32 %v2022, %v2024
    %v2026 = vsub.f32 1.0, %v2025
    %v2027 = vmul.f32 %v2024, %v2026
    %v2028 = vadd.f32 %v2024, %v2027
    %vm2029 = vweird.f32 %v2022
    %vm2030 = vweird.f32 %v2024
    %vm2031 = vmor %vm2029, %vm2030
    %v2032 = vsel %vm2031, %v2024, %v2028
    %v2033 = vand.u32 2147483647, %v2022
    %vm2034 = vcmp.eq.f32.partialorder %v2033, 8.507059e+37
    %v2035 = vand.u32 %v2022, 2147483648
    %v2036 = vor.u32 1.1754944e-38, %v2035
    %v2037 = vsel %vm2034, %v2036, %v2032
    %v2038 = vmul.f32 1.0, %v2037
    %v2039 = vrcp.pop %v2023
    %v2040 = vmul.f32 %v2023, %v2039
    %v2041 = vsub.f32 1.0, %v2040
    %v2042 = vmul.f32 %v2039, %v2041
    %v2043 = vadd.f32 %v2039, %v2042
    %vm2044 = vweird.f32 %v2023
    %vm2045 = vweird.f32 %v2039
    %vm2046 = vmor %vm2044, %vm2045
    %v2047 = vsel %vm2046, %v2039, %v2043
    %v2048 = vand.u32 2147483647, %v2023
    %vm2049 = vcmp.eq.f32.partialorder %v2048, 8.507059e+37
    %v2050 = vand.u32 %v2023, 2147483648
    %v2051 = vor.u32 1.1754944e-38, %v2050
    %v2052 = vsel %vm2049, %v2051, %v2047
    %v2053 = vmul.f32 1.0, %v2052
    %v2054 = vtanh.pop %v2015
    %v2055 = vmul.f32 %v2038, 0.0
    %2057 = vrot.lane.b32.xlu0 %v2054, 64
    %v2058 = vpop.permute.xlu0 %2057
    %v2060 = vmul.f32 %v2038, %v2058
    %2062 = vrot.lane.b32.xlu0 %v2060, 64
    %v2063 = vpop.permute.xlu0 %2062
    %v2065 = vadd.f32 %v2055, %v2063
    %v2066 = vtanh.pop %v2065
    %2068 = vrot.lane.b32.xlu0 %v2066, 64
    %v2069 = vpop.permute.xlu0 %2068
    %v2071 = vmul.f32 %v2053, %v2069
    %v2073 = vsel %vm945, %v2071, 0
    %2075 = vmatpush.msra.mxu0 0.0
    %2076 = vmatpush.msra.mxu0 0.0
    %2077 = vmatpush.msra.mxu0 0.0
    %2078 = vmatpush.msra.mxu0 0.0
    %2079 = vmatpush.msra.mxu0 0.0
    %2080 = vmatpush.msra.mxu0 0.0
    %2081 = vmatpush.msra.mxu0 0.0
    %2082 = vmatpush.msra.mxu0 0.0
    %2083 = vmatpush.msra.mxu0 %v1908
    %2084 = vmatpush.msra.mxu0 %v1906
    %2085 = vmatpush.msra.mxu0 %v1904
    %2086 = vmatpush.msra.mxu0 %v1902
    %2087 = vmatpush.msra.mxu0 %v1900
    %2088 = vmatpush.msra.mxu0 %v1898
    %2089 = vmatpush.msra.mxu0 %v1896
    %2090 = vmatpush.msra.mxu0 %v1894
    %2091 = vmatmul.f32.gmra.mxu0 %v2073
    %v2092 = vpop.f32.mrf.mxu0
    %v2093 = vadd.f32 0.0, %v2092
    %2094 = vdwg.mxu0
    %2095 = vmatpush.msra.mxu0 0.0
    %2096 = vmatpush.msra.mxu0 0.0
    %2097 = vmatpush.msra.mxu0 0.0
    %2098 = vmatpush.msra.mxu0 0.0
    %2099 = vmatpush.msra.mxu0 0.0
    %2100 = vmatpush.msra.mxu0 0.0
    %2101 = vmatpush.msra.mxu0 0.0
    %2102 = vmatpush.msra.mxu0 0.0
    %2103 = vmatpush.msra.mxu0 %v1909
    %2104 = vmatpush.msra.mxu0 %v1907
    %2105 = vmatpush.msra.mxu0 %v1905
    %2106 = vmatpush.msra.mxu0 %v1903
    %2107 = vmatpush.msra.mxu0 %v1901
    %2108 = vmatpush.msra.mxu0 %v1899
    %2109 = vmatpush.msra.mxu0 %v1897
    %2110 = vmatpush.msra.mxu0 %v1895
    %2111 = vmatmul.f32.gmra.mxu0 %v2073
    %v2112 = vpop.f32.mrf.mxu0
    %v2113 = vadd.f32 0.0, %v2112
    %2114 = vdwg.mxu0
    %v2117 = vrot.slane %v2093, 6
    %v2118 = vrot.slane %v2113, 6
    %v2121 = vadd.f32 %v1972, %v2117
    %v2122 = vadd.f32 %v1973, %v2118
    %v2123 = vxor.u32 %v2121, 2147483648
    %v2124 = vxor.u32 %v2122, 2147483648
    %v2125 = vmul.f32 %v2123, 1.442695
    %v2126 = vpow.pop %v2125
    %v2127 = vmul.f32 %v2124, 1.442695
    %v2128 = vpow.pop %v2127
    %v2129 = vadd.f32 %v2126, 1.0
    %v2130 = vadd.f32 %v2128, 1.0
    %v2131 = vrcp.pop %v2129
    %v2132 = vmul.f32 %v2129, %v2131
    %v2133 = vsub.f32 1.0, %v2132
    %v2134 = vmul.f32 %v2131, %v2133
    %v2135 = vadd.f32 %v2131, %v2134
    %vm2136 = vweird.f32 %v2129
    %vm2137 = vweird.f32 %v2131
    %vm2138 = vmor %vm2136, %vm2137
    %v2139 = vsel %vm2138, %v2131, %v2135
    %v2140 = vand.u32 2147483647, %v2129
    %vm2141 = vcmp.eq.f32.partialorder %v2140, 8.507059e+37
    %v2142 = vand.u32 %v2129, 2147483648
    %v2143 = vor.u32 1.1754944e-38, %v2142
    %v2144 = vsel %vm2141, %v2143, %v2139
    %v2145 = vmul.f32 1.0, %v2144
    %v2146 = vrcp.pop %v2130
    %v2147 = vmul.f32 %v2130, %v2146
    %v2148 = vsub.f32 1.0, %v2147
    %v2149 = vmul.f32 %v2146, %v2148
    %v2150 = vadd.f32 %v2146, %v2149
    %vm2151 = vweird.f32 %v2130
    %vm2152 = vweird.f32 %v2146
    %vm2153 = vmor %vm2151, %vm2152
    %v2154 = vsel %vm2153, %v2146, %v2150
    %v2155 = vand.u32 2147483647, %v2130
    %vm2156 = vcmp.eq.f32.partialorder %v2155, 8.507059e+37
    %v2157 = vand.u32 %v2130, 2147483648
    %v2158 = vor.u32 1.1754944e-38, %v2157
    %v2159 = vsel %vm2156, %v2158, %v2154
    %v2160 = vmul.f32 1.0, %v2159
    %v2161 = vtanh.pop %v2122
    %v2163 = vrot.slane %v2065, 6
    %v2165 = vmul.f32 %v2145, %v2163
    %2167 = vrot.lane.b32.xlu0 %v2161, 64
    %v2168 = vpop.permute.xlu0 %2167
    %v2170 = vmul.f32 %v2145, %v2168
    %2172 = vrot.lane.b32.xlu0 %v2170, 64
    %v2173 = vpop.permute.xlu0 %2172
    %v2175 = vadd.f32 %v2165, %v2173
    %v2176 = vtanh.pop %v2175
    %2178 = vrot.lane.b32.xlu0 %v2176, 64
    %v2179 = vpop.permute.xlu0 %2178
    %v2181 = vmul.f32 %v2160, %v2179
    %v2183 = vrot.slane %v2181, 2
    %v2185 = vsel %vm1039, %v2071, %v2183
    %v2186 = vrot.slane %v2071, 6
    %v2188 = vsel %vm1039, %v2181, %v2186
    %v2189 = vsel %vm1560, %v2185, %v2188
    %s2190 = scalar_lea.vmem [#allocation5], 384
    %v2191 = vld [vmem:[%s2190] sm:$0xff]
    %v2192 = vld [vmem:[%s2190 + $0x8] sm:$0xff]
    %v2193 = vld [vmem:[%s2190 + $0x10] sm:$0xff]
    %v2194 = vld [vmem:[%s2190 + $0x18] sm:$0xff]
    %v2195 = vld [vmem:[%s2190 + $0x20] sm:$0xff]
    %v2196 = vld [vmem:[%s2190 + $0x28] sm:$0xff]
    %v2197 = vld [vmem:[%s2190 + $0x30] sm:$0xff]
    %v2198 = vld [vmem:[%s2190 + $0x38] sm:$0xff]
    %v2199 = vld [vmem:[%s2190 + $0x40] sm:$0xff]
    %v2200 = vld [vmem:[%s2190 + $0x48] sm:$0xff]
    %v2201 = vld [vmem:[%s2190 + $0x50] sm:$0xff]
    %v2202 = vld [vmem:[%s2190 + $0x58] sm:$0xff]
    %v2203 = vld [vmem:[%s2190 + $0x60] sm:$0xff]
    %v2204 = vld [vmem:[%s2190 + $0x68] sm:$0xff]
    %v2205 = vld [vmem:[%s2190 + $0x70] sm:$0xff]
    %v2206 = vld [vmem:[%s2190 + $0x78] sm:$0xff]
    %s2207 = scalar_lea.vmem [#allocation7], 384
    %v2208 = vld [vmem:[%s2207] sm:$0xff]
    %v2209 = vld [vmem:[%s2207 + $0x8] sm:$0xff]
    %v2210 = vld [vmem:[%s2207 + $0x10] sm:$0xff]
    %v2211 = vld [vmem:[%s2207 + $0x18] sm:$0xff]
    %v2212 = vld [vmem:[%s2207 + $0x20] sm:$0xff]
    %v2213 = vld [vmem:[%s2207 + $0x28] sm:$0xff]
    %v2214 = vld [vmem:[%s2207 + $0x30] sm:$0xff]
    %v2215 = vld [vmem:[%s2207 + $0x38] sm:$0xff]
    %v2216 = vld [vmem:[%s2207 + $0x40] sm:$0xff]
    %v2217 = vld [vmem:[%s2207 + $0x48] sm:$0xff]
    %v2218 = vld [vmem:[%s2207 + $0x50] sm:$0xff]
    %v2219 = vld [vmem:[%s2207 + $0x58] sm:$0xff]
    %v2220 = vld [vmem:[%s2207 + $0x60] sm:$0xff]
    %v2221 = vld [vmem:[%s2207 + $0x68] sm:$0xff]
    %v2222 = vld [vmem:[%s2207 + $0x70] sm:$0xff]
    %v2223 = vld [vmem:[%s2207 + $0x78] sm:$0xff]
    %s2224 = scalar_lea.vmem %s16, 6
    %v2225 = vld [vmem:[%s2224] sm:$0x3]
    %v2227 = vperm.slane %v2225, 0
    %v2228 = vperm.slane %v2225, 1
    %v2232 = vsel %vm945, %v2189, 0
    %2234 = vmatpush.msra.mxu0 0.0
    %2235 = vmatpush.msra.mxu0 0.0
    %2236 = vmatpush.msra.mxu0 0.0
    %2237 = vmatpush.msra.mxu0 0.0
    %2238 = vmatpush.msra.mxu0 0.0
    %2239 = vmatpush.msra.mxu0 0.0
    %2240 = vmatpush.msra.mxu0 0.0
    %2241 = vmatpush.msra.mxu0 0.0
    %2242 = vmatpush.msra.mxu0 %v2205
    %2243 = vmatpush.msra.mxu0 %v2203
    %2244 = vmatpush.msra.mxu0 %v2201
    %2245 = vmatpush.msra.mxu0 %v2199
    %2246 = vmatpush.msra.mxu0 %v2197
    %2247 = vmatpush.msra.mxu0 %v2195
    %2248 = vmatpush.msra.mxu0 %v2193
    %2249 = vmatpush.msra.mxu0 %v2191
    %2250 = vmatmul.f32.gmra.mxu0 %v2232
    %v2251 = vpop.f32.mrf.mxu0
    %v2252 = vadd.f32 %v2227, %v2251
    %2253 = vdwg.mxu0
    %2254 = vmatpush.msra.mxu0 0.0
    %2255 = vmatpush.msra.mxu0 0.0
    %2256 = vmatpush.msra.mxu0 0.0
    %2257 = vmatpush.msra.mxu0 0.0
    %2258 = vmatpush.msra.mxu0 0.0
    %2259 = vmatpush.msra.mxu0 0.0
    %2260 = vmatpush.msra.mxu0 0.0
    %2261 = vmatpush.msra.mxu0 0.0
    %2262 = vmatpush.msra.mxu0 %v2206
    %2263 = vmatpush.msra.mxu0 %v2204
    %2264 = vmatpush.msra.mxu0 %v2202
    %2265 = vmatpush.msra.mxu0 %v2200
    %2266 = vmatpush.msra.mxu0 %v2198
    %2267 = vmatpush.msra.mxu0 %v2196
    %2268 = vmatpush.msra.mxu0 %v2194
    %2269 = vmatpush.msra.mxu0 %v2192
    %2270 = vmatmul.f32.gmra.mxu0 %v2232
    %v2271 = vpop.f32.mrf.mxu0
    %v2272 = vadd.f32 %v2228, %v2271
    %2273 = vdwg.mxu0
    %v2276 = vrot.slane %v2252, 2
    %v2277 = vrot.slane %v2272, 2
    %v2280 = vsel %vm1326, %v2252, %v2276
    %v2281 = vsel %vm1327, %v2272, %v2277
    %v2282 = vrot.slane %v2252, 6
    %v2283 = vrot.slane %v2272, 6
    %v2286 = vsel %vm1326, %v2252, %v2282
    %v2287 = vsel %vm1327, %v2272, %v2283
    %2288 = vmatpush.msra.mxu0 0.0
    %2289 = vmatpush.msra.mxu0 0.0
    %2290 = vmatpush.msra.mxu0 0.0
    %2291 = vmatpush.msra.mxu0 0.0
    %2292 = vmatpush.msra.mxu0 0.0
    %2293 = vmatpush.msra.mxu0 0.0
    %2294 = vmatpush.msra.mxu0 0.0
    %2295 = vmatpush.msra.mxu0 0.0
    %2296 = vmatpush.msra.mxu0 %v2222
    %2297 = vmatpush.msra.mxu0 %v2220
    %2298 = vmatpush.msra.mxu0 %v2218
    %2299 = vmatpush.msra.mxu0 %v2216
    %2300 = vmatpush.msra.mxu0 %v2214
    %2301 = vmatpush.msra.mxu0 %v2212
    %2302 = vmatpush.msra.mxu0 %v2210
    %2303 = vmatpush.msra.mxu0 %v2208
    %2304 = vmatmul.f32.gmra.mxu0 %v1343
    %v2305 = vpop.f32.mrf.mxu0
    %v2306 = vadd.f32 0.0, %v2305
    %2307 = vdwg.mxu0
    %2308 = vmatpush.msra.mxu0 0.0
    %2309 = vmatpush.msra.mxu0 0.0
    %2310 = vmatpush.msra.mxu0 0.0
    %2311 = vmatpush.msra.mxu0 0.0
    %2312 = vmatpush.msra.mxu0 0.0
    %2313 = vmatpush.msra.mxu0 0.0
    %2314 = vmatpush.msra.mxu0 0.0
    %2315 = vmatpush.msra.mxu0 0.0
    %2316 = vmatpush.msra.mxu0 %v2223
    %2317 = vmatpush.msra.mxu0 %v2221
    %2318 = vmatpush.msra.mxu0 %v2219
    %2319 = vmatpush.msra.mxu0 %v2217
    %2320 = vmatpush.msra.mxu0 %v2215
    %2321 = vmatpush.msra.mxu0 %v2213
    %2322 = vmatpush.msra.mxu0 %v2211
    %2323 = vmatpush.msra.mxu0 %v2209
    %2324 = vmatmul.f32.gmra.mxu0 %v1343
    %v2325 = vpop.f32.mrf.mxu0
    %v2326 = vadd.f32 0.0, %v2325
    %2327 = vdwg.mxu0
    %v2328 = vadd.f32 %v2280, %v2306
    %v2329 = vadd.f32 %v2281, %v2326
    %v2330 = vxor.u32 %v2328, 2147483648
    %v2331 = vxor.u32 %v2329, 2147483648
    %v2332 = vmul.f32 %v2330, 1.442695
    %v2333 = vpow.pop %v2332
    %v2334 = vmul.f32 %v2331, 1.442695
    %v2335 = vpow.pop %v2334
    %v2336 = vadd.f32 %v2333, 1.0
    %v2337 = vadd.f32 %v2335, 1.0
    %v2338 = vrcp.pop %v2336
    %v2339 = vmul.f32 %v2336, %v2338
    %v2340 = vsub.f32 1.0, %v2339
    %v2341 = vmul.f32 %v2338, %v2340
    %v2342 = vadd.f32 %v2338, %v2341
    %vm2343 = vweird.f32 %v2336
    %vm2344 = vweird.f32 %v2338
    %vm2345 = vmor %vm2343, %vm2344
    %v2346 = vsel %vm2345, %v2338, %v2342
    %v2347 = vand.u32 2147483647, %v2336
    %vm2348 = vcmp.eq.f32.partialorder %v2347, 8.507059e+37
    %v2349 = vand.u32 %v2336, 2147483648
    %v2350 = vor.u32 1.1754944e-38, %v2349
    %v2351 = vsel %vm2348, %v2350, %v2346
    %v2352 = vmul.f32 1.0, %v2351
    %v2353 = vrcp.pop %v2337
    %v2354 = vmul.f32 %v2337, %v2353
    %v2355 = vsub.f32 1.0, %v2354
    %v2356 = vmul.f32 %v2353, %v2355
    %v2357 = vadd.f32 %v2353, %v2356
    %vm2358 = vweird.f32 %v2337
    %vm2359 = vweird.f32 %v2353
    %vm2360 = vmor %vm2358, %vm2359
    %v2361 = vsel %vm2360, %v2353, %v2357
    %v2362 = vand.u32 2147483647, %v2337
    %vm2363 = vcmp.eq.f32.partialorder %v2362, 8.507059e+37
    %v2364 = vand.u32 %v2337, 2147483648
    %v2365 = vor.u32 1.1754944e-38, %v2364
    %v2366 = vsel %vm2363, %v2365, %v2361
    %v2367 = vmul.f32 1.0, %v2366
    %v2368 = vtanh.pop %v2329
    %v2369 = vmul.f32 %v2352, 0.0
    %2371 = vrot.lane.b32.xlu0 %v2368, 64
    %v2372 = vpop.permute.xlu0 %2371
    %v2374 = vmul.f32 %v2352, %v2372
    %2376 = vrot.lane.b32.xlu0 %v2374, 64
    %v2377 = vpop.permute.xlu0 %2376
    %v2379 = vadd.f32 %v2369, %v2377
    %v2380 = vtanh.pop %v2379
    %2382 = vrot.lane.b32.xlu0 %v2380, 64
    %v2383 = vpop.permute.xlu0 %2382
    %v2385 = vmul.f32 %v2367, %v2383
    %v2387 = vsel %vm945, %v2385, 0
    %2389 = vmatpush.msra.mxu0 0.0
    %2390 = vmatpush.msra.mxu0 0.0
    %2391 = vmatpush.msra.mxu0 0.0
    %2392 = vmatpush.msra.mxu0 0.0
    %2393 = vmatpush.msra.mxu0 0.0
    %2394 = vmatpush.msra.mxu0 0.0
    %2395 = vmatpush.msra.mxu0 0.0
    %2396 = vmatpush.msra.mxu0 0.0
    %2397 = vmatpush.msra.mxu0 %v2222
    %2398 = vmatpush.msra.mxu0 %v2220
    %2399 = vmatpush.msra.mxu0 %v2218
    %2400 = vmatpush.msra.mxu0 %v2216
    %2401 = vmatpush.msra.mxu0 %v2214
    %2402 = vmatpush.msra.mxu0 %v2212
    %2403 = vmatpush.msra.mxu0 %v2210
    %2404 = vmatpush.msra.mxu0 %v2208
    %2405 = vmatmul.f32.gmra.mxu0 %v2387
    %v2406 = vpop.f32.mrf.mxu0
    %v2407 = vadd.f32 0.0, %v2406
    %2408 = vdwg.mxu0
    %2409 = vmatpush.msra.mxu0 0.0
    %2410 = vmatpush.msra.mxu0 0.0
    %2411 = vmatpush.msra.mxu0 0.0
    %2412 = vmatpush.msra.mxu0 0.0
    %2413 = vmatpush.msra.mxu0 0.0
    %2414 = vmatpush.msra.mxu0 0.0
    %2415 = vmatpush.msra.mxu0 0.0
    %2416 = vmatpush.msra.mxu0 0.0
    %2417 = vmatpush.msra.mxu0 %v2223
    %2418 = vmatpush.msra.mxu0 %v2221
    %2419 = vmatpush.msra.mxu0 %v2219
    %2420 = vmatpush.msra.mxu0 %v2217
    %2421 = vmatpush.msra.mxu0 %v2215
    %2422 = vmatpush.msra.mxu0 %v2213
    %2423 = vmatpush.msra.mxu0 %v2211
    %2424 = vmatpush.msra.mxu0 %v2209
    %2425 = vmatmul.f32.gmra.mxu0 %v2387
    %v2426 = vpop.f32.mrf.mxu0
    %v2427 = vadd.f32 0.0, %v2426
    %2428 = vdwg.mxu0
    %v2431 = vrot.slane %v2407, 6
    %v2432 = vrot.slane %v2427, 6
    %v2435 = vadd.f32 %v2286, %v2431
    %v2436 = vadd.f32 %v2287, %v2432
    %v2437 = vxor.u32 %v2435, 2147483648
    %v2438 = vxor.u32 %v2436, 2147483648
    %v2439 = vmul.f32 %v2437, 1.442695
    %v2440 = vpow.pop %v2439
    %v2441 = vmul.f32 %v2438, 1.442695
    %v2442 = vpow.pop %v2441
    %v2443 = vadd.f32 %v2440, 1.0
    %v2444 = vadd.f32 %v2442, 1.0
    %v2445 = vrcp.pop %v2443
    %v2446 = vmul.f32 %v2443, %v2445
    %v2447 = vsub.f32 1.0, %v2446
    %v2448 = vmul.f32 %v2445, %v2447
    %v2449 = vadd.f32 %v2445, %v2448
    %vm2450 = vweird.f32 %v2443
    %vm2451 = vweird.f32 %v2445
    %vm2452 = vmor %vm2450, %vm2451
    %v2453 = vsel %vm2452, %v2445, %v2449
    %v2454 = vand.u32 2147483647, %v2443
    %vm2455 = vcmp.eq.f32.partialorder %v2454, 8.507059e+37
    %v2456 = vand.u32 %v2443, 2147483648
    %v2457 = vor.u32 1.1754944e-38, %v2456
    %v2458 = vsel %vm2455, %v2457, %v2453
    %v2459 = vmul.f32 1.0, %v2458
    %v2460 = vrcp.pop %v2444
    %v2461 = vmul.f32 %v2444, %v2460
    %v2462 = vsub.f32 1.0, %v2461
    %v2463 = vmul.f32 %v2460, %v2462
    %v2464 = vadd.f32 %v2460, %v2463
    %vm2465 = vweird.f32 %v2444
    %vm2466 = vweird.f32 %v2460
    %vm2467 = vmor %vm2465, %vm2466
    %v2468 = vsel %vm2467, %v2460, %v2464
    %v2469 = vand.u32 2147483647, %v2444
    %vm2470 = vcmp.eq.f32.partialorder %v2469, 8.507059e+37
    %v2471 = vand.u32 %v2444, 2147483648
    %v2472 = vor.u32 1.1754944e-38, %v2471
    %v2473 = vsel %vm2470, %v2472, %v2468
    %v2474 = vmul.f32 1.0, %v2473
    %v2475 = vtanh.pop %v2436
    %v2477 = vrot.slane %v2379, 6
    %v2479 = vmul.f32 %v2459, %v2477
    %2481 = vrot.lane.b32.xlu0 %v2475, 64
    %v2482 = vpop.permute.xlu0 %2481
    %v2484 = vmul.f32 %v2459, %v2482
    %2486 = vrot.lane.b32.xlu0 %v2484, 64
    %v2487 = vpop.permute.xlu0 %2486
    %v2489 = vadd.f32 %v2479, %v2487
    %v2490 = vtanh.pop %v2489
    %2492 = vrot.lane.b32.xlu0 %v2490, 64
    %v2493 = vpop.permute.xlu0 %2492
    %v2495 = vmul.f32 %v2474, %v2493
    %v2497 = vrot.slane %v2495, 2
    %v2499 = vsel %vm1039, %v2385, %v2497
    %v2500 = vrot.slane %v2385, 6
    %v2502 = vsel %vm1039, %v2495, %v2500
    %v2503 = vsel %vm1560, %v2499, %v2502
    %s2504 = scalar_lea.vmem [#allocation5], 512
    %v2505 = vld [vmem:[%s2504] sm:$0xff]
    %v2506 = vld [vmem:[%s2504 + $0x8] sm:$0xff]
    %v2507 = vld [vmem:[%s2504 + $0x10] sm:$0xff]
    %v2508 = vld [vmem:[%s2504 + $0x18] sm:$0xff]
    %v2509 = vld [vmem:[%s2504 + $0x20] sm:$0xff]
    %v2510 = vld [vmem:[%s2504 + $0x28] sm:$0xff]
    %v2511 = vld [vmem:[%s2504 + $0x30] sm:$0xff]
    %v2512 = vld [vmem:[%s2504 + $0x38] sm:$0xff]
    %v2513 = vld [vmem:[%s2504 + $0x40] sm:$0xff]
    %v2514 = vld [vmem:[%s2504 + $0x48] sm:$0xff]
    %v2515 = vld [vmem:[%s2504 + $0x50] sm:$0xff]
    %v2516 = vld [vmem:[%s2504 + $0x58] sm:$0xff]
    %v2517 = vld [vmem:[%s2504 + $0x60] sm:$0xff]
    %v2518 = vld [vmem:[%s2504 + $0x68] sm:$0xff]
    %v2519 = vld [vmem:[%s2504 + $0x70] sm:$0xff]
    %v2520 = vld [vmem:[%s2504 + $0x78] sm:$0xff]
    %s2521 = scalar_lea.vmem [#allocation7], 512
    %v2522 = vld [vmem:[%s2521] sm:$0xff]
    %v2523 = vld [vmem:[%s2521 + $0x8] sm:$0xff]
    %v2524 = vld [vmem:[%s2521 + $0x10] sm:$0xff]
    %v2525 = vld [vmem:[%s2521 + $0x18] sm:$0xff]
    %v2526 = vld [vmem:[%s2521 + $0x20] sm:$0xff]
    %v2527 = vld [vmem:[%s2521 + $0x28] sm:$0xff]
    %v2528 = vld [vmem:[%s2521 + $0x30] sm:$0xff]
    %v2529 = vld [vmem:[%s2521 + $0x38] sm:$0xff]
    %v2530 = vld [vmem:[%s2521 + $0x40] sm:$0xff]
    %v2531 = vld [vmem:[%s2521 + $0x48] sm:$0xff]
    %v2532 = vld [vmem:[%s2521 + $0x50] sm:$0xff]
    %v2533 = vld [vmem:[%s2521 + $0x58] sm:$0xff]
    %v2534 = vld [vmem:[%s2521 + $0x60] sm:$0xff]
    %v2535 = vld [vmem:[%s2521 + $0x68] sm:$0xff]
    %v2536 = vld [vmem:[%s2521 + $0x70] sm:$0xff]
    %v2537 = vld [vmem:[%s2521 + $0x78] sm:$0xff]
    %s2538 = scalar_lea.vmem %s16, 8
    %v2539 = vld [vmem:[%s2538] sm:$0x3]
    %v2541 = vperm.slane %v2539, 0
    %v2542 = vperm.slane %v2539, 1
    %v2546 = vsel %vm945, %v2503, 0
    %2548 = vmatpush.msra.mxu0 0.0
    %2549 = vmatpush.msra.mxu0 0.0
    %2550 = vmatpush.msra.mxu0 0.0
    %2551 = vmatpush.msra.mxu0 0.0
    %2552 = vmatpush.msra.mxu0 0.0
    %2553 = vmatpush.msra.mxu0 0.0
    %2554 = vmatpush.msra.mxu0 0.0
    %2555 = vmatpush.msra.mxu0 0.0
    %2556 = vmatpush.msra.mxu0 %v2519
    %2557 = vmatpush.msra.mxu0 %v2517
    %2558 = vmatpush.msra.mxu0 %v2515
    %2559 = vmatpush.msra.mxu0 %v2513
    %2560 = vmatpush.msra.mxu0 %v2511
    %2561 = vmatpush.msra.mxu0 %v2509
    %2562 = vmatpush.msra.mxu0 %v2507
    %2563 = vmatpush.msra.mxu0 %v2505
    %2564 = vmatmul.f32.gmra.mxu0 %v2546
    %v2565 = vpop.f32.mrf.mxu0
    %v2566 = vadd.f32 %v2541, %v2565
    %2567 = vdwg.mxu0
    %2568 = vmatpush.msra.mxu0 0.0
    %2569 = vmatpush.msra.mxu0 0.0
    %2570 = vmatpush.msra.mxu0 0.0
    %2571 = vmatpush.msra.mxu0 0.0
    %2572 = vmatpush.msra.mxu0 0.0
    %2573 = vmatpush.msra.mxu0 0.0
    %2574 = vmatpush.msra.mxu0 0.0
    %2575 = vmatpush.msra.mxu0 0.0
    %2576 = vmatpush.msra.mxu0 %v2520
    %2577 = vmatpush.msra.mxu0 %v2518
    %2578 = vmatpush.msra.mxu0 %v2516
    %2579 = vmatpush.msra.mxu0 %v2514
    %2580 = vmatpush.msra.mxu0 %v2512
    %2581 = vmatpush.msra.mxu0 %v2510
    %2582 = vmatpush.msra.mxu0 %v2508
    %2583 = vmatpush.msra.mxu0 %v2506
    %2584 = vmatmul.f32.gmra.mxu0 %v2546
    %v2585 = vpop.f32.mrf.mxu0
    %v2586 = vadd.f32 %v2542, %v2585
    %2587 = vdwg.mxu0
    %v2590 = vrot.slane %v2566, 2
    %v2591 = vrot.slane %v2586, 2
    %v2594 = vsel %vm1326, %v2566, %v2590
    %v2595 = vsel %vm1327, %v2586, %v2591
    %v2596 = vrot.slane %v2566, 6
    %v2597 = vrot.slane %v2586, 6
    %v2600 = vsel %vm1326, %v2566, %v2596
    %v2601 = vsel %vm1327, %v2586, %v2597
    %2602 = vmatpush.msra.mxu0 0.0
    %2603 = vmatpush.msra.mxu0 0.0
    %2604 = vmatpush.msra.mxu0 0.0
    %2605 = vmatpush.msra.mxu0 0.0
    %2606 = vmatpush.msra.mxu0 0.0
    %2607 = vmatpush.msra.mxu0 0.0
    %2608 = vmatpush.msra.mxu0 0.0
    %2609 = vmatpush.msra.mxu0 0.0
    %2610 = vmatpush.msra.mxu0 %v2536
    %2611 = vmatpush.msra.mxu0 %v2534
    %2612 = vmatpush.msra.mxu0 %v2532
    %2613 = vmatpush.msra.mxu0 %v2530
    %2614 = vmatpush.msra.mxu0 %v2528
    %2615 = vmatpush.msra.mxu0 %v2526
    %2616 = vmatpush.msra.mxu0 %v2524
    %2617 = vmatpush.msra.mxu0 %v2522
    %2618 = vmatmul.f32.gmra.mxu0 %v1343
    %v2619 = vpop.f32.mrf.mxu0
    %v2620 = vadd.f32 0.0, %v2619
    %2621 = vdwg.mxu0
    %2622 = vmatpush.msra.mxu0 0.0
    %2623 = vmatpush.msra.mxu0 0.0
    %2624 = vmatpush.msra.mxu0 0.0
    %2625 = vmatpush.msra.mxu0 0.0
    %2626 = vmatpush.msra.mxu0 0.0
    %2627 = vmatpush.msra.mxu0 0.0
    %2628 = vmatpush.msra.mxu0 0.0
    %2629 = vmatpush.msra.mxu0 0.0
    %2630 = vmatpush.msra.mxu0 %v2537
    %2631 = vmatpush.msra.mxu0 %v2535
    %2632 = vmatpush.msra.mxu0 %v2533
    %2633 = vmatpush.msra.mxu0 %v2531
    %2634 = vmatpush.msra.mxu0 %v2529
    %2635 = vmatpush.msra.mxu0 %v2527
    %2636 = vmatpush.msra.mxu0 %v2525
    %2637 = vmatpush.msra.mxu0 %v2523
    %2638 = vmatmul.f32.gmra.mxu0 %v1343
    %v2639 = vpop.f32.mrf.mxu0
    %v2640 = vadd.f32 0.0, %v2639
    %2641 = vdwg.mxu0
    %v2642 = vadd.f32 %v2594, %v2620
    %v2643 = vadd.f32 %v2595, %v2640
    %v2644 = vxor.u32 %v2642, 2147483648
    %v2645 = vxor.u32 %v2643, 2147483648
    %v2646 = vmul.f32 %v2644, 1.442695
    %v2647 = vpow.pop %v2646
    %v2648 = vmul.f32 %v2645, 1.442695
    %v2649 = vpow.pop %v2648
    %v2650 = vadd.f32 %v2647, 1.0
    %v2651 = vadd.f32 %v2649, 1.0
    %v2652 = vrcp.pop %v2650
    %v2653 = vmul.f32 %v2650, %v2652
    %v2654 = vsub.f32 1.0, %v2653
    %v2655 = vmul.f32 %v2652, %v2654
    %v2656 = vadd.f32 %v2652, %v2655
    %vm2657 = vweird.f32 %v2650
    %vm2658 = vweird.f32 %v2652
    %vm2659 = vmor %vm2657, %vm2658
    %v2660 = vsel %vm2659, %v2652, %v2656
    %v2661 = vand.u32 2147483647, %v2650
    %vm2662 = vcmp.eq.f32.partialorder %v2661, 8.507059e+37
    %v2663 = vand.u32 %v2650, 2147483648
    %v2664 = vor.u32 1.1754944e-38, %v2663
    %v2665 = vsel %vm2662, %v2664, %v2660
    %v2666 = vmul.f32 1.0, %v2665
    %v2667 = vrcp.pop %v2651
    %v2668 = vmul.f32 %v2651, %v2667
    %v2669 = vsub.f32 1.0, %v2668
    %v2670 = vmul.f32 %v2667, %v2669
    %v2671 = vadd.f32 %v2667, %v2670
    %vm2672 = vweird.f32 %v2651
    %vm2673 = vweird.f32 %v2667
    %vm2674 = vmor %vm2672, %vm2673
    %v2675 = vsel %vm2674, %v2667, %v2671
    %v2676 = vand.u32 2147483647, %v2651
    %vm2677 = vcmp.eq.f32.partialorder %v2676, 8.507059e+37
    %v2678 = vand.u32 %v2651, 2147483648
    %v2679 = vor.u32 1.1754944e-38, %v2678
    %v2680 = vsel %vm2677, %v2679, %v2675
    %v2681 = vmul.f32 1.0, %v2680
    %v2682 = vtanh.pop %v2643
    %v2683 = vmul.f32 %v2666, 0.0
    %2685 = vrot.lane.b32.xlu0 %v2682, 64
    %v2686 = vpop.permute.xlu0 %2685
    %v2688 = vmul.f32 %v2666, %v2686
    %2690 = vrot.lane.b32.xlu0 %v2688, 64
    %v2691 = vpop.permute.xlu0 %2690
    %v2693 = vadd.f32 %v2683, %v2691
    %v2694 = vtanh.pop %v2693
    %2696 = vrot.lane.b32.xlu0 %v2694, 64
    %v2697 = vpop.permute.xlu0 %2696
    %v2699 = vmul.f32 %v2681, %v2697
    %v2701 = vsel %vm945, %v2699, 0
    %2703 = vmatpush.msra.mxu0 0.0
    %2704 = vmatpush.msra.mxu0 0.0
    %2705 = vmatpush.msra.mxu0 0.0
    %2706 = vmatpush.msra.mxu0 0.0
    %2707 = vmatpush.msra.mxu0 0.0
    %2708 = vmatpush.msra.mxu0 0.0
    %2709 = vmatpush.msra.mxu0 0.0
    %2710 = vmatpush.msra.mxu0 0.0
    %2711 = vmatpush.msra.mxu0 %v2536
    %2712 = vmatpush.msra.mxu0 %v2534
    %2713 = vmatpush.msra.mxu0 %v2532
    %2714 = vmatpush.msra.mxu0 %v2530
    %2715 = vmatpush.msra.mxu0 %v2528
    %2716 = vmatpush.msra.mxu0 %v2526
    %2717 = vmatpush.msra.mxu0 %v2524
    %2718 = vmatpush.msra.mxu0 %v2522
    %2719 = vmatmul.f32.gmra.mxu0 %v2701
    %v2720 = vpop.f32.mrf.mxu0
    %v2721 = vadd.f32 0.0, %v2720
    %2722 = vdwg.mxu0
    %2723 = vmatpush.msra.mxu0 0.0
    %2724 = vmatpush.msra.mxu0 0.0
    %2725 = vmatpush.msra.mxu0 0.0
    %2726 = vmatpush.msra.mxu0 0.0
    %2727 = vmatpush.msra.mxu0 0.0
    %2728 = vmatpush.msra.mxu0 0.0
    %2729 = vmatpush.msra.mxu0 0.0
    %2730 = vmatpush.msra.mxu0 0.0
    %2731 = vmatpush.msra.mxu0 %v2537
    %2732 = vmatpush.msra.mxu0 %v2535
    %2733 = vmatpush.msra.mxu0 %v2533
    %2734 = vmatpush.msra.mxu0 %v2531
    %2735 = vmatpush.msra.mxu0 %v2529
    %2736 = vmatpush.msra.mxu0 %v2527
    %2737 = vmatpush.msra.mxu0 %v2525
    %2738 = vmatpush.msra.mxu0 %v2523
    %2739 = vmatmul.f32.gmra.mxu0 %v2701
    %v2740 = vpop.f32.mrf.mxu0
    %v2741 = vadd.f32 0.0, %v2740
    %2742 = vdwg.mxu0
    %v2745 = vrot.slane %v2721, 6
    %v2746 = vrot.slane %v2741, 6
    %v2749 = vadd.f32 %v2600, %v2745
    %v2750 = vadd.f32 %v2601, %v2746
    %v2751 = vxor.u32 %v2749, 2147483648
    %v2752 = vxor.u32 %v2750, 2147483648
    %v2753 = vmul.f32 %v2751, 1.442695
    %v2754 = vpow.pop %v2753
    %v2755 = vmul.f32 %v2752, 1.442695
    %v2756 = vpow.pop %v2755
    %v2757 = vadd.f32 %v2754, 1.0
    %v2758 = vadd.f32 %v2756, 1.0
    %v2759 = vrcp.pop %v2757
    %v2760 = vmul.f32 %v2757, %v2759
    %v2761 = vsub.f32 1.0, %v2760
    %v2762 = vmul.f32 %v2759, %v2761
    %v2763 = vadd.f32 %v2759, %v2762
    %vm2764 = vweird.f32 %v2757
    %vm2765 = vweird.f32 %v2759
    %vm2766 = vmor %vm2764, %vm2765
    %v2767 = vsel %vm2766, %v2759, %v2763
    %v2768 = vand.u32 2147483647, %v2757
    %vm2769 = vcmp.eq.f32.partialorder %v2768, 8.507059e+37
    %v2770 = vand.u32 %v2757, 2147483648
    %v2771 = vor.u32 1.1754944e-38, %v2770
    %v2772 = vsel %vm2769, %v2771, %v2767
    %v2773 = vmul.f32 1.0, %v2772
    %v2774 = vrcp.pop %v2758
    %v2775 = vmul.f32 %v2758, %v2774
    %v2776 = vsub.f32 1.0, %v2775
    %v2777 = vmul.f32 %v2774, %v2776
    %v2778 = vadd.f32 %v2774, %v2777
    %vm2779 = vweird.f32 %v2758
    %vm2780 = vweird.f32 %v2774
    %vm2781 = vmor %vm2779, %vm2780
    %v2782 = vsel %vm2781, %v2774, %v2778
    %v2783 = vand.u32 2147483647, %v2758
    %vm2784 = vcmp.eq.f32.partialorder %v2783, 8.507059e+37
    %v2785 = vand.u32 %v2758, 2147483648
    %v2786 = vor.u32 1.1754944e-38, %v2785
    %v2787 = vsel %vm2784, %v2786, %v2782
    %v2788 = vmul.f32 1.0, %v2787
    %v2789 = vtanh.pop %v2750
    %v2791 = vrot.slane %v2693, 6
    %v2793 = vmul.f32 %v2773, %v2791
    %2795 = vrot.lane.b32.xlu0 %v2789, 64
    %v2796 = vpop.permute.xlu0 %2795
    %v2798 = vmul.f32 %v2773, %v2796
    %2800 = vrot.lane.b32.xlu0 %v2798, 64
    %v2801 = vpop.permute.xlu0 %2800
    %v2803 = vadd.f32 %v2793, %v2801
    %v2804 = vtanh.pop %v2803
    %2806 = vrot.lane.b32.xlu0 %v2804, 64
    %v2807 = vpop.permute.xlu0 %2806
    %v2809 = vmul.f32 %v2788, %v2807
    %v2811 = vrot.slane %v2809, 2
    %v2813 = vsel %vm1039, %v2699, %v2811
    %v2814 = vrot.slane %v2699, 6
    %v2816 = vsel %vm1039, %v2809, %v2814
    %v2817 = vsel %vm1560, %v2813, %v2816
    %s2818 = scalar_lea.vmem [#allocation5], 640
    %v2819 = vld [vmem:[%s2818] sm:$0xff]
    %v2820 = vld [vmem:[%s2818 + $0x8] sm:$0xff]
    %v2821 = vld [vmem:[%s2818 + $0x10] sm:$0xff]
    %v2822 = vld [vmem:[%s2818 + $0x18] sm:$0xff]
    %v2823 = vld [vmem:[%s2818 + $0x20] sm:$0xff]
    %v2824 = vld [vmem:[%s2818 + $0x28] sm:$0xff]
    %v2825 = vld [vmem:[%s2818 + $0x30] sm:$0xff]
    %v2826 = vld [vmem:[%s2818 + $0x38] sm:$0xff]
    %v2827 = vld [vmem:[%s2818 + $0x40] sm:$0xff]
    %v2828 = vld [vmem:[%s2818 + $0x48] sm:$0xff]
    %v2829 = vld [vmem:[%s2818 + $0x50] sm:$0xff]
    %v2830 = vld [vmem:[%s2818 + $0x58] sm:$0xff]
    %v2831 = vld [vmem:[%s2818 + $0x60] sm:$0xff]
    %v2832 = vld [vmem:[%s2818 + $0x68] sm:$0xff]
    %v2833 = vld [vmem:[%s2818 + $0x70] sm:$0xff]
    %v2834 = vld [vmem:[%s2818 + $0x78] sm:$0xff]
    %s2835 = scalar_lea.vmem [#allocation7], 640
    %v2836 = vld [vmem:[%s2835] sm:$0xff]
    %v2837 = vld [vmem:[%s2835 + $0x8] sm:$0xff]
    %v2838 = vld [vmem:[%s2835 + $0x10] sm:$0xff]
    %v2839 = vld [vmem:[%s2835 + $0x18] sm:$0xff]
    %v2840 = vld [vmem:[%s2835 + $0x20] sm:$0xff]
    %v2841 = vld [vmem:[%s2835 + $0x28] sm:$0xff]
    %v2842 = vld [vmem:[%s2835 + $0x30] sm:$0xff]
    %v2843 = vld [vmem:[%s2835 + $0x38] sm:$0xff]
    %v2844 = vld [vmem:[%s2835 + $0x40] sm:$0xff]
    %v2845 = vld [vmem:[%s2835 + $0x48] sm:$0xff]
    %v2846 = vld [vmem:[%s2835 + $0x50] sm:$0xff]
    %v2847 = vld [vmem:[%s2835 + $0x58] sm:$0xff]
    %v2848 = vld [vmem:[%s2835 + $0x60] sm:$0xff]
    %v2849 = vld [vmem:[%s2835 + $0x68] sm:$0xff]
    %v2850 = vld [vmem:[%s2835 + $0x70] sm:$0xff]
    %v2851 = vld [vmem:[%s2835 + $0x78] sm:$0xff]
    %s2852 = scalar_lea.vmem %s16, 10
    %v2853 = vld [vmem:[%s2852] sm:$0x3]
    %v2855 = vperm.slane %v2853, 0
    %v2856 = vperm.slane %v2853, 1
    %v2860 = vsel %vm945, %v2817, 0
    %2862 = vmatpush.msra.mxu0 0.0
    %2863 = vmatpush.msra.mxu0 0.0
    %2864 = vmatpush.msra.mxu0 0.0
    %2865 = vmatpush.msra.mxu0 0.0
    %2866 = vmatpush.msra.mxu0 0.0
    %2867 = vmatpush.msra.mxu0 0.0
    %2868 = vmatpush.msra.mxu0 0.0
    %2869 = vmatpush.msra.mxu0 0.0
    %2870 = vmatpush.msra.mxu0 %v2833
    %2871 = vmatpush.msra.mxu0 %v2831
    %2872 = vmatpush.msra.mxu0 %v2829
    %2873 = vmatpush.msra.mxu0 %v2827
    %2874 = vmatpush.msra.mxu0 %v2825
    %2875 = vmatpush.msra.mxu0 %v2823
    %2876 = vmatpush.msra.mxu0 %v2821
    %2877 = vmatpush.msra.mxu0 %v2819
    %2878 = vmatmul.f32.gmra.mxu0 %v2860
    %v2879 = vpop.f32.mrf.mxu0
    %v2880 = vadd.f32 %v2855, %v2879
    %2881 = vdwg.mxu0
    %2882 = vmatpush.msra.mxu0 0.0
    %2883 = vmatpush.msra.mxu0 0.0
    %2884 = vmatpush.msra.mxu0 0.0
    %2885 = vmatpush.msra.mxu0 0.0
    %2886 = vmatpush.msra.mxu0 0.0
    %2887 = vmatpush.msra.mxu0 0.0
    %2888 = vmatpush.msra.mxu0 0.0
    %2889 = vmatpush.msra.mxu0 0.0
    %2890 = vmatpush.msra.mxu0 %v2834
    %2891 = vmatpush.msra.mxu0 %v2832
    %2892 = vmatpush.msra.mxu0 %v2830
    %2893 = vmatpush.msra.mxu0 %v2828
    %2894 = vmatpush.msra.mxu0 %v2826
    %2895 = vmatpush.msra.mxu0 %v2824
    %2896 = vmatpush.msra.mxu0 %v2822
    %2897 = vmatpush.msra.mxu0 %v2820
    %2898 = vmatmul.f32.gmra.mxu0 %v2860
    %v2899 = vpop.f32.mrf.mxu0
    %v2900 = vadd.f32 %v2856, %v2899
    %2901 = vdwg.mxu0
    %v2904 = vrot.slane %v2880, 2
    %v2905 = vrot.slane %v2900, 2
    %v2908 = vsel %vm1326, %v2880, %v2904
    %v2909 = vsel %vm1327, %v2900, %v2905
    %v2910 = vrot.slane %v2880, 6
    %v2911 = vrot.slane %v2900, 6
    %v2914 = vsel %vm1326, %v2880, %v2910
    %v2915 = vsel %vm1327, %v2900, %v2911
    %2916 = vmatpush.msra.mxu0 0.0
    %2917 = vmatpush.msra.mxu0 0.0
    %2918 = vmatpush.msra.mxu0 0.0
    %2919 = vmatpush.msra.mxu0 0.0
    %2920 = vmatpush.msra.mxu0 0.0
    %2921 = vmatpush.msra.mxu0 0.0
    %2922 = vmatpush.msra.mxu0 0.0
    %2923 = vmatpush.msra.mxu0 0.0
    %2924 = vmatpush.msra.mxu0 %v2850
    %2925 = vmatpush.msra.mxu0 %v2848
    %2926 = vmatpush.msra.mxu0 %v2846
    %2927 = vmatpush.msra.mxu0 %v2844
    %2928 = vmatpush.msra.mxu0 %v2842
    %2929 = vmatpush.msra.mxu0 %v2840
    %2930 = vmatpush.msra.mxu0 %v2838
    %2931 = vmatpush.msra.mxu0 %v2836
    %2932 = vmatmul.f32.gmra.mxu0 %v1343
    %v2933 = vpop.f32.mrf.mxu0
    %v2934 = vadd.f32 0.0, %v2933
    %2935 = vdwg.mxu0
    %2936 = vmatpush.msra.mxu0 0.0
    %2937 = vmatpush.msra.mxu0 0.0
    %2938 = vmatpush.msra.mxu0 0.0
    %2939 = vmatpush.msra.mxu0 0.0
    %2940 = vmatpush.msra.mxu0 0.0
    %2941 = vmatpush.msra.mxu0 0.0
    %2942 = vmatpush.msra.mxu0 0.0
    %2943 = vmatpush.msra.mxu0 0.0
    %2944 = vmatpush.msra.mxu0 %v2851
    %2945 = vmatpush.msra.mxu0 %v2849
    %2946 = vmatpush.msra.mxu0 %v2847
    %2947 = vmatpush.msra.mxu0 %v2845
    %2948 = vmatpush.msra.mxu0 %v2843
    %2949 = vmatpush.msra.mxu0 %v2841
    %2950 = vmatpush.msra.mxu0 %v2839
    %2951 = vmatpush.msra.mxu0 %v2837
    %2952 = vmatmul.f32.gmra.mxu0 %v1343
    %v2953 = vpop.f32.mrf.mxu0
    %v2954 = vadd.f32 0.0, %v2953
    %2955 = vdwg.mxu0
    %v2956 = vadd.f32 %v2908, %v2934
    %v2957 = vadd.f32 %v2909, %v2954
    %v2958 = vxor.u32 %v2956, 2147483648
    %v2959 = vxor.u32 %v2957, 2147483648
    %v2960 = vmul.f32 %v2958, 1.442695
    %v2961 = vpow.pop %v2960
    %v2962 = vmul.f32 %v2959, 1.442695
    %v2963 = vpow.pop %v2962
    %v2964 = vadd.f32 %v2961, 1.0
    %v2965 = vadd.f32 %v2963, 1.0
    %v2966 = vrcp.pop %v2964
    %v2967 = vmul.f32 %v2964, %v2966
    %v2968 = vsub.f32 1.0, %v2967
    %v2969 = vmul.f32 %v2966, %v2968
    %v2970 = vadd.f32 %v2966, %v2969
    %vm2971 = vweird.f32 %v2964
    %vm2972 = vweird.f32 %v2966
    %vm2973 = vmor %vm2971, %vm2972
    %v2974 = vsel %vm2973, %v2966, %v2970
    %v2975 = vand.u32 2147483647, %v2964
    %vm2976 = vcmp.eq.f32.partialorder %v2975, 8.507059e+37
    %v2977 = vand.u32 %v2964, 2147483648
    %v2978 = vor.u32 1.1754944e-38, %v2977
    %v2979 = vsel %vm2976, %v2978, %v2974
    %v2980 = vmul.f32 1.0, %v2979
    %v2981 = vrcp.pop %v2965
    %v2982 = vmul.f32 %v2965, %v2981
    %v2983 = vsub.f32 1.0, %v2982
    %v2984 = vmul.f32 %v2981, %v2983
    %v2985 = vadd.f32 %v2981, %v2984
    %vm2986 = vweird.f32 %v2965
    %vm2987 = vweird.f32 %v2981
    %vm2988 = vmor %vm2986, %vm2987
    %v2989 = vsel %vm2988, %v2981, %v2985
    %v2990 = vand.u32 2147483647, %v2965
    %vm2991 = vcmp.eq.f32.partialorder %v2990, 8.507059e+37
    %v2992 = vand.u32 %v2965, 2147483648
    %v2993 = vor.u32 1.1754944e-38, %v2992
    %v2994 = vsel %vm2991, %v2993, %v2989
    %v2995 = vmul.f32 1.0, %v2994
    %v2996 = vtanh.pop %v2957
    %v2997 = vmul.f32 %v2980, 0.0
    %2999 = vrot.lane.b32.xlu0 %v2996, 64
    %v3000 = vpop.permute.xlu0 %2999
    %v3002 = vmul.f32 %v2980, %v3000
    %3004 = vrot.lane.b32.xlu0 %v3002, 64
    %v3005 = vpop.permute.xlu0 %3004
    %v3007 = vadd.f32 %v2997, %v3005
    %v3008 = vtanh.pop %v3007
    %3010 = vrot.lane.b32.xlu0 %v3008, 64
    %v3011 = vpop.permute.xlu0 %3010
    %v3013 = vmul.f32 %v2995, %v3011
    %v3015 = vsel %vm945, %v3013, 0
    %3017 = vmatpush.msra.mxu0 0.0
    %3018 = vmatpush.msra.mxu0 0.0
    %3019 = vmatpush.msra.mxu0 0.0
    %3020 = vmatpush.msra.mxu0 0.0
    %3021 = vmatpush.msra.mxu0 0.0
    %3022 = vmatpush.msra.mxu0 0.0
    %3023 = vmatpush.msra.mxu0 0.0
    %3024 = vmatpush.msra.mxu0 0.0
    %3025 = vmatpush.msra.mxu0 %v2850
    %3026 = vmatpush.msra.mxu0 %v2848
    %3027 = vmatpush.msra.mxu0 %v2846
    %3028 = vmatpush.msra.mxu0 %v2844
    %3029 = vmatpush.msra.mxu0 %v2842
    %3030 = vmatpush.msra.mxu0 %v2840
    %3031 = vmatpush.msra.mxu0 %v2838
    %3032 = vmatpush.msra.mxu0 %v2836
    %3033 = vmatmul.f32.gmra.mxu0 %v3015
    %v3034 = vpop.f32.mrf.mxu0
    %v3035 = vadd.f32 0.0, %v3034
    %3036 = vdwg.mxu0
    %3037 = vmatpush.msra.mxu0 0.0
    %3038 = vmatpush.msra.mxu0 0.0
    %3039 = vmatpush.msra.mxu0 0.0
    %3040 = vmatpush.msra.mxu0 0.0
    %3041 = vmatpush.msra.mxu0 0.0
    %3042 = vmatpush.msra.mxu0 0.0
    %3043 = vmatpush.msra.mxu0 0.0
    %3044 = vmatpush.msra.mxu0 0.0
    %3045 = vmatpush.msra.mxu0 %v2851
    %3046 = vmatpush.msra.mxu0 %v2849
    %3047 = vmatpush.msra.mxu0 %v2847
    %3048 = vmatpush.msra.mxu0 %v2845
    %3049 = vmatpush.msra.mxu0 %v2843
    %3050 = vmatpush.msra.mxu0 %v2841
    %3051 = vmatpush.msra.mxu0 %v2839
    %3052 = vmatpush.msra.mxu0 %v2837
    %3053 = vmatmul.f32.gmra.mxu0 %v3015
    %v3054 = vpop.f32.mrf.mxu0
    %v3055 = vadd.f32 0.0, %v3054
    %3056 = vdwg.mxu0
    %v3059 = vrot.slane %v3035, 6
    %v3060 = vrot.slane %v3055, 6
    %v3063 = vadd.f32 %v2914, %v3059
    %v3064 = vadd.f32 %v2915, %v3060
    %v3065 = vxor.u32 %v3063, 2147483648
    %v3066 = vxor.u32 %v3064, 2147483648
    %v3067 = vmul.f32 %v3065, 1.442695
    %v3068 = vpow.pop %v3067
    %v3069 = vmul.f32 %v3066, 1.442695
    %v3070 = vpow.pop %v3069
    %v3071 = vadd.f32 %v3068, 1.0
    %v3072 = vadd.f32 %v3070, 1.0
    %v3073 = vrcp.pop %v3071
    %v3074 = vmul.f32 %v3071, %v3073
    %v3075 = vsub.f32 1.0, %v3074
    %v3076 = vmul.f32 %v3073, %v3075
    %v3077 = vadd.f32 %v3073, %v3076
    %vm3078 = vweird.f32 %v3071
    %vm3079 = vweird.f32 %v3073
    %vm3080 = vmor %vm3078, %vm3079
    %v3081 = vsel %vm3080, %v3073, %v3077
    %v3082 = vand.u32 2147483647, %v3071
    %vm3083 = vcmp.eq.f32.partialorder %v3082, 8.507059e+37
    %v3084 = vand.u32 %v3071, 2147483648
    %v3085 = vor.u32 1.1754944e-38, %v3084
    %v3086 = vsel %vm3083, %v3085, %v3081
    %v3087 = vmul.f32 1.0, %v3086
    %v3088 = vrcp.pop %v3072
    %v3089 = vmul.f32 %v3072, %v3088
    %v3090 = vsub.f32 1.0, %v3089
    %v3091 = vmul.f32 %v3088, %v3090
    %v3092 = vadd.f32 %v3088, %v3091
    %vm3093 = vweird.f32 %v3072
    %vm3094 = vweird.f32 %v3088
    %vm3095 = vmor %vm3093, %vm3094
    %v3096 = vsel %vm3095, %v3088, %v3092
    %v3097 = vand.u32 2147483647, %v3072
    %vm3098 = vcmp.eq.f32.partialorder %v3097, 8.507059e+37
    %v3099 = vand.u32 %v3072, 2147483648
    %v3100 = vor.u32 1.1754944e-38, %v3099
    %v3101 = vsel %vm3098, %v3100, %v3096
    %v3102 = vmul.f32 1.0, %v3101
    %v3103 = vtanh.pop %v3064
    %v3105 = vrot.slane %v3007, 6
    %v3107 = vmul.f32 %v3087, %v3105
    %3109 = vrot.lane.b32.xlu0 %v3103, 64
    %v3110 = vpop.permute.xlu0 %3109
    %v3112 = vmul.f32 %v3087, %v3110
    %3114 = vrot.lane.b32.xlu0 %v3112, 64
    %v3115 = vpop.permute.xlu0 %3114
    %v3117 = vadd.f32 %v3107, %v3115
    %v3118 = vtanh.pop %v3117
    %3120 = vrot.lane.b32.xlu0 %v3118, 64
    %v3121 = vpop.permute.xlu0 %3120
    %v3123 = vmul.f32 %v3102, %v3121
    %v3124 = vld [vmem:[%s18] sm:$0xff]
    %v3125 = vld [vmem:[%s18 + $0x8] sm:$0xff]
    %v3126 = vld [vmem:[%s18 + $0x10] sm:$0xff]
    %v3127 = vld [vmem:[%s18 + $0x18] sm:$0xff]
    %v3128 = vld [vmem:[%s18 + $0x20] sm:$0xff]
    %v3129 = vld [vmem:[%s18 + $0x28] sm:$0xff]
    %v3130 = vld [vmem:[%s18 + $0x30] sm:$0xff]
    %v3131 = vld [vmem:[%s18 + $0x38] sm:$0xff]
    %v3132 = vld [vmem:[%s19] sm:$0x1]
    %v3134 = vperm.slane %v3132, 0
    %v3137 = vrot.slane %v3123, 2
    %v3138 = vsel %vm945, %v3137, 0
    %3140 = vmatpush.msra.mxu0 0.0
    %3141 = vmatpush.msra.mxu0 0.0
    %3142 = vmatpush.msra.mxu0 0.0
    %3143 = vmatpush.msra.mxu0 0.0
    %3144 = vmatpush.msra.mxu0 0.0
    %3145 = vmatpush.msra.mxu0 0.0
    %3146 = vmatpush.msra.mxu0 0.0
    %3147 = vmatpush.msra.mxu0 0.0
    %3148 = vmatpush.msra.mxu0 %v3131
    %3149 = vmatpush.msra.mxu0 %v3130
    %3150 = vmatpush.msra.mxu0 %v3129
    %3151 = vmatpush.msra.mxu0 %v3128
    %3152 = vmatpush.msra.mxu0 %v3127
    %3153 = vmatpush.msra.mxu0 %v3126
    %3154 = vmatpush.msra.mxu0 %v3125
    %3155 = vmatpush.msra.mxu0 %v3124
    %3156 = vmatmul.f32.gmra.mxu0 %v3138
    %v3157 = vpop.f32.mrf.mxu0
    %v3158 = vadd.f32 %v3134, %v3157
    %3159 = vdwg.mxu0
    %v3160 = vmax.f32 %v3158, 0.0
    %v3161 = vld [vmem:[%s20] sm:$0xff]
    %v3162 = vld [vmem:[%s20 + $0x8] sm:$0xff]
    %v3163 = vld [vmem:[%s20 + $0x10] sm:$0xff]
    %v3164 = vld [vmem:[%s20 + $0x18] sm:$0xff]
    %v3165 = vld [vmem:[%s21] sm:$0x1]
    %v3167 = vperm.slane %v3165, 0
    %v3170 = vsel %vm1039, %v3160, 0
    %3172 = vmatpush.msra.mxu0 0.0
    %3173 = vmatpush.msra.mxu0 0.0
    %3174 = vmatpush.msra.mxu0 0.0
    %3175 = vmatpush.msra.mxu0 0.0
    %3176 = vmatpush.msra.mxu0 0.0
    %3177 = vmatpush.msra.mxu0 0.0
    %3178 = vmatpush.msra.mxu0 0.0
    %3179 = vmatpush.msra.mxu0 0.0
    %3180 = vmatpush.msra.mxu0 0.0
    %3181 = vmatpush.msra.mxu0 0.0
    %3182 = vmatpush.msra.mxu0 0.0
    %3183 = vmatpush.msra.mxu0 0.0
    %3184 = vmatpush.msra.mxu0 %v3164
    %3185 = vmatpush.msra.mxu0 %v3163
    %3186 = vmatpush.msra.mxu0 %v3162
    %3187 = vmatpush.msra.mxu0 %v3161
    %3188 = vmatmul.f32.gmra.mxu0 %v3170
    %v3189 = vpop.f32.mrf.mxu0
    %v3190 = vadd.f32 %v3167, %v3189
    %3191 = vdwg.mxu0
    %vm3192 = vcmask 33792
    %3193 = vst.msk [vmem:[#allocation8] sm:$0x3] %vm3192, %v3190
    // Predicated region
    $region102: #{net_project4_forward.1} parent=1 // pred_check
      _
    $region103: #{net_project4_forward.1} parent=1 // pred_check_branch
      %3195 = sbr.rel (0) target = $region105
    $region104: #{net_project4_forward.1} parent=1 // pred_region
      %3197 = vsyncadd [#allocation4], 0
      %s3199 = sshll.u32 [#allocation8], 4
      %s3200 = int_to_ptr.vmem [resolvable:$true] %s3199
      %s3201 = sshll.u32 %s22, 4
      %s3202 = int_to_ptr.hbm [resolvable:$true] %s3201
      %3204 = dma.vmem_to_hbm [thread:$0]  %s3200, 32, %s3202, [#allocation4]
    $region105: #{net_project4_forward.1} parent=1 // pred_fallthru
      _
    // Predicated region
    $region106: #{net_project4_forward.1} parent=1 // pred_check
      _
    $region107: #{net_project4_forward.1} parent=1 // pred_check_branch
      %3206 = sbr.rel (0) target = $region109
    $region108: #{net_project4_forward.1} parent=1 // pred_region
      %3208 = dma.done [#allocation4], 32
    $region109: #{net_project4_forward.1} parent=1 // pred_fallthru
      _
    %3209 = vsyncpa [#allocation3], 1
    %3210 = vsyncpa [#allocation6], 1
    %3211 = vsyncpa [#allocation4], 1

</llo_original>
